<compile_context>
chip_gen: v7x
topology: tpu7x:2x2x1
jax: 0.10.0
libtpu: 0.0.40
codegen_flags: <defaults>
</compile_context>

<pallas_src>
import functools

import jax
import jax.numpy as jnp
from jax.experimental import pallas as pl
from jax.experimental.pallas import tpu as pltpu


def _round_up(x, m):
    return (x + m - 1) // m * m


# ----------------------------------------------------------------------------
# Pallas kernel: tiled GEMM + bias + activation (bf16 in, f32 accumulate)
# ----------------------------------------------------------------------------
def _gemm_bias_act_kernel(a_ref, b_ref, bias_ref, o_ref, acc_ref, *, act):
    @pl.when(pl.program_id(2) == 0)
    def _init():
        acc_ref[...] = jnp.zeros_like(acc_ref)

    acc_ref[...] += jnp.dot(a_ref[...], b_ref[...],
                            preferred_element_type=jnp.float32)

    @pl.when(pl.program_id(2) == pl.num_programs(2) - 1)
    def _finalize():
        out = acc_ref[...] + bias_ref[...]          # (1, tn) broadcast over rows
        if act == "relu":
            out = jnp.maximum(out, 0.0)
        elif act == "sigmoid":
            out = jax.nn.sigmoid(out)
        o_ref[...] = out.astype(o_ref.dtype)


def gemm_bias_act(a, b, bias, act, out_dtype=jnp.float32):
    """(M,K) @ (K,N) + bias(N,), fused activation. bf16 MXU inputs, f32 acc."""
    M, K = a.shape
    K2, N = b.shape
    assert K == K2

    a = a.astype(jnp.bfloat16)
    b = b.astype(jnp.bfloat16)
    bias = bias.reshape(1, N).astype(jnp.float32)

    # Lane/sublane-friendly padding: K, N -> multiples of 128; M -> multiple of 8.
    K_pad = _round_up(K, 128)
    N_pad = _round_up(N, 128)
    if _round_up(M, 8) <= 256:
        tm = _round_up(M, 8)
        M_pad = tm
    else:
        tm = 256
        M_pad = _round_up(M, 256)
    tn = 256 if N_pad % 256 == 0 else 128
    tk = 512 if K_pad % 512 == 0 else (256 if K_pad % 256 == 0 else 128)

    a_p = jnp.pad(a, ((0, M_pad - M), (0, K_pad - K)))
    b_p = jnp.pad(b, ((0, K_pad - K), (0, N_pad - N)))
    bias_p = jnp.pad(bias, ((0, 0), (0, N_pad - N)))

    grid = (M_pad // tm, N_pad // tn, K_pad // tk)

    cost = pl.CostEstimate(
        flops=2 * M_pad * N_pad * K_pad,
        transcendentals=M_pad * N_pad if act == "sigmoid" else 0,
        bytes_accessed=(a_p.size * 2 + b_p.size * 2 + bias_p.size * 4
                        + M_pad * N_pad * jnp.dtype(out_dtype).itemsize),
    )

    out = pl.pallas_call(
        functools.partial(_gemm_bias_act_kernel, act=act),
        out_shape=jax.ShapeDtypeStruct((M_pad, N_pad), out_dtype),
        grid_spec=pltpu.PrefetchScalarGridSpec(
            num_scalar_prefetch=0,
            grid=grid,
            in_specs=[
                pl.BlockSpec((tm, tk), lambda i, j, k: (i, k)),
                pl.BlockSpec((tk, tn), lambda i, j, k: (k, j)),
                pl.BlockSpec((1, tn), lambda i, j, k: (0, j)),
            ],
            out_specs=pl.BlockSpec((tm, tn), lambda i, j, k: (i, j)),
            scratch_shapes=[pltpu.VMEM((tm, tn), jnp.float32)],
        ),
        compiler_params=pltpu.CompilerParams(
            dimension_semantics=("parallel", "parallel", "arbitrary"),
            vmem_limit_bytes=32 * 1024 * 1024,
        ),
        cost_estimate=cost,
    )(a_p, b_p, bias_p)
    return out[:M, :N]


# ----------------------------------------------------------------------------
# im2col glue (NHWC, no transposes) + conv wrappers
# ----------------------------------------------------------------------------
def _im2col_nhwc(x, k, stride, pad):
    """x: (N, H, W, C) -> cols (N*Ho*Wo, k*k*C), plus (Ho, Wo)."""
    n, h, w, c = x.shape
    xp = jnp.pad(x, ((0, 0), (pad, pad), (pad, pad), (0, 0)))
    ho = (h + 2 * pad - k) // stride + 1
    wo = (w + 2 * pad - k) // stride + 1
    patches = []
    for kh in range(k):
        for kw in range(k):
            patches.append(
                xp[:, kh:kh + stride * (ho - 1) + 1:stride,
                      kw:kw + stride * (wo - 1) + 1:stride, :])
    cols = jnp.concatenate(patches, axis=-1)        # (N, Ho, Wo, k*k*C)
    return cols.reshape(n * ho * wo, k * k * c), ho, wo


# TODO(synk): fold the patch gather into the Pallas kernel (kh/kw as extra grid
# reduction axes over an HBM-resident NHWC input) to avoid materializing the
# k*k-times-larger im2col matrix in HBM.
def conv2d_nhwc(x, w, b, stride, pad, act, out_dtype):
    """PyTorch nn.Conv2d, NHWC activations. w: (Cout, Cin, k, k), b: (Cout,)."""
    n = x.shape[0]
    cout, cin, k, _ = w.shape
    cols, ho, wo = _im2col_nhwc(x, k, stride, pad)
    w_mat = w.transpose(2, 3, 1, 0).reshape(k * k * cin, cout)
    out = gemm_bias_act(cols, w_mat, b, act, out_dtype)
    return out.reshape(n, ho, wo, cout)


def conv_transpose2d_nhwc(x, w, b, act, out_dtype):
    """PyTorch nn.ConvTranspose2d(kernel_size=4, stride=2, padding=1), NHWC.

    Sub-pixel decomposition: output phase (oh%2, ow%2) = stride-1 conv of the
    (undilated) input with a 2x2 sub-kernel of w, so no MXU work is spent on
    the 75% zeros of the zero-dilated formulation.
    w: (Cin, Cout, 4, 4), b: (Cout,).
    """
    n, h, wdim, cin = x.shape
    cout = w.shape[1]
    xp = jnp.pad(x, ((0, 0), (1, 1), (1, 1), (0, 0)))
    rows = []
    for a in (0, 1):                       # output row parity
        cols_out = []
        for bb in (0, 1):                  # output col parity
            patches, taps = [], []
            for th in (0, 1):
                for tw in (0, 1):
                    patches.append(xp[:, a + th:a + th + h,
                                         bb + tw:bb + tw + wdim, :])
                    taps.append(w[:, :, 3 - a - 2 * th, 3 - bb - 2 * tw])
            cols = jnp.concatenate(patches, axis=-1).reshape(
                n * h * wdim, 4 * cin)
            w_mat = jnp.concatenate(taps, axis=0)          # (4*Cin, Cout)
            y = gemm_bias_act(cols, w_mat, b, act, out_dtype)
            cols_out.append(y.reshape(n, h, wdim, cout))
        rows.append(jnp.stack(cols_out, axis=3))           # (N, H, W, 2, C)
    full = jnp.stack(rows, axis=2)                         # (N, H, 2, W, 2, C)
    return full.reshape(n, 2 * h, 2 * wdim, cout)


# ----------------------------------------------------------------------------
# EncoderDecoder parameters + forward
# ----------------------------------------------------------------------------
def init_params(key, in_channels, latent_dim, out_channels):
    def conv_w(key, cout, cin, k):
        fan_in = cin * k * k
        bound = 1.0 / jnp.sqrt(fan_in)
        kw_, kb = jax.random.split(key)
        w = jax.random.uniform(kw_, (cout, cin, k, k), jnp.float32, -bound, bound)
        b = jax.random.uniform(kb, (cout,), jnp.float32, -bound, bound)
        return w, b

    def convT_w(key, cin, cout, k):
        fan_in = cout * k * k              # PyTorch uses weight.size(1)*k*k
        bound = 1.0 / jnp.sqrt(fan_in)
        kw_, kb = jax.random.split(key)
        w = jax.random.uniform(kw_, (cin, cout, k, k), jnp.float32, -bound, bound)
        b = jax.random.uniform(kb, (cout,), jnp.float32, -bound, bound)
        return w, b

    keys = jax.random.split(key, 6)
    return {
        "enc1": conv_w(keys[0], 64, in_channels, 4),
        "enc2": conv_w(keys[1], 128, 64, 4),
        "enc3": conv_w(keys[2], latent_dim, 128, 4),
        "dec1": convT_w(keys[3], latent_dim, 128, 4),
        "dec2": convT_w(keys[4], 128, 64, 4),
        "dec3": convT_w(keys[5], 64, out_channels, 4),
    }


def encoder_decoder_forward(params, x):
    """x: (N, Cin, H, W) PyTorch layout -> (N, Cout, H, W)."""
    h = jnp.transpose(x, (0, 2, 3, 1))                     # NCHW -> NHWC once
    # Encoder: Conv2d(k=4, s=2, p=1) + ReLU, x3 (intermediates kept bf16).
    h = conv2d_nhwc(h, *params["enc1"], stride=2, pad=1, act="relu",
                    out_dtype=jnp.bfloat16)
    h = conv2d_nhwc(h, *params["enc2"], stride=2, pad=1, act="relu",
                    out_dtype=jnp.bfloat16)
    h = conv2d_nhwc(h, *params["enc3"], stride=2, pad=1, act="relu",
                    out_dtype=jnp.bfloat16)
    # Decoder: ConvTranspose2d(k=4, s=2, p=1) + ReLU, ReLU, Sigmoid.
    h = conv_transpose2d_nhwc(h, *params["dec1"], act="relu",
                              out_dtype=jnp.bfloat16)
    h = conv_transpose2d_nhwc(h, *params["dec2"], act="relu",
                              out_dtype=jnp.bfloat16)
    h = conv_transpose2d_nhwc(h, *params["dec3"], act="sigmoid",
                              out_dtype=jnp.float32)
    return jnp.transpose(h, (0, 3, 1, 2))                  # NHWC -> NCHW once


# ----------------------------------------------------------------------------
# Pure-XLA references (correctness checks only)
# ----------------------------------------------------------------------------
def _ref_conv2d(x, w, b, stride, pad):
    y = jax.lax.conv_general_dilated(
        x, w, (stride, stride), [(pad, pad), (pad, pad)],
        dimension_numbers=("NCHW", "OIHW", "NCHW"),
        precision=jax.lax.Precision.HIGHEST)
    return y + b.reshape(1, -1, 1, 1)


def _ref_conv_transpose2d(x, w, b, stride, pad):
    k = w.shape[2]
    w_eq = jnp.flip(w, (2, 3)).transpose(1, 0, 2, 3)
    y = jax.lax.conv_general_dilated(
        x, w_eq, (1, 1), [(k - 1 - pad, k - 1 - pad)] * 2,
        lhs_dilation=(stride, stride),
        dimension_numbers=("NCHW", "OIHW", "NCHW"),
        precision=jax.lax.Precision.HIGHEST)
    return y + b.reshape(1, -1, 1, 1)


def _reference_forward(params, x):
    h = jax.nn.relu(_ref_conv2d(x, *params["enc1"], 2, 1))
    h = jax.nn.relu(_ref_conv2d(h, *params["enc2"], 2, 1))
    h = jax.nn.relu(_ref_conv2d(h, *params["enc3"], 2, 1))
    h = jax.nn.relu(_ref_conv_transpose2d(h, *params["dec1"], 2, 1))
    h = jax.nn.relu(_ref_conv_transpose2d(h, *params["dec2"], 2, 1))
    return jax.nn.sigmoid(_ref_conv_transpose2d(h, *params["dec3"], 2, 1))


if __name__ == "__main__":
    in_channels, out_channels = 3, 3
    latent_dim = 256                     # as in the PyTorch module
    batch, spatial = 2, 16

    key = jax.random.PRNGKey(0)
    pkey, xkey, ckey = jax.random.split(key, 3)
    params = init_params(pkey, in_channels, latent_dim, out_channels)
    x = jax.random.normal(xkey, (batch, in_channels, spatial, spatial),
                          jnp.float32)

    fwd = jax.jit(encoder_decoder_forward)
    y = fwd(params, x)
    jax.block_until_ready(y)
    assert y.shape == (batch, out_channels, spatial, spatial), y.shape
    assert bool(jnp.all((y >= 0.0) & (y <= 1.0)))            # sigmoid range

    # --- correctness vs XLA reference (bf16 MXU inputs -> loose tolerance) ---
    k1, k2, k3, k4, k5, k6 = jax.random.split(ckey, 6)
    xc = jax.random.normal(k1, (2, 8, 10, 16), jnp.float32)          # NHWC
    wc = jax.random.normal(k2, (32, 16, 4, 4), jnp.float32) * 0.1
    bc = jax.random.normal(k3, (32,), jnp.float32) * 0.1
    yc = conv2d_nhwc(xc, wc, bc, stride=2, pad=1, act="relu",
                     out_dtype=jnp.float32)
    yc_ref = jnp.transpose(
        jax.nn.relu(_ref_conv2d(jnp.transpose(xc, (0, 3, 1, 2)), wc, bc, 2, 1)),
        (0, 2, 3, 1))
    assert float(jnp.max(jnp.abs(yc - yc_ref))) < 5e-2

    xt = jax.random.normal(k4, (2, 5, 7, 24), jnp.float32)           # NHWC
    wt = jax.random.normal(k5, (24, 16, 4, 4), jnp.float32) * 0.1
    bt = jax.random.normal(k6, (16,), jnp.float32) * 0.1
    yt = conv_transpose2d_nhwc(xt, wt, bt, act="relu", out_dtype=jnp.float32)
    yt_ref = jnp.transpose(
        jax.nn.relu(_ref_conv_transpose2d(jnp.transpose(xt, (0, 3, 1, 2)),
                                          wt, bt, 2, 1)),
        (0, 2, 3, 1))
    assert float(jnp.max(jnp.abs(yt - yt_ref))) < 5e-2

    y_ref = _reference_forward(params, x)
    assert float(jnp.max(jnp.abs(y - y_ref))) < 5e-2

    print("KERNEL_OK")
</pallas_src>

<mosaic_0001>
module attributes {stable_mosaic.version = 11 : i64} {
  func.func @_gemm_bias_act_kernel(%arg0: i32, %arg1: i32, %arg2: i32, %arg3: memref<128x128xbf16, #tpu.memory_space<vmem>>, %arg4: memref<128x128xbf16, #tpu.memory_space<vmem>>, %arg5: memref<1x128xf32, #tpu.memory_space<vmem>>, %arg6: memref<128x128xbf16, #tpu.memory_space<vmem>>, %arg7: memref<128x128xf32, #tpu.memory_space<vmem>>) attributes {dimension_semantics = [#tpu.dimension_semantics<parallel>, #tpu.dimension_semantics<parallel>, #tpu.dimension_semantics<arbitrary>], iteration_bounds = array<i64: 1, 1, 1>, scalar_prefetch = 0 : i64, scratch_operands = 1 : i64, tpu.core_type = #tpu.core_type<tc>, window_params = [{transform_indices = @transform_0, window_bounds = array<i64: 128, 128>}, {transform_indices = @transform_1, window_bounds = array<i64: 128, 128>}, {transform_indices = @transform_2, window_bounds = array<i64: 1, 128>}, {transform_indices = @transform_3, window_bounds = array<i64: 128, 128>}]} {
    %c0_i32 = arith.constant 0 : i32
    %0 = arith.cmpi eq, %arg2, %c0_i32 : i32
    %1 = arith.extui %0 : i1 to i32
    %c0_i32_0 = arith.constant 0 : i32
    %2 = arith.cmpi ne, %1, %c0_i32_0 : i32
    scf.if %2 {
      %cst_10 = arith.constant 0.000000e+00 : f32
      %12 = vector.broadcast %cst_10 : f32 to vector<128x128xf32>
      %c0_11 = arith.constant 0 : index
      %c0_12 = arith.constant 0 : index
      %13 = vector.load %arg7[%c0_11, %c0_12] : memref<128x128xf32, #tpu.memory_space<vmem>>, vector<128x128xf32>
      tpu.vector_store %arg7[%c0_11, %c0_12], %12 {strides = array<i32>} : memref<128x128xf32, #tpu.memory_space<vmem>>, vector<128x128xf32>,
    } else {
    }
    %c0 = arith.constant 0 : index
    %c0_1 = arith.constant 0 : index
    %3 = vector.load %arg7[%c0, %c0_1] : memref<128x128xf32, #tpu.memory_space<vmem>>, vector<128x128xf32>
    %c0_2 = arith.constant 0 : index
    %c0_3 = arith.constant 0 : index
    %4 = vector.load %arg3[%c0_2, %c0_3] : memref<128x128xbf16, #tpu.memory_space<vmem>>, vector<128x128xbf16>
    %c0_4 = arith.constant 0 : index
    %c0_5 = arith.constant 0 : index
    %5 = vector.load %arg4[%c0_4, %c0_5] : memref<128x128xbf16, #tpu.memory_space<vmem>>, vector<128x128xbf16>
    %cst = arith.constant dense<0.000000e+00> : vector<128x128xf32>
    %6 = tpu.matmul %4, %5, %cst {dimension_numbers = #tpu.dot_dimension_numbers<[1], [0], [0], [1], [0, 0, 1, 1], [], []>} : vector<128x128xbf16>, vector<128x128xbf16>, vector<128x128xf32> -> vector<128x128xf32>
    %7 = arith.addf %3, %6 : vector<128x128xf32>
    %c0_6 = arith.constant 0 : index
    %c0_7 = arith.constant 0 : index
    %8 = vector.load %arg7[%c0_6, %c0_7] : memref<128x128xf32, #tpu.memory_space<vmem>>, vector<128x128xf32>
    tpu.vector_store %arg7[%c0_6, %c0_7], %7 {strides = array<i32>} : memref<128x128xf32, #tpu.memory_space<vmem>>, vector<128x128xf32>,
    %c0_i32_8 = arith.constant 0 : i32
    %9 = arith.cmpi eq, %arg2, %c0_i32_8 : i32
    %10 = arith.extui %9 : i1 to i32
    %c0_i32_9 = arith.constant 0 : i32
    %11 = arith.cmpi ne, %10, %c0_i32_9 : i32
    scf.if %11 {
      %c0_10 = arith.constant 0 : index
      %c0_11 = arith.constant 0 : index
      %12 = vector.load %arg7[%c0_10, %c0_11] : memref<128x128xf32, #tpu.memory_space<vmem>>, vector<128x128xf32>
      %c0_12 = arith.constant 0 : index
      %c0_13 = arith.constant 0 : index
      %13 = vector.load %arg5[%c0_12, %c0_13] : memref<1x128xf32, #tpu.memory_space<vmem>>, vector<1x128xf32>
      %14 = vector.broadcast %13 : vector<1x128xf32> to vector<128x128xf32>
      %15 = arith.addf %12, %14 : vector<128x128xf32>
      %cst_14 = arith.constant 0.000000e+00 : f32
      %16 = vector.broadcast %cst_14 : f32 to vector<128x128xf32>
      %17 = arith.maximumf %15, %16 : vector<128x128xf32>
      %18 = arith.truncf %17 : vector<128x128xf32> to vector<128x128xbf16>
      %c0_15 = arith.constant 0 : index
      %c0_16 = arith.constant 0 : index
      %19 = vector.load %arg6[%c0_15, %c0_16] : memref<128x128xbf16, #tpu.memory_space<vmem>>, vector<128x128xbf16>
      tpu.vector_store %arg6[%c0_15, %c0_16], %18 {strides = array<i32>} : memref<128x128xbf16, #tpu.memory_space<vmem>>, vector<128x128xbf16>,
    } else {
    }
    return
  }
  func.func @transform_0(%arg0: i32, %arg1: i32, %arg2: i32) -> (i32, i32) {
    %c0_i32 = arith.constant 0 : i32
    return %arg0, %arg2 : i32, i32
  }
  func.func @transform_1(%arg0: i32, %arg1: i32, %arg2: i32) -> (i32, i32) {
    %c0_i32 = arith.constant 0 : i32
    return %arg2, %arg1 : i32, i32
  }
  func.func @transform_2(%arg0: i32, %arg1: i32, %arg2: i32) -> (i32, i32) {
    %c0_i32 = arith.constant 0 : i32
    %c0_i32_0 = arith.constant 0 : i32
    return %c0_i32, %arg1 : i32, i32
  }
  func.func @transform_3(%arg0: i32, %arg1: i32, %arg2: i32) -> (i32, i32) {
    %c0_i32 = arith.constant 0 : i32
    return %arg0, %arg1 : i32, i32
  }
}

module attributes {stable_mosaic.version = 11 : i64} {
  func.func @_gemm_bias_act_kernel(%arg0: i32, %arg1: i32, %arg2: i32, %arg3: memref<32x512xbf16, #tpu.memory_space<vmem>>, %arg4: memref<512x128xbf16, #tpu.memory_space<vmem>>, %arg5: memref<1x128xf32, #tpu.memory_space<vmem>>, %arg6: memref<32x128xbf16, #tpu.memory_space<vmem>>, %arg7: memref<32x128xf32, #tpu.memory_space<vmem>>) attributes {dimension_semantics = [#tpu.dimension_semantics<parallel>, #tpu.dimension_semantics<parallel>, #tpu.dimension_semantics<arbitrary>], iteration_bounds = array<i64: 1, 1, 2>, scalar_prefetch = 0 : i64, scratch_operands = 1 : i64, tpu.core_type = #tpu.core_type<tc>, window_params = [{transform_indices = @transform_0, window_bounds = array<i64: 32, 512>}, {transform_indices = @transform_1, window_bounds = array<i64: 512, 128>}, {transform_indices = @transform_2, window_bounds = array<i64: 1, 128>}, {transform_indices = @transform_3, window_bounds = array<i64: 32, 128>}]} {
    %c0_i32 = arith.constant 0 : i32
    %0 = arith.cmpi eq, %arg2, %c0_i32 : i32
    %1 = arith.extui %0 : i1 to i32
    %c0_i32_0 = arith.constant 0 : i32
    %2 = arith.cmpi ne, %1, %c0_i32_0 : i32
    scf.if %2 {
      %cst_9 = arith.constant 0.000000e+00 : f32
      %12 = vector.broadcast %cst_9 : f32 to vector<32x128xf32>
      %c0_10 = arith.constant 0 : index
      %c0_11 = arith.constant 0 : index
      %13 = vector.load %arg7[%c0_10, %c0_11] : memref<32x128xf32, #tpu.memory_space<vmem>>, vector<32x128xf32>
      tpu.vector_store %arg7[%c0_10, %c0_11], %12 {strides = array<i32>} : memref<32x128xf32, #tpu.memory_space<vmem>>, vector<32x128xf32>,
    } else {
    }
    %c0 = arith.constant 0 : index
    %c0_1 = arith.constant 0 : index
    %3 = vector.load %arg7[%c0, %c0_1] : memref<32x128xf32, #tpu.memory_space<vmem>>, vector<32x128xf32>
    %c0_2 = arith.constant 0 : index
    %c0_3 = arith.constant 0 : index
    %4 = vector.load %arg3[%c0_2, %c0_3] : memref<32x512xbf16, #tpu.memory_space<vmem>>, vector<32x512xbf16>
    %c0_4 = arith.constant 0 : index
    %c0_5 = arith.constant 0 : index
    %5 = vector.load %arg4[%c0_4, %c0_5] : memref<512x128xbf16, #tpu.memory_space<vmem>>, vector<512x128xbf16>
    %cst = arith.constant dense<0.000000e+00> : vector<32x128xf32>
    %6 = tpu.matmul %4, %5, %cst {dimension_numbers = #tpu.dot_dimension_numbers<[1], [0], [0], [1], [0, 0, 1, 1], [], []>} : vector<32x512xbf16>, vector<512x128xbf16>, vector<32x128xf32> -> vector<32x128xf32>
    %7 = arith.addf %3, %6 : vector<32x128xf32>
    %c0_6 = arith.constant 0 : index
    %c0_7 = arith.constant 0 : index
    %8 = vector.load %arg7[%c0_6, %c0_7] : memref<32x128xf32, #tpu.memory_space<vmem>>, vector<32x128xf32>
    tpu.vector_store %arg7[%c0_6, %c0_7], %7 {strides = array<i32>} : memref<32x128xf32, #tpu.memory_space<vmem>>, vector<32x128xf32>,
    %c1_i32 = arith.constant 1 : i32
    %9 = arith.cmpi eq, %arg2, %c1_i32 : i32
    %10 = arith.extui %9 : i1 to i32
    %c0_i32_8 = arith.constant 0 : i32
    %11 = arith.cmpi ne, %10, %c0_i32_8 : i32
    scf.if %11 {
      %c0_9 = arith.constant 0 : index
      %c0_10 = arith.constant 0 : index
      %12 = vector.load %arg7[%c0_9, %c0_10] : memref<32x128xf32, #tpu.memory_space<vmem>>, vector<32x128xf32>
      %c0_11 = arith.constant 0 : index
      %c0_12 = arith.constant 0 : index
      %13 = vector.load %arg5[%c0_11, %c0_12] : memref<1x128xf32, #tpu.memory_space<vmem>>, vector<1x128xf32>
      %14 = vector.broadcast %13 : vector<1x128xf32> to vector<32x128xf32>
      %15 = arith.addf %12, %14 : vector<32x128xf32>
      %cst_13 = arith.constant 0.000000e+00 : f32
      %16 = vector.broadcast %cst_13 : f32 to vector<32x128xf32>
      %17 = arith.maximumf %15, %16 : vector<32x128xf32>
      %18 = arith.truncf %17 : vector<32x128xf32> to vector<32x128xbf16>
      %c0_14 = arith.constant 0 : index
      %c0_15 = arith.constant 0 : index
      %19 = vector.load %arg6[%c0_14, %c0_15] : memref<32x128xbf16, #tpu.memory_space<vmem>>, vector<32x128xbf16>
      tpu.vector_store %arg6[%c0_14, %c0_15], %18 {strides = array<i32>} : memref<32x128xbf16, #tpu.memory_space<vmem>>, vector<32x128xbf16>,
    } else {
    }
    return
  }
  func.func @transform_0(%arg0: i32, %arg1: i32, %arg2: i32) -> (i32, i32) {
    %c0_i32 = arith.constant 0 : i32
    return %arg0, %arg2 : i32, i32
  }
  func.func @transform_1(%arg0: i32, %arg1: i32, %arg2: i32) -> (i32, i32) {
    %c0_i32 = arith.constant 0 : i32
    return %arg2, %arg1 : i32, i32
  }
  func.func @transform_2(%arg0: i32, %arg1: i32, %arg2: i32) -> (i32, i32) {
    %c0_i32 = arith.constant 0 : i32
    %c0_i32_0 = arith.constant 0 : i32
    return %c0_i32, %arg1 : i32, i32
  }
  func.func @transform_3(%arg0: i32, %arg1: i32, %arg2: i32) -> (i32, i32) {
    %c0_i32 = arith.constant 0 : i32
    return %arg0, %arg1 : i32, i32
  }
}

module attributes {stable_mosaic.version = 11 : i64} {
  func.func @_gemm_bias_act_kernel(%arg0: i32, %arg1: i32, %arg2: i32, %arg3: memref<8x512xbf16, #tpu.memory_space<vmem>>, %arg4: memref<512x256xbf16, #tpu.memory_space<vmem>>, %arg5: memref<1x256xf32, #tpu.memory_space<vmem>>, %arg6: memref<8x256xbf16, #tpu.memory_space<vmem>>, %arg7: memref<8x256xf32, #tpu.memory_space<vmem>>) attributes {dimension_semantics = [#tpu.dimension_semantics<parallel>, #tpu.dimension_semantics<parallel>, #tpu.dimension_semantics<arbitrary>], iteration_bounds = array<i64: 1, 1, 4>, scalar_prefetch = 0 : i64, scratch_operands = 1 : i64, tpu.core_type = #tpu.core_type<tc>, window_params = [{transform_indices = @transform_0, window_bounds = array<i64: 8, 512>}, {transform_indices = @transform_1, window_bounds = array<i64: 512, 256>}, {transform_indices = @transform_2, window_bounds = array<i64: 1, 256>}, {transform_indices = @transform_3, window_bounds = array<i64: 8, 256>}]} {
    %c0_i32 = arith.constant 0 : i32
    %0 = arith.cmpi eq, %arg2, %c0_i32 : i32
    %1 = arith.extui %0 : i1 to i32
    %c0_i32_0 = arith.constant 0 : i32
    %2 = arith.cmpi ne, %1, %c0_i32_0 : i32
    scf.if %2 {
      %cst_9 = arith.constant 0.000000e+00 : f32
      %12 = vector.broadcast %cst_9 : f32 to vector<8x256xf32>
      %c0_10 = arith.constant 0 : index
      %c0_11 = arith.constant 0 : index
      %13 = vector.load %arg7[%c0_10, %c0_11] : memref<8x256xf32, #tpu.memory_space<vmem>>, vector<8x256xf32>
      tpu.vector_store %arg7[%c0_10, %c0_11], %12 {strides = array<i32>} : memref<8x256xf32, #tpu.memory_space<vmem>>, vector<8x256xf32>,
    } else {
    }
    %c0 = arith.constant 0 : index
    %c0_1 = arith.constant 0 : index
    %3 = vector.load %arg7[%c0, %c0_1] : memref<8x256xf32, #tpu.memory_space<vmem>>, vector<8x256xf32>
    %c0_2 = arith.constant 0 : index
    %c0_3 = arith.constant 0 : index
    %4 = vector.load %arg3[%c0_2, %c0_3] : memref<8x512xbf16, #tpu.memory_space<vmem>>, vector<8x512xbf16>
    %c0_4 = arith.constant 0 : index
    %c0_5 = arith.constant 0 : index
    %5 = vector.load %arg4[%c0_4, %c0_5] : memref<512x256xbf16, #tpu.memory_space<vmem>>, vector<512x256xbf16>
    %cst = arith.constant dense<0.000000e+00> : vector<8x256xf32>
    %6 = tpu.matmul %4, %5, %cst {dimension_numbers = #tpu.dot_dimension_numbers<[1], [0], [0], [1], [0, 0, 1, 1], [], []>} : vector<8x512xbf16>, vector<512x256xbf16>, vector<8x256xf32> -> vector<8x256xf32>
    %7 = arith.addf %3, %6 : vector<8x256xf32>
    %c0_6 = arith.constant 0 : index
    %c0_7 = arith.constant 0 : index
    %8 = vector.load %arg7[%c0_6, %c0_7] : memref<8x256xf32, #tpu.memory_space<vmem>>, vector<8x256xf32>
    tpu.vector_store %arg7[%c0_6, %c0_7], %7 {strides = array<i32>} : memref<8x256xf32, #tpu.memory_space<vmem>>, vector<8x256xf32>,
    %c3_i32 = arith.constant 3 : i32
    %9 = arith.cmpi eq, %arg2, %c3_i32 : i32
    %10 = arith.extui %9 : i1 to i32
    %c0_i32_8 = arith.constant 0 : i32
    %11 = arith.cmpi ne, %10, %c0_i32_8 : i32
    scf.if %11 {
      %c0_9 = arith.constant 0 : index
      %c0_10 = arith.constant 0 : index
      %12 = vector.load %arg7[%c0_9, %c0_10] : memref<8x256xf32, #tpu.memory_space<vmem>>, vector<8x256xf32>
      %c0_11 = arith.constant 0 : index
      %c0_12 = arith.constant 0 : index
      %13 = vector.load %arg5[%c0_11, %c0_12] : memref<1x256xf32, #tpu.memory_space<vmem>>, vector<1x256xf32>
      %14 = vector.broadcast %13 : vector<1x256xf32> to vector<8x256xf32>
      %15 = arith.addf %12, %14 : vector<8x256xf32>
      %cst_13 = arith.constant 0.000000e+00 : f32
      %16 = vector.broadcast %cst_13 : f32 to vector<8x256xf32>
      %17 = arith.maximumf %15, %16 : vector<8x256xf32>
      %18 = arith.truncf %17 : vector<8x256xf32> to vector<8x256xbf16>
      %c0_14 = arith.constant 0 : index
      %c0_15 = arith.constant 0 : index
      %19 = vector.load %arg6[%c0_14, %c0_15] : memref<8x256xbf16, #tpu.memory_space<vmem>>, vector<8x256xbf16>
      tpu.vector_store %arg6[%c0_14, %c0_15], %18 {strides = array<i32>} : memref<8x256xbf16, #tpu.memory_space<vmem>>, vector<8x256xbf16>,
    } else {
    }
    return
  }
  func.func @transform_0(%arg0: i32, %arg1: i32, %arg2: i32) -> (i32, i32) {
    %c0_i32 = arith.constant 0 : i32
    return %arg0, %arg2 : i32, i32
  }
  func.func @transform_1(%arg0: i32, %arg1: i32, %arg2: i32) -> (i32, i32) {
    %c0_i32 = arith.constant 0 : i32
    return %arg2, %arg1 : i32, i32
  }
  func.func @transform_2(%arg0: i32, %arg1: i32, %arg2: i32) -> (i32, i32) {
    %c0_i32 = arith.constant 0 : i32
    %c0_i32_0 = arith.constant 0 : i32
    return %c0_i32, %arg1 : i32, i32
  }
  func.func @transform_3(%arg0: i32, %arg1: i32, %arg2: i32) -> (i32, i32) {
    %c0_i32 = arith.constant 0 : i32
    return %arg0, %arg1 : i32, i32
  }
}

module attributes {stable_mosaic.version = 11 : i64} {
  func.func @_gemm_bias_act_kernel(%arg0: i32, %arg1: i32, %arg2: i32, %arg3: memref<8x512xbf16, #tpu.memory_space<vmem>>, %arg4: memref<512x128xbf16, #tpu.memory_space<vmem>>, %arg5: memref<1x128xf32, #tpu.memory_space<vmem>>, %arg6: memref<8x128xbf16, #tpu.memory_space<vmem>>, %arg7: memref<8x128xf32, #tpu.memory_space<vmem>>) attributes {dimension_semantics = [#tpu.dimension_semantics<parallel>, #tpu.dimension_semantics<parallel>, #tpu.dimension_semantics<arbitrary>], iteration_bounds = array<i64: 1, 1, 2>, scalar_prefetch = 0 : i64, scratch_operands = 1 : i64, tpu.core_type = #tpu.core_type<tc>, window_params = [{transform_indices = @transform_0, window_bounds = array<i64: 8, 512>}, {transform_indices = @transform_1, window_bounds = array<i64: 512, 128>}, {transform_indices = @transform_2, window_bounds = array<i64: 1, 128>}, {transform_indices = @transform_3, window_bounds = array<i64: 8, 128>}]} {
    %c0_i32 = arith.constant 0 : i32
    %0 = arith.cmpi eq, %arg2, %c0_i32 : i32
    %1 = arith.extui %0 : i1 to i32
    %c0_i32_0 = arith.constant 0 : i32
    %2 = arith.cmpi ne, %1, %c0_i32_0 : i32
    scf.if %2 {
      %cst_9 = arith.constant 0.000000e+00 : f32
      %12 = vector.broadcast %cst_9 : f32 to vector<8x128xf32>
      %c0_10 = arith.constant 0 : index
      %c0_11 = arith.constant 0 : index
      %13 = vector.load %arg7[%c0_10, %c0_11] : memref<8x128xf32, #tpu.memory_space<vmem>>, vector<8x128xf32>
      tpu.vector_store %arg7[%c0_10, %c0_11], %12 {strides = array<i32>} : memref<8x128xf32, #tpu.memory_space<vmem>>, vector<8x128xf32>,
    } else {
    }
    %c0 = arith.constant 0 : index
    %c0_1 = arith.constant 0 : index
    %3 = vector.load %arg7[%c0, %c0_1] : memref<8x128xf32, #tpu.memory_space<vmem>>, vector<8x128xf32>
    %c0_2 = arith.constant 0 : index
    %c0_3 = arith.constant 0 : index
    %4 = vector.load %arg3[%c0_2, %c0_3] : memref<8x512xbf16, #tpu.memory_space<vmem>>, vector<8x512xbf16>
    %c0_4 = arith.constant 0 : index
    %c0_5 = arith.constant 0 : index
    %5 = vector.load %arg4[%c0_4, %c0_5] : memref<512x128xbf16, #tpu.memory_space<vmem>>, vector<512x128xbf16>
    %cst = arith.constant dense<0.000000e+00> : vector<8x128xf32>
    %6 = tpu.matmul %4, %5, %cst {dimension_numbers = #tpu.dot_dimension_numbers<[1], [0], [0], [1], [0, 0, 1, 1], [], []>} : vector<8x512xbf16>, vector<512x128xbf16>, vector<8x128xf32> -> vector<8x128xf32>
    %7 = arith.addf %3, %6 : vector<8x128xf32>
    %c0_6 = arith.constant 0 : index
    %c0_7 = arith.constant 0 : index
    %8 = vector.load %arg7[%c0_6, %c0_7] : memref<8x128xf32, #tpu.memory_space<vmem>>, vector<8x128xf32>
    tpu.vector_store %arg7[%c0_6, %c0_7], %7 {strides = array<i32>} : memref<8x128xf32, #tpu.memory_space<vmem>>, vector<8x128xf32>,
    %c1_i32 = arith.constant 1 : i32
    %9 = arith.cmpi eq, %arg2, %c1_i32 : i32
    %10 = arith.extui %9 : i1 to i32
    %c0_i32_8 = arith.constant 0 : i32
    %11 = arith.cmpi ne, %10, %c0_i32_8 : i32
    scf.if %11 {
      %c0_9 = arith.constant 0 : index
      %c0_10 = arith.constant 0 : index
      %12 = vector.load %arg7[%c0_9, %c0_10] : memref<8x128xf32, #tpu.memory_space<vmem>>, vector<8x128xf32>
      %c0_11 = arith.constant 0 : index
      %c0_12 = arith.constant 0 : index
      %13 = vector.load %arg5[%c0_11, %c0_12] : memref<1x128xf32, #tpu.memory_space<vmem>>, vector<1x128xf32>
      %14 = vector.broadcast %13 : vector<1x128xf32> to vector<8x128xf32>
      %15 = arith.addf %12, %14 : vector<8x128xf32>
      %cst_13 = arith.constant 0.000000e+00 : f32
      %16 = vector.broadcast %cst_13 : f32 to vector<8x128xf32>
      %17 = arith.maximumf %15, %16 : vector<8x128xf32>
      %18 = arith.truncf %17 : vector<8x128xf32> to vector<8x128xbf16>
      %c0_14 = arith.constant 0 : index
      %c0_15 = arith.constant 0 : index
      %19 = vector.load %arg6[%c0_14, %c0_15] : memref<8x128xbf16, #tpu.memory_space<vmem>>, vector<8x128xbf16>
      tpu.vector_store %arg6[%c0_14, %c0_15], %18 {strides = array<i32>} : memref<8x128xbf16, #tpu.memory_space<vmem>>, vector<8x128xbf16>,
    } else {
    }
    return
  }
  func.func @transform_0(%arg0: i32, %arg1: i32, %arg2: i32) -> (i32, i32) {
    %c0_i32 = arith.constant 0 : i32
    return %arg0, %arg2 : i32, i32
  }
  func.func @transform_1(%arg0: i32, %arg1: i32, %arg2: i32) -> (i32, i32) {
    %c0_i32 = arith.constant 0 : i32
    return %arg2, %arg1 : i32, i32
  }
  func.func @transform_2(%arg0: i32, %arg1: i32, %arg2: i32) -> (i32, i32) {
    %c0_i32 = arith.constant 0 : i32
    %c0_i32_0 = arith.constant 0 : i32
    return %c0_i32, %arg1 : i32, i32
  }
  func.func @transform_3(%arg0: i32, %arg1: i32, %arg2: i32) -> (i32, i32) {
    %c0_i32 = arith.constant 0 : i32
    return %arg0, %arg1 : i32, i32
  }
}

module attributes {stable_mosaic.version = 11 : i64} {
  func.func @_gemm_bias_act_kernel(%arg0: i32, %arg1: i32, %arg2: i32, %arg3: memref<32x512xbf16, #tpu.memory_space<vmem>>, %arg4: memref<512x128xbf16, #tpu.memory_space<vmem>>, %arg5: memref<1x128xf32, #tpu.memory_space<vmem>>, %arg6: memref<32x128xbf16, #tpu.memory_space<vmem>>, %arg7: memref<32x128xf32, #tpu.memory_space<vmem>>) attributes {dimension_semantics = [#tpu.dimension_semantics<parallel>, #tpu.dimension_semantics<parallel>, #tpu.dimension_semantics<arbitrary>], iteration_bounds = array<i64: 1, 1, 1>, scalar_prefetch = 0 : i64, scratch_operands = 1 : i64, tpu.core_type = #tpu.core_type<tc>, window_params = [{transform_indices = @transform_0, window_bounds = array<i64: 32, 512>}, {transform_indices = @transform_1, window_bounds = array<i64: 512, 128>}, {transform_indices = @transform_2, window_bounds = array<i64: 1, 128>}, {transform_indices = @transform_3, window_bounds = array<i64: 32, 128>}]} {
    %c0_i32 = arith.constant 0 : i32
    %0 = arith.cmpi eq, %arg2, %c0_i32 : i32
    %1 = arith.extui %0 : i1 to i32
    %c0_i32_0 = arith.constant 0 : i32
    %2 = arith.cmpi ne, %1, %c0_i32_0 : i32
    scf.if %2 {
      %cst_10 = arith.constant 0.000000e+00 : f32
      %12 = vector.broadcast %cst_10 : f32 to vector<32x128xf32>
      %c0_11 = arith.constant 0 : index
      %c0_12 = arith.constant 0 : index
      %13 = vector.load %arg7[%c0_11, %c0_12] : memref<32x128xf32, #tpu.memory_space<vmem>>, vector<32x128xf32>
      tpu.vector_store %arg7[%c0_11, %c0_12], %12 {strides = array<i32>} : memref<32x128xf32, #tpu.memory_space<vmem>>, vector<32x128xf32>,
    } else {
    }
    %c0 = arith.constant 0 : index
    %c0_1 = arith.constant 0 : index
    %3 = vector.load %arg7[%c0, %c0_1] : memref<32x128xf32, #tpu.memory_space<vmem>>, vector<32x128xf32>
    %c0_2 = arith.constant 0 : index
    %c0_3 = arith.constant 0 : index
    %4 = vector.load %arg3[%c0_2, %c0_3] : memref<32x512xbf16, #tpu.memory_space<vmem>>, vector<32x512xbf16>
    %c0_4 = arith.constant 0 : index
    %c0_5 = arith.constant 0 : index
    %5 = vector.load %arg4[%c0_4, %c0_5] : memref<512x128xbf16, #tpu.memory_space<vmem>>, vector<512x128xbf16>
    %cst = arith.constant dense<0.000000e+00> : vector<32x128xf32>
    %6 = tpu.matmul %4, %5, %cst {dimension_numbers = #tpu.dot_dimension_numbers<[1], [0], [0], [1], [0, 0, 1, 1], [], []>} : vector<32x512xbf16>, vector<512x128xbf16>, vector<32x128xf32> -> vector<32x128xf32>
    %7 = arith.addf %3, %6 : vector<32x128xf32>
    %c0_6 = arith.constant 0 : index
    %c0_7 = arith.constant 0 : index
    %8 = vector.load %arg7[%c0_6, %c0_7] : memref<32x128xf32, #tpu.memory_space<vmem>>, vector<32x128xf32>
    tpu.vector_store %arg7[%c0_6, %c0_7], %7 {strides = array<i32>} : memref<32x128xf32, #tpu.memory_space<vmem>>, vector<32x128xf32>,
    %c0_i32_8 = arith.constant 0 : i32
    %9 = arith.cmpi eq, %arg2, %c0_i32_8 : i32
    %10 = arith.extui %9 : i1 to i32
    %c0_i32_9 = arith.constant 0 : i32
    %11 = arith.cmpi ne, %10, %c0_i32_9 : i32
    scf.if %11 {
      %c0_10 = arith.constant 0 : index
      %c0_11 = arith.constant 0 : index
      %12 = vector.load %arg7[%c0_10, %c0_11] : memref<32x128xf32, #tpu.memory_space<vmem>>, vector<32x128xf32>
      %c0_12 = arith.constant 0 : index
      %c0_13 = arith.constant 0 : index
      %13 = vector.load %arg5[%c0_12, %c0_13] : memref<1x128xf32, #tpu.memory_space<vmem>>, vector<1x128xf32>
      %14 = vector.broadcast %13 : vector<1x128xf32> to vector<32x128xf32>
      %15 = arith.addf %12, %14 : vector<32x128xf32>
      %cst_14 = arith.constant 0.000000e+00 : f32
      %16 = vector.broadcast %cst_14 : f32 to vector<32x128xf32>
      %17 = arith.maximumf %15, %16 : vector<32x128xf32>
      %18 = arith.truncf %17 : vector<32x128xf32> to vector<32x128xbf16>
      %c0_15 = arith.constant 0 : index
      %c0_16 = arith.constant 0 : index
      %19 = vector.load %arg6[%c0_15, %c0_16] : memref<32x128xbf16, #tpu.memory_space<vmem>>, vector<32x128xbf16>
      tpu.vector_store %arg6[%c0_15, %c0_16], %18 {strides = array<i32>} : memref<32x128xbf16, #tpu.memory_space<vmem>>, vector<32x128xbf16>,
    } else {
    }
    return
  }
  func.func @transform_0(%arg0: i32, %arg1: i32, %arg2: i32) -> (i32, i32) {
    %c0_i32 = arith.constant 0 : i32
    return %arg0, %arg2 : i32, i32
  }
  func.func @transform_1(%arg0: i32, %arg1: i32, %arg2: i32) -> (i32, i32) {
    %c0_i32 = arith.constant 0 : i32
    return %arg2, %arg1 : i32, i32
  }
  func.func @transform_2(%arg0: i32, %arg1: i32, %arg2: i32) -> (i32, i32) {
    %c0_i32 = arith.constant 0 : i32
    %c0_i32_0 = arith.constant 0 : i32
    return %c0_i32, %arg1 : i32, i32
  }
  func.func @transform_3(%arg0: i32, %arg1: i32, %arg2: i32) -> (i32, i32) {
    %c0_i32 = arith.constant 0 : i32
    return %arg0, %arg1 : i32, i32
  }
}

module attributes {stable_mosaic.version = 11 : i64} {
  func.func @_gemm_bias_act_kernel(%arg0: i32, %arg1: i32, %arg2: i32, %arg3: memref<128x256xbf16, #tpu.memory_space<vmem>>, %arg4: memref<256x128xbf16, #tpu.memory_space<vmem>>, %arg5: memref<1x128xf32, #tpu.memory_space<vmem>>, %arg6: memref<128x128xf32, #tpu.memory_space<vmem>>, %arg7: memref<128x128xf32, #tpu.memory_space<vmem>>) attributes {dimension_semantics = [#tpu.dimension_semantics<parallel>, #tpu.dimension_semantics<parallel>, #tpu.dimension_semantics<arbitrary>], iteration_bounds = array<i64: 1, 1, 1>, scalar_prefetch = 0 : i64, scratch_operands = 1 : i64, tpu.core_type = #tpu.core_type<tc>, window_params = [{transform_indices = @transform_0, window_bounds = array<i64: 128, 256>}, {transform_indices = @transform_1, window_bounds = array<i64: 256, 128>}, {transform_indices = @transform_2, window_bounds = array<i64: 1, 128>}, {transform_indices = @transform_3, window_bounds = array<i64: 128, 128>}]} {
    %c0_i32 = arith.constant 0 : i32
    %0 = arith.cmpi eq, %arg2, %c0_i32 : i32
    %1 = arith.extui %0 : i1 to i32
    %c0_i32_0 = arith.constant 0 : i32
    %2 = arith.cmpi ne, %1, %c0_i32_0 : i32
    scf.if %2 {
      %cst_10 = arith.constant 0.000000e+00 : f32
      %12 = vector.broadcast %cst_10 : f32 to vector<128x128xf32>
      %c0_11 = arith.constant 0 : index
      %c0_12 = arith.constant 0 : index
      %13 = vector.load %arg7[%c0_11, %c0_12] : memref<128x128xf32, #tpu.memory_space<vmem>>, vector<128x128xf32>
      tpu.vector_store %arg7[%c0_11, %c0_12], %12 {strides = array<i32>} : memref<128x128xf32, #tpu.memory_space<vmem>>, vector<128x128xf32>,
    } else {
    }
    %c0 = arith.constant 0 : index
    %c0_1 = arith.constant 0 : index
    %3 = vector.load %arg7[%c0, %c0_1] : memref<128x128xf32, #tpu.memory_space<vmem>>, vector<128x128xf32>
    %c0_2 = arith.constant 0 : index
    %c0_3 = arith.constant 0 : index
    %4 = vector.load %arg3[%c0_2, %c0_3] : memref<128x256xbf16, #tpu.memory_space<vmem>>, vector<128x256xbf16>
    %c0_4 = arith.constant 0 : index
    %c0_5 = arith.constant 0 : index
    %5 = vector.load %arg4[%c0_4, %c0_5] : memref<256x128xbf16, #tpu.memory_space<vmem>>, vector<256x128xbf16>
    %cst = arith.constant dense<0.000000e+00> : vector<128x128xf32>
    %6 = tpu.matmul %4, %5, %cst {dimension_numbers = #tpu.dot_dimension_numbers<[1], [0], [0], [1], [0, 0, 1, 1], [], []>} : vector<128x256xbf16>, vector<256x128xbf16>, vector<128x128xf32> -> vector<128x128xf32>
    %7 = arith.addf %3, %6 : vector<128x128xf32>
    %c0_6 = arith.constant 0 : index
    %c0_7 = arith.constant 0 : index
    %8 = vector.load %arg7[%c0_6, %c0_7] : memref<128x128xf32, #tpu.memory_space<vmem>>, vector<128x128xf32>
    tpu.vector_store %arg7[%c0_6, %c0_7], %7 {strides = array<i32>} : memref<128x128xf32, #tpu.memory_space<vmem>>, vector<128x128xf32>,
    %c0_i32_8 = arith.constant 0 : i32
    %9 = arith.cmpi eq, %arg2, %c0_i32_8 : i32
    %10 = arith.extui %9 : i1 to i32
    %c0_i32_9 = arith.constant 0 : i32
    %11 = arith.cmpi ne, %10, %c0_i32_9 : i32
    scf.if %11 {
      %c0_10 = arith.constant 0 : index
      %c0_11 = arith.constant 0 : index
      %12 = vector.load %arg7[%c0_10, %c0_11] : memref<128x128xf32, #tpu.memory_space<vmem>>, vector<128x128xf32>
      %c0_12 = arith.constant 0 : index
      %c0_13 = arith.constant 0 : index
      %13 = vector.load %arg5[%c0_12, %c0_13] : memref<1x128xf32, #tpu.memory_space<vmem>>, vector<1x128xf32>
      %14 = vector.broadcast %13 : vector<1x128xf32> to vector<128x128xf32>
      %15 = arith.addf %12, %14 : vector<128x128xf32>
      %16 = arith.negf %15 : vector<128x128xf32>
      %17 = math.exp %16 : vector<128x128xf32>
      %cst_14 = arith.constant 1.000000e+00 : f32
      %18 = vector.broadcast %cst_14 : f32 to vector<128x128xf32>
      %19 = arith.addf %18, %17 : vector<128x128xf32>
      %20 = arith.divf %18, %19 : vector<128x128xf32>
      %c0_15 = arith.constant 0 : index
      %c0_16 = arith.constant 0 : index
      %21 = vector.load %arg6[%c0_15, %c0_16] : memref<128x128xf32, #tpu.memory_space<vmem>>, vector<128x128xf32>
      tpu.vector_store %arg6[%c0_15, %c0_16], %20 {strides = array<i32>} : memref<128x128xf32, #tpu.memory_space<vmem>>, vector<128x128xf32>,
    } else {
    }
    return
  }
  func.func @transform_0(%arg0: i32, %arg1: i32, %arg2: i32) -> (i32, i32) {
    %c0_i32 = arith.constant 0 : i32
    return %arg0, %arg2 : i32, i32
  }
  func.func @transform_1(%arg0: i32, %arg1: i32, %arg2: i32) -> (i32, i32) {
    %c0_i32 = arith.constant 0 : i32
    return %arg2, %arg1 : i32, i32
  }
  func.func @transform_2(%arg0: i32, %arg1: i32, %arg2: i32) -> (i32, i32) {
    %c0_i32 = arith.constant 0 : i32
    %c0_i32_0 = arith.constant 0 : i32
    return %c0_i32, %arg1 : i32, i32
  }
  func.func @transform_3(%arg0: i32, %arg1: i32, %arg2: i32) -> (i32, i32) {
    %c0_i32 = arith.constant 0 : i32
    return %arg0, %arg1 : i32, i32
  }
}

</mosaic_0001>

<llo_original>
// kernel: encoder_decoder_forward.15
$region0: #{encoder_decoder_forward.15}
  #allocation0 [shape = 'u32[]', space=smem, size = 0x4, offset = 0x4, fixed_abs, tag = 'smem constant byte address 0x4 - core index']
  #allocation1 [shape = 'u32[144,128]{1,0:T(1,128)}', space=vmem, size = 0x12000, scoped, tag = 'internal scratch']
  #allocation2 [shape = 'f32[128,128]{1,0:T(8,128)}', space=vmem, size = 0x10000, scoped, tag = 'scratch operand']
  %s0 = inlined_call_operand.vmem [shape: bf16[128,128], index: 0, kind: input, shape index: {}]
  %s1 = inlined_call_operand.vmem [shape: bf16[128,128], index: 1, kind: input, shape index: {}]
  %s2 = inlined_call_operand.vmem [shape: f32[1,128], index: 2, kind: input, shape index: {}]
  %s3 = inlined_call_operand.vmem [shape: bf16[128,128], index: 3, kind: output, shape index: {}]
  %s4 = sld [smem:[#allocation0]]
  $region30: #{encoder_decoder_forward.15} parent=0
    _
  %s6 = ssub.s32 1, %s4
  %s7 = scalar_select 0, %s6, %s4
  // Predicated region
  $region2: #{encoder_decoder_forward.15} parent=0 // pred_check
    _
  $region3: #{encoder_decoder_forward.15} parent=0 // pred_check_branch
    %9 = sbr.rel (0) target = $region5
  $region4: #{encoder_decoder_forward.15} parent=0 // pred_region
    _
  $region5: #{encoder_decoder_forward.15} parent=0 // pred_fallthru
    _
  // Predicated region
  $region6: #{encoder_decoder_forward.15} parent=0 // pred_check
    _
  $region7: #{encoder_decoder_forward.15} parent=0 // pred_check_branch
    %11 = sbr.rel (0) target = $region9
  $region8: #{encoder_decoder_forward.15} parent=0 // pred_region
    _
  $region9: #{encoder_decoder_forward.15} parent=0 // pred_fallthru
    _
  // Predicated region
  $region10: #{encoder_decoder_forward.15} parent=0 // pred_check
    _
  $region11: #{encoder_decoder_forward.15} parent=0 // pred_check_branch
    %13 = sbr.rel (0) target = $region13
  $region12: #{encoder_decoder_forward.15} parent=0 // pred_region
    _
  $region13: #{encoder_decoder_forward.15} parent=0 // pred_fallthru
    _
  %p15 = scmp.eq.s32.totalorder 0, 0
  // Predicated region
  $region14: #{encoder_decoder_forward.15} parent=0 // pred_check
    %p16 = pneg %p15
  $region15: #{encoder_decoder_forward.15} parent=0 // pred_check_branch
    %18 = sbr.rel (%p16) target = $region17
  $region16: #{encoder_decoder_forward.15} parent=0 // pred_region
    %19 = vst [vmem:[#allocation2] sm:$0xff] 0.0
    %20 = vst [vmem:[#allocation2 + $0x8] sm:$0xff] 0.0
    %21 = vst [vmem:[#allocation2 + $0x10] sm:$0xff] 0.0
    %22 = vst [vmem:[#allocation2 + $0x18] sm:$0xff] 0.0
    %23 = vst [vmem:[#allocation2 + $0x20] sm:$0xff] 0.0
    %24 = vst [vmem:[#allocation2 + $0x28] sm:$0xff] 0.0
    %25 = vst [vmem:[#allocation2 + $0x30] sm:$0xff] 0.0
    %26 = vst [vmem:[#allocation2 + $0x38] sm:$0xff] 0.0
    %27 = vst [vmem:[#allocation2 + $0x40] sm:$0xff] 0.0
    %28 = vst [vmem:[#allocation2 + $0x48] sm:$0xff] 0.0
    %29 = vst [vmem:[#allocation2 + $0x50] sm:$0xff] 0.0
    %30 = vst [vmem:[#allocation2 + $0x58] sm:$0xff] 0.0
    %31 = vst [vmem:[#allocation2 + $0x60] sm:$0xff] 0.0
    %32 = vst [vmem:[#allocation2 + $0x68] sm:$0xff] 0.0
    %33 = vst [vmem:[#allocation2 + $0x70] sm:$0xff] 0.0
    %34 = vst [vmem:[#allocation2 + $0x78] sm:$0xff] 0.0
  $region17: #{encoder_decoder_forward.15} parent=0 // pred_fallthru
    _
  %v35 = vld [vmem:[#allocation2] sm:$0xff]
  %v36 = vld [vmem:[#allocation2 + $0x8] sm:$0xff]
  %v37 = vld [vmem:[#allocation2 + $0x10] sm:$0xff]
  %v38 = vld [vmem:[#allocation2 + $0x18] sm:$0xff]
  %v39 = vld [vmem:[#allocation2 + $0x20] sm:$0xff]
  %v40 = vld [vmem:[#allocation2 + $0x28] sm:$0xff]
  %v41 = vld [vmem:[#allocation2 + $0x30] sm:$0xff]
  %v42 = vld [vmem:[#allocation2 + $0x38] sm:$0xff]
  %v43 = vld [vmem:[#allocation2 + $0x40] sm:$0xff]
  %v44 = vld [vmem:[#allocation2 + $0x48] sm:$0xff]
  %v45 = vld [vmem:[#allocation2 + $0x50] sm:$0xff]
  %v46 = vld [vmem:[#allocation2 + $0x58] sm:$0xff]
  %v47 = vld [vmem:[#allocation2 + $0x60] sm:$0xff]
  %v48 = vld [vmem:[#allocation2 + $0x68] sm:$0xff]
  %v49 = vld [vmem:[#allocation2 + $0x70] sm:$0xff]
  %v50 = vld [vmem:[#allocation2 + $0x78] sm:$0xff]
  %v51 = vld [vmem:[%s0] sm:$0xf]
  %v52 = vld [vmem:[%s0 + $0x4] sm:$0xf]
  %v53 = vld [vmem:[%s0 + $0x8] sm:$0xf]
  %v54 = vld [vmem:[%s0 + $0xc] sm:$0xf]
  %v55 = vld [vmem:[%s0 + $0x10] sm:$0xf]
  %v56 = vld [vmem:[%s0 + $0x14] sm:$0xf]
  %v57 = vld [vmem:[%s0 + $0x18] sm:$0xf]
  %v58 = vld [vmem:[%s0 + $0x1c] sm:$0xf]
  %v59 = vld [vmem:[%s0 + $0x20] sm:$0xf]
  %v60 = vld [vmem:[%s0 + $0x24] sm:$0xf]
  %v61 = vld [vmem:[%s0 + $0x28] sm:$0xf]
  %v62 = vld [vmem:[%s0 + $0x2c] sm:$0xf]
  %v63 = vld [vmem:[%s0 + $0x30] sm:$0xf]
  %v64 = vld [vmem:[%s0 + $0x34] sm:$0xf]
  %v65 = vld [vmem:[%s0 + $0x38] sm:$0xf]
  %v66 = vld [vmem:[%s0 + $0x3c] sm:$0xf]
  %v67 = vld [vmem:[%s1] sm:$0xf]
  %v68 = vld [vmem:[%s1 + $0x4] sm:$0xf]
  %v69 = vld [vmem:[%s1 + $0x8] sm:$0xf]
  %v70 = vld [vmem:[%s1 + $0xc] sm:$0xf]
  %v71 = vld [vmem:[%s1 + $0x10] sm:$0xf]
  %v72 = vld [vmem:[%s1 + $0x14] sm:$0xf]
  %v73 = vld [vmem:[%s1 + $0x18] sm:$0xf]
  %v74 = vld [vmem:[%s1 + $0x1c] sm:$0xf]
  %v75 = vld [vmem:[%s1 + $0x20] sm:$0xf]
  %v76 = vld [vmem:[%s1 + $0x24] sm:$0xf]
  %v77 = vld [vmem:[%s1 + $0x28] sm:$0xf]
  %v78 = vld [vmem:[%s1 + $0x2c] sm:$0xf]
  %v79 = vld [vmem:[%s1 + $0x30] sm:$0xf]
  %v80 = vld [vmem:[%s1 + $0x34] sm:$0xf]
  %v81 = vld [vmem:[%s1 + $0x38] sm:$0xf]
  %v82 = vld [vmem:[%s1 + $0x3c] sm:$0xf]
  %v99 = vunpack.c.l.b16 %v51
  %v100 = vunpack.c.l.b16 %v52
  %v101 = vunpack.c.l.b16 %v53
  %v102 = vunpack.c.l.b16 %v54
  %v103 = vunpack.c.l.b16 %v55
  %v104 = vunpack.c.l.b16 %v56
  %v105 = vunpack.c.l.b16 %v57
  %v106 = vunpack.c.l.b16 %v58
  %v107 = vunpack.c.l.b16 %v59
  %v108 = vunpack.c.l.b16 %v60
  %v109 = vunpack.c.l.b16 %v61
  %v110 = vunpack.c.l.b16 %v62
  %v111 = vunpack.c.l.b16 %v63
  %v112 = vunpack.c.l.b16 %v64
  %v113 = vunpack.c.l.b16 %v65
  %v114 = vunpack.c.l.b16 %v66
  %v115 = vpack.c.b16 %v100, %v99
  %v116 = vpack.c.b16 %v102, %v101
  %v117 = vpack.c.b16 %v104, %v103
  %v118 = vpack.c.b16 %v106, %v105
  %v119 = vpack.c.b16 %v108, %v107
  %v120 = vpack.c.b16 %v110, %v109
  %v121 = vpack.c.b16 %v112, %v111
  %v122 = vpack.c.b16 %v114, %v113
  %v147 = vunpack.c.l.b16 %v67
  %v148 = vunpack.c.l.b16 %v68
  %v149 = vunpack.c.l.b16 %v69
  %v150 = vunpack.c.l.b16 %v70
  %v151 = vunpack.c.l.b16 %v71
  %v152 = vunpack.c.l.b16 %v72
  %v153 = vunpack.c.l.b16 %v73
  %v154 = vunpack.c.l.b16 %v74
  %v155 = vunpack.c.l.b16 %v75
  %v156 = vunpack.c.l.b16 %v76
  %v157 = vunpack.c.l.b16 %v77
  %v158 = vunpack.c.l.b16 %v78
  %v159 = vunpack.c.l.b16 %v79
  %v160 = vunpack.c.l.b16 %v80
  %v161 = vunpack.c.l.b16 %v81
  %v162 = vunpack.c.l.b16 %v82
  %v163 = vpack.c.b16 %v148, %v147
  %v164 = vpack.c.b16 %v150, %v149
  %v165 = vpack.c.b16 %v152, %v151
  %v166 = vpack.c.b16 %v154, %v153
  %v167 = vpack.c.b16 %v156, %v155
  %v168 = vpack.c.b16 %v158, %v157
  %v169 = vpack.c.b16 %v160, %v159
  %v170 = vpack.c.b16 %v162, %v161
  %179 = vmatprep.subr.bf16.mxu0 0
  %180 = vmatpush1.bf16.msra.mxu0 %v163
  %181 = vmatprep.subr.bf16.mxu0 0
  %182 = vmatpush1.bf16.msra.mxu0 %v164
  %183 = vmatprep.subr.bf16.mxu0 0
  %184 = vmatpush1.bf16.msra.mxu0 %v165
  %185 = vmatprep.subr.bf16.mxu0 0
  %186 = vmatpush1.bf16.msra.mxu0 %v166
  %187 = vmatprep.subr.bf16.mxu0 0
  %188 = vmatpush1.bf16.msra.mxu0 %v167
  %189 = vmatprep.subr.bf16.mxu0 0
  %190 = vmatpush1.bf16.msra.mxu0 %v168
  %191 = vmatprep.subr.bf16.mxu0 0
  %192 = vmatpush1.bf16.msra.mxu0 %v169
  %193 = vmatprep.subr.bf16.mxu0 0
  %194 = vmatpush1.bf16.msra.mxu0 %v170
  %195 = vmatprep.subr.bf16.mxu0 0
  %196 = vmatpush1.bf16.msra.mxu0 0
  %197 = vmatprep.subr.bf16.mxu0 0
  %198 = vmatpush1.bf16.msra.mxu0 0
  %199 = vmatprep.subr.bf16.mxu0 0
  %200 = vmatpush1.bf16.msra.mxu0 0
  %201 = vmatprep.subr.bf16.mxu0 0
  %202 = vmatpush1.bf16.msra.mxu0 0
  %203 = vmatprep.subr.bf16.mxu0 0
  %204 = vmatpush1.bf16.msra.mxu0 0
  %205 = vmatprep.subr.bf16.mxu0 0
  %206 = vmatpush1.bf16.msra.mxu0 0
  %207 = vmatprep.subr.bf16.mxu0 0
  %208 = vmatpush1.bf16.msra.mxu0 0
  %209 = vmatprep.subr.bf16.mxu0 0
  %210 = vmatpush1.bf16.msra.mxu0 0
  %211 = vmatprep.mubr.bf16.mxu0 0
  %212 = vmatmul.mubr.bf16.gmra.mrb[0].mxu0 %v115
  %v213 = vpop.f32.mrb[0].mxu0
  %v214 = vadd.f32 0.0, %v213
  %v215 = vpop.f32.mrb[0].mxu0
  %v216 = vpop.f32.mrb[0].mxu0
  %v217 = vadd.f32 0.0, %v216
  %v218 = vpop.f32.mrb[0].mxu0
  %219 = vmatprep.mubr.bf16.mxu0 0
  %220 = vmatmul.mubr.bf16.gmra.mrb[0].mxu0 %v116
  %v221 = vpop.f32.mrb[0].mxu0
  %v222 = vadd.f32 0.0, %v221
  %v223 = vpop.f32.mrb[0].mxu0
  %v224 = vpop.f32.mrb[0].mxu0
  %v225 = vadd.f32 0.0, %v224
  %v226 = vpop.f32.mrb[0].mxu0
  %227 = vmatprep.mubr.bf16.mxu0 0
  %228 = vmatmul.mubr.bf16.gmra.mrb[0].mxu0 %v117
  %v229 = vpop.f32.mrb[0].mxu0
  %v230 = vadd.f32 0.0, %v229
  %v231 = vpop.f32.mrb[0].mxu0
  %v232 = vpop.f32.mrb[0].mxu0
  %v233 = vadd.f32 0.0, %v232
  %v234 = vpop.f32.mrb[0].mxu0
  %235 = vmatprep.mubr.bf16.mxu0 0
  %236 = vmatmul.mubr.bf16.gmra.mrb[0].mxu0 %v118
  %v237 = vpop.f32.mrb[0].mxu0
  %v238 = vadd.f32 0.0, %v237
  %v239 = vpop.f32.mrb[0].mxu0
  %v240 = vpop.f32.mrb[0].mxu0
  %v241 = vadd.f32 0.0, %v240
  %v242 = vpop.f32.mrb[0].mxu0
  %243 = vmatprep.mubr.bf16.mxu0 0
  %244 = vmatmul.mubr.bf16.gmra.mrb[0].mxu0 %v119
  %v245 = vpop.f32.mrb[0].mxu0
  %v246 = vadd.f32 0.0, %v245
  %v247 = vpop.f32.mrb[0].mxu0
  %v248 = vpop.f32.mrb[0].mxu0
  %v249 = vadd.f32 0.0, %v248
  %v250 = vpop.f32.mrb[0].mxu0
  %251 = vmatprep.mubr.bf16.mxu0 0
  %252 = vmatmul.mubr.bf16.gmra.mrb[0].mxu0 %v120
  %v253 = vpop.f32.mrb[0].mxu0
  %v254 = vadd.f32 0.0, %v253
  %v255 = vpop.f32.mrb[0].mxu0
  %v256 = vpop.f32.mrb[0].mxu0
  %v257 = vadd.f32 0.0, %v256
  %v258 = vpop.f32.mrb[0].mxu0
  %259 = vmatprep.mubr.bf16.mxu0 0
  %260 = vmatmul.mubr.bf16.gmra.mrb[0].mxu0 %v121
  %v261 = vpop.f32.mrb[0].mxu0
  %v262 = vadd.f32 0.0, %v261
  %v263 = vpop.f32.mrb[0].mxu0
  %v264 = vpop.f32.mrb[0].mxu0
  %v265 = vadd.f32 0.0, %v264
  %v266 = vpop.f32.mrb[0].mxu0
  %267 = vmatprep.mubr.bf16.mxu0 0
  %268 = vmatmul.mubr.bf16.gmra.mrb[0].mxu0 %v122
  %v269 = vpop.f32.mrb[0].mxu0
  %v270 = vadd.f32 0.0, %v269
  %v271 = vpop.f32.mrb[0].mxu0
  %v272 = vpop.f32.mrb[0].mxu0
  %v273 = vadd.f32 0.0, %v272
  %v274 = vpop.f32.mrb[0].mxu0
  %275 = vdwg.mxu0
  %v276 = vadd.f32 %v35, %v214
  %v277 = vadd.f32 %v36, %v217
  %v278 = vadd.f32 %v37, %v222
  %v279 = vadd.f32 %v38, %v225
  %v280 = vadd.f32 %v39, %v230
  %v281 = vadd.f32 %v40, %v233
  %v282 = vadd.f32 %v41, %v238
  %v283 = vadd.f32 %v42, %v241
  %v284 = vadd.f32 %v43, %v246
  %v285 = vadd.f32 %v44, %v249
  %v286 = vadd.f32 %v45, %v254
  %v287 = vadd.f32 %v46, %v257
  %v288 = vadd.f32 %v47, %v262
  %v289 = vadd.f32 %v48, %v265
  %v290 = vadd.f32 %v49, %v270
  %v291 = vadd.f32 %v50, %v273
  %292 = vst [vmem:[#allocation2] sm:$0xff] %v276
  %293 = vst [vmem:[#allocation2 + $0x8] sm:$0xff] %v277
  %294 = vst [vmem:[#allocation2 + $0x10] sm:$0xff] %v278
  %295 = vst [vmem:[#allocation2 + $0x18] sm:$0xff] %v279
  %296 = vst [vmem:[#allocation2 + $0x20] sm:$0xff] %v280
  %297 = vst [vmem:[#allocation2 + $0x28] sm:$0xff] %v281
  %298 = vst [vmem:[#allocation2 + $0x30] sm:$0xff] %v282
  %299 = vst [vmem:[#allocation2 + $0x38] sm:$0xff] %v283
  %300 = vst [vmem:[#allocation2 + $0x40] sm:$0xff] %v284
  %301 = vst [vmem:[#allocation2 + $0x48] sm:$0xff] %v285
  %302 = vst [vmem:[#allocation2 + $0x50] sm:$0xff] %v286
  %303 = vst [vmem:[#allocation2 + $0x58] sm:$0xff] %v287
  %304 = vst [vmem:[#allocation2 + $0x60] sm:$0xff] %v288
  %305 = vst [vmem:[#allocation2 + $0x68] sm:$0xff] %v289
  %306 = vst [vmem:[#allocation2 + $0x70] sm:$0xff] %v290
  %307 = vst [vmem:[#allocation2 + $0x78] sm:$0xff] %v291
  // Predicated region
  $region18: #{encoder_decoder_forward.15} parent=0 // pred_check
    %p308 = pneg %p15
  $region19: #{encoder_decoder_forward.15} parent=0 // pred_check_branch
    %310 = sbr.rel (%p308) target = $region21
  $region20: #{encoder_decoder_forward.15} parent=0 // pred_region
    %v311 = vld [vmem:[#allocation2] sm:$0xff]
    %v312 = vld [vmem:[#allocation2 + $0x8] sm:$0xff]
    %v313 = vld [vmem:[#allocation2 + $0x10] sm:$0xff]
    %v314 = vld [vmem:[#allocation2 + $0x18] sm:$0xff]
    %v315 = vld [vmem:[#allocation2 + $0x20] sm:$0xff]
    %v316 = vld [vmem:[#allocation2 + $0x28] sm:$0xff]
    %v317 = vld [vmem:[#allocation2 + $0x30] sm:$0xff]
    %v318 = vld [vmem:[#allocation2 + $0x38] sm:$0xff]
    %v319 = vld [vmem:[#allocation2 + $0x40] sm:$0xff]
    %v320 = vld [vmem:[#allocation2 + $0x48] sm:$0xff]
    %v321 = vld [vmem:[#allocation2 + $0x50] sm:$0xff]
    %v322 = vld [vmem:[#allocation2 + $0x58] sm:$0xff]
    %v323 = vld [vmem:[#allocation2 + $0x60] sm:$0xff]
    %v324 = vld [vmem:[#allocation2 + $0x68] sm:$0xff]
    %v325 = vld [vmem:[#allocation2 + $0x70] sm:$0xff]
    %v326 = vld [vmem:[#allocation2 + $0x78] sm:$0xff]
    %v327 = vld [vmem:[%s2] sm:$0x1]
    %v329 = vlaneseq
    %v330 = vshrl.u32 %v329, 7
    %v331 = vsub.s32 0, %v330
    %v332 = vrot.slane %v327, %v331
    %v334 = vadd.f32 %v311, %v332
    %v335 = vadd.f32 %v312, %v332
    %v336 = vadd.f32 %v313, %v332
    %v337 = vadd.f32 %v314, %v332
    %v338 = vadd.f32 %v315, %v332
    %v339 = vadd.f32 %v316, %v332
    %v340 = vadd.f32 %v317, %v332
    %v341 = vadd.f32 %v318, %v332
    %v342 = vadd.f32 %v319, %v332
    %v343 = vadd.f32 %v320, %v332
    %v344 = vadd.f32 %v321, %v332
    %v345 = vadd.f32 %v322, %v332
    %v346 = vadd.f32 %v323, %v332
    %v347 = vadd.f32 %v324, %v332
    %v348 = vadd.f32 %v325, %v332
    %v349 = vadd.f32 %v326, %v332
    %v350 = vmax.f32 %v334, 0.0
    %v351 = vmax.f32 %v335, 0.0
    %v352 = vmax.f32 %v336, 0.0
    %v353 = vmax.f32 %v337, 0.0
    %v354 = vmax.f32 %v338, 0.0
    %v355 = vmax.f32 %v339, 0.0
    %v356 = vmax.f32 %v340, 0.0
    %v357 = vmax.f32 %v341, 0.0
    %v358 = vmax.f32 %v342, 0.0
    %v359 = vmax.f32 %v343, 0.0
    %v360 = vmax.f32 %v344, 0.0
    %v361 = vmax.f32 %v345, 0.0
    %v362 = vmax.f32 %v346, 0.0
    %v363 = vmax.f32 %v347, 0.0
    %v364 = vmax.f32 %v348, 0.0
    %v365 = vmax.f32 %v349, 0.0
    %v366 = vpack.c.bf16 %v351, %v350
    %v367 = vpack.c.bf16 %v353, %v352
    %v368 = vpack.c.bf16 %v355, %v354
    %v369 = vpack.c.bf16 %v357, %v356
    %v370 = vpack.c.bf16 %v359, %v358
    %v371 = vpack.c.bf16 %v361, %v360
    %v372 = vpack.c.bf16 %v363, %v362
    %v373 = vpack.c.bf16 %v365, %v364
    %v382 = vunpack.c.l.b16 %v366
    %v383 = vunpack.c.h.b16 %v366
    %v384 = vunpack.c.l.b16 %v367
    %v385 = vunpack.c.h.b16 %v367
    %v386 = vunpack.c.l.b16 %v368
    %v387 = vunpack.c.h.b16 %v368
    %v388 = vunpack.c.l.b16 %v369
    %v389 = vunpack.c.h.b16 %v369
    %v390 = vunpack.c.l.b16 %v370
    %v391 = vunpack.c.h.b16 %v370
    %v392 = vunpack.c.l.b16 %v371
    %v393 = vunpack.c.h.b16 %v371
    %v394 = vunpack.c.l.b16 %v372
    %v395 = vunpack.c.h.b16 %v372
    %v396 = vunpack.c.l.b16 %v373
    %v397 = vunpack.c.h.b16 %v373
    %v398 = vpack.c.b16 %v382, %v382
    %v399 = vpack.c.b16 %v383, %v383
    %v400 = vpack.c.b16 %v384, %v384
    %v401 = vpack.c.b16 %v385, %v385
    %v402 = vpack.c.b16 %v386, %v386
    %v403 = vpack.c.b16 %v387, %v387
    %v404 = vpack.c.b16 %v388, %v388
    %v405 = vpack.c.b16 %v389, %v389
    %v406 = vpack.c.b16 %v390, %v390
    %v407 = vpack.c.b16 %v391, %v391
    %v408 = vpack.c.b16 %v392, %v392
    %v409 = vpack.c.b16 %v393, %v393
    %v410 = vpack.c.b16 %v394, %v394
    %v411 = vpack.c.b16 %v395, %v395
    %v412 = vpack.c.b16 %v396, %v396
    %v413 = vpack.c.b16 %v397, %v397
    %430 = vst [vmem:[%s3] sm:$0xf] %v398
    %431 = vst [vmem:[%s3 + $0x4] sm:$0xf] %v399
    %432 = vst [vmem:[%s3 + $0x8] sm:$0xf] %v400
    %433 = vst [vmem:[%s3 + $0xc] sm:$0xf] %v401
    %434 = vst [vmem:[%s3 + $0x10] sm:$0xf] %v402
    %435 = vst [vmem:[%s3 + $0x14] sm:$0xf] %v403
    %436 = vst [vmem:[%s3 + $0x18] sm:$0xf] %v404
    %437 = vst [vmem:[%s3 + $0x1c] sm:$0xf] %v405
    %438 = vst [vmem:[%s3 + $0x20] sm:$0xf] %v406
    %439 = vst [vmem:[%s3 + $0x24] sm:$0xf] %v407
    %440 = vst [vmem:[%s3 + $0x28] sm:$0xf] %v408
    %441 = vst [vmem:[%s3 + $0x2c] sm:$0xf] %v409
    %442 = vst [vmem:[%s3 + $0x30] sm:$0xf] %v410
    %443 = vst [vmem:[%s3 + $0x34] sm:$0xf] %v411
    %444 = vst [vmem:[%s3 + $0x38] sm:$0xf] %v412
    %445 = vst [vmem:[%s3 + $0x3c] sm:$0xf] %v413
  $region21: #{encoder_decoder_forward.15} parent=0 // pred_fallthru
    _
  // Predicated region
  $region22: #{encoder_decoder_forward.15} parent=0 // pred_check
    _
  $region23: #{encoder_decoder_forward.15} parent=0 // pred_check_branch
    %447 = sbr.rel (0) target = $region25
  $region24: #{encoder_decoder_forward.15} parent=0 // pred_region
    _
  $region25: #{encoder_decoder_forward.15} parent=0 // pred_fallthru
    _
  // Predicated region
  $region26: #{encoder_decoder_forward.15} parent=0 // pred_check
    _
  $region27: #{encoder_decoder_forward.15} parent=0 // pred_check_branch
    %449 = sbr.rel (0) target = $region29
  $region28: #{encoder_decoder_forward.15} parent=0 // pred_region
    _
  $region29: #{encoder_decoder_forward.15} parent=0 // pred_fallthru
    _

// kernel: encoder_decoder_forward.16
$region0: #{encoder_decoder_forward.16}
  #allocation0 [shape = 'u32[]', space=smem, size = 0x4, offset = 0x4, fixed_abs, tag = 'smem constant byte address 0x4 - core index']
  #allocation1 [shape = 'u32[144,128]{1,0:T(1,128)}', space=vmem, size = 0x12000, scoped, tag = 'internal scratch']
  #allocation2 [shape = 'f32[32,128]{1,0:T(8,128)}', space=vmem, size = 0x4000, scoped, tag = 'scratch operand']
  %s0 = inlined_call_operand.vmem [shape: bf16[32,1024], index: 0, kind: input, shape index: {}]
  %s1 = inlined_call_operand.vmem [shape: bf16[1024,128], index: 1, kind: input, shape index: {}]
  %s2 = inlined_call_operand.vmem [shape: f32[1,128], index: 2, kind: input, shape index: {}]
  %s3 = inlined_call_operand.vmem [shape: bf16[32,128], index: 3, kind: output, shape index: {}]
  %s4 = sld [smem:[#allocation0]]
  $region76: #{encoder_decoder_forward.16} parent=0
    _
  %s6 = ssub.s32 1, %s4
  %s7 = scalar_select 0, %s6, %s4
  $region1: #{encoder_decoder_forward.16} parent=0
    #allocation3 [shape = 'u8[65536]{0}', space=vmem, size = 0x10000, scoped, tag = 'input window, operand 0']
    loop: start=0, step=1, limit=4
    $region2: #{encoder_decoder_forward.16} parent=1 // loop_pre_header
      _
    $region3: #{encoder_decoder_forward.16} parent=1 // loop_header
      %s9 = sphi 0, %s13
      %p10 = scmp.ge.s32.totalorder %s9, 4
      %s16 = sphi 0, %s35
      %s17 = sphi 0, %s31
      %s18 = sphi 0, %s27
      %s19 = sphi 0, %s16
      %s20 = sphi 0, %s17
      %s21 = sphi 0, %s18
      %s22 = sphi 0, %s19
      %s23 = sphi 0, %s20
      %s24 = sphi 0, %s21
      %s40 = sphi 0, %s42
      %s43 = sphi 0, %s40
      %s44 = sphi 0, %s43
      %s60 = sphi 0, %s44
      %s68 = sphi 0, %s70
      %s71 = sphi 0, %s68
      %s72 = sphi 0, %s71
      %s88 = sphi 0, %s72
      %s94 = sphi 0, %s96
      %s97 = sphi 0, %s94
      %s98 = sphi 0, %s97
      %s114 = sphi 0, %s98
      %s122 = sphi 0, %s124
      %s125 = sphi 0, %s122
      %s126 = sphi 0, %s125
      %s142 = sphi 0, %s126
    $region4: #{encoder_decoder_forward.16} parent=1 // loop_header_branch
      %12 = sbr.rel (%p10) target = $region8
    $region5: #{encoder_decoder_forward.16} parent=1 // loop_body
      %s14 = ssub.s32 %s9, 1
      %s15 = ssub.s32 %s9, 2
      %s25 = sadd.s32 1, %s18
      %p26 = scmp.ge.s32.totalorder %s25, 2
      %s27 = scalar_select %p26, 0, %s25
      %s28 = sadd.s32 1, %s17
      %s29 = scalar_select %p26, %s28, %s17
      %p30 = scmp.ge.s32.totalorder %s29, 1
      %s31 = scalar_select %p30, 0, %s29
      %s32 = sadd.s32 1, %s16
      %s33 = scalar_select %p30, %s32, %s16
      %p34 = scmp.ge.s32.totalorder %s33, 1
      %s35 = scalar_select %p34, 0, %s33
      %s36 = ssub.s32 %s16, %s35
      %s37 = ssub.s32 %s18, %s27
      %s38 = sor.u32 %s36, %s37
      %p39 = scmp.eq.s32.totalorder %s38, 0
      %s41 = sadd.s32 %s40, 1
      %s42 = scalar_select %p39, %s40, %s41
      %p45 = pneg %p39
      %p46 = scmp.eq.s32.totalorder %s9, 1
      %p47 = por %p45, %p46
      %p48 = scmp.ne.s32.totalorder %s40, %s43
      %p49 = scmp.eq.s32.totalorder %s9, 0
      %p50 = por %p48, %p49
      %p51 = scmp.ne.s32.totalorder %s40, %s43
      %p52 = scmp.eq.s32.totalorder %s14, 1
      %p53 = por %p51, %p52
      %p54 = scmp.ne.s32.totalorder %s43, %s44
      %p55 = scmp.eq.s32.totalorder %s14, 0
      %p56 = por %p54, %p55
      %p57 = scmp.ne.s32.totalorder %s43, %s44
      %p58 = scmp.eq.s32.totalorder %s15, 1
      %p59 = por %p57, %p58
      %p61 = scmp.ne.s32.totalorder %s44, %s60
      %p62 = scmp.eq.s32.totalorder %s15, 0
      %p63 = por %p61, %p62
      %s64 = ssub.s32 %s18, %s27
      %s65 = ssub.s32 %s17, %s31
      %s66 = sor.u32 %s64, %s65
      %p67 = scmp.eq.s32.totalorder %s66, 0
      %s69 = sadd.s32 %s68, 1
      %s70 = scalar_select %p67, %s68, %s69
      %p73 = pneg %p67
      %p74 = scmp.eq.s32.totalorder %s9, 1
      %p75 = por %p73, %p74
      %p76 = scmp.ne.s32.totalorder %s68, %s71
      %p77 = scmp.eq.s32.totalorder %s9, 0
      %p78 = por %p76, %p77
      %p79 = scmp.ne.s32.totalorder %s68, %s71
      %p80 = scmp.eq.s32.totalorder %s14, 1
      %p81 = por %p79, %p80
      %p82 = scmp.ne.s32.totalorder %s71, %s72
      %p83 = scmp.eq.s32.totalorder %s14, 0
      %p84 = por %p82, %p83
      %p85 = scmp.ne.s32.totalorder %s71, %s72
      %p86 = scmp.eq.s32.totalorder %s15, 1
      %p87 = por %p85, %p86
      %p89 = scmp.ne.s32.totalorder %s72, %s88
      %p90 = scmp.eq.s32.totalorder %s15, 0
      %p91 = por %p89, %p90
      %s92 = ssub.s32 %s17, %s31
      %p93 = scmp.eq.s32.totalorder %s92, 0
      %s95 = sadd.s32 %s94, 1
      %s96 = scalar_select %p93, %s94, %s95
      %p99 = pneg %p93
      %p100 = scmp.eq.s32.totalorder %s9, 1
      %p101 = por %p99, %p100
      %p102 = scmp.ne.s32.totalorder %s94, %s97
      %p103 = scmp.eq.s32.totalorder %s9, 0
      %p104 = por %p102, %p103
      %p105 = scmp.ne.s32.totalorder %s94, %s97
      %p106 = scmp.eq.s32.totalorder %s14, 1
      %p107 = por %p105, %p106
      %p108 = scmp.ne.s32.totalorder %s97, %s98
      %p109 = scmp.eq.s32.totalorder %s14, 0
      %p110 = por %p108, %p109
      %p111 = scmp.ne.s32.totalorder %s97, %s98
      %p112 = scmp.eq.s32.totalorder %s15, 1
      %p113 = por %p111, %p112
      %p115 = scmp.ne.s32.totalorder %s98, %s114
      %p116 = scmp.eq.s32.totalorder %s15, 0
      %p117 = por %p115, %p116
      %s118 = ssub.s32 %s16, %s35
      %s119 = ssub.s32 %s17, %s31
      %s120 = sor.u32 %s118, %s119
      %p121 = scmp.eq.s32.totalorder %s120, 0
      %s123 = sadd.s32 %s122, 1
      %s124 = scalar_select %p121, %s122, %s123
      %p127 = pneg %p121
      %p128 = scmp.eq.s32.totalorder %s9, 1
      %p129 = por %p127, %p128
      %p130 = scmp.ne.s32.totalorder %s122, %s125
      %p131 = scmp.eq.s32.totalorder %s9, 0
      %p132 = por %p130, %p131
      %p133 = scmp.ne.s32.totalorder %s122, %s125
      %p134 = scmp.eq.s32.totalorder %s14, 1
      %p135 = por %p133, %p134
      %p136 = scmp.ne.s32.totalorder %s125, %s126
      %p137 = scmp.eq.s32.totalorder %s14, 0
      %p138 = por %p136, %p137
      %p139 = scmp.ne.s32.totalorder %s125, %s126
      %p140 = scmp.eq.s32.totalorder %s15, 1
      %p141 = por %p139, %p140
      %p143 = scmp.ne.s32.totalorder %s126, %s142
      %p144 = scmp.eq.s32.totalorder %s15, 0
      %p145 = por %p143, %p144
      %p146 = scmp.le.s32.totalorder 1, %s9
      %p147 = scmp.lt.s32.totalorder %s9, 3
      %p148 = pnand %p146, %p147
      %p149 = pneg %p148
      // Predicated region
      $region9: #{encoder_decoder_forward.16} parent=5 // pred_check
        _
      $region10: #{encoder_decoder_forward.16} parent=5 // pred_check_branch
        %151 = sbr.rel (%p148) target = $region12
      $region11: #{encoder_decoder_forward.16} parent=5 // pred_region
        %s152 = ssub.s32 %s9, 1
        // Predicated region
        $region13: #{encoder_decoder_forward.16} parent=11 // pred_check
          %p153 = pneg %p110
        $region14: #{encoder_decoder_forward.16} parent=11 // pred_check_branch
          %155 = sbr.rel (%p153) target = $region16
        $region15: #{encoder_decoder_forward.16} parent=11 // pred_region
          %p156 = scmp.lt.s32.totalorder %s20, 0
          %s157 = scalar_select %p156, %s20, 0
          %s158 = scalar_lea.vmem %s2, %s157
        $region16: #{encoder_decoder_forward.16} parent=11 // pred_fallthru
          _
      $region12: #{encoder_decoder_forward.16} parent=5 // pred_fallthru
        _
      %p159 = scmp.lt.s32.totalorder %s9, 2
      // Predicated region
      $region17: #{encoder_decoder_forward.16} parent=5 // pred_check
        %p160 = pneg %p159
      $region18: #{encoder_decoder_forward.16} parent=5 // pred_check_branch
        %162 = sbr.rel (%p160) target = $region20
      $region19: #{encoder_decoder_forward.16} parent=5 // pred_region
        // Predicated region
        $region21: #{encoder_decoder_forward.16} parent=19 // pred_check
          %p163 = pneg %p50
        $region22: #{encoder_decoder_forward.16} parent=19 // pred_check_branch
          %165 = sbr.rel (%p163) target = $region24
        $region23: #{encoder_decoder_forward.16} parent=19 // pred_region
          %s166 = sand.u32 %s40, 1
          %s167 = sand.u32 %s40, 1
          %s168 = smul.addr %s167, 64
          %s169 = scalar_lea.vmem [#allocation3], %s168
          %s170 = smul.u32 4, %s16
          %s171 = smul.u32 4, %s18
          %s172 = smul.addr %s170, 8
          %s173 = sadd.s32 %s171, %s172
          %s174 = smul.addr %s173, 4
          %s175 = scalar_lea.vmem %s0, %s174
          // Predicated region
          $region25: #{encoder_decoder_forward.16} parent=23 // pred_check
            _
          $region26: #{encoder_decoder_forward.16} parent=23 // pred_check_branch
            %177 = sbr.rel (0) target = $region28
          $region27: #{encoder_decoder_forward.16} parent=23 // pred_region
            // Predicated region
            $region29: #{encoder_decoder_forward.16} parent=27 // pred_check
              _
            $region30: #{encoder_decoder_forward.16} parent=27 // pred_check_branch
              %179 = sbr.rel (0) target = $region32
            $region31: #{encoder_decoder_forward.16} parent=27 // pred_region
              loop: start=0, step=1, limit=1
              $region33: #{encoder_decoder_forward.16} parent=31 // loop_pre_header
                _
              $region34: #{encoder_decoder_forward.16} parent=31 // loop_header
                %s181 = sphi 0, %s185
                %p182 = scmp.ge.s32.totalorder %s181, 1
                %s186 = sphi %s175, %s175
                %s187 = sphi %s169, %s169
              $region35: #{encoder_decoder_forward.16} parent=31 // loop_header_branch
                %184 = sbr.rel (%p182) target = $region39
              $region36: #{encoder_decoder_forward.16} parent=31 // loop_body
                %v188 = vld [vmem:[%s186] sm:$0xff]
                %189 = vst [vmem:[%s187] sm:$0xff] %v188
                %v190 = vld [vmem:[%s186 + $0x8] sm:$0xff]
                %191 = vst [vmem:[%s187 + $0x8] sm:$0xff] %v190
                %v192 = vld [vmem:[%s186 + $0x20] sm:$0xff]
                %193 = vst [vmem:[%s187 + $0x10] sm:$0xff] %v192
                %v194 = vld [vmem:[%s186 + $0x28] sm:$0xff]
                %195 = vst [vmem:[%s187 + $0x18] sm:$0xff] %v194
                %v196 = vld [vmem:[%s186 + $0x40] sm:$0xff]
                %197 = vst [vmem:[%s187 + $0x20] sm:$0xff] %v196
                %v198 = vld [vmem:[%s186 + $0x48] sm:$0xff]
                %199 = vst [vmem:[%s187 + $0x28] sm:$0xff] %v198
                %v200 = vld [vmem:[%s186 + $0x60] sm:$0xff]
                %201 = vst [vmem:[%s187 + $0x30] sm:$0xff] %v200
                %v202 = vld [vmem:[%s186 + $0x68] sm:$0xff]
                %203 = vst [vmem:[%s187 + $0x38] sm:$0xff] %v202
              $region37: #{encoder_decoder_forward.16} parent=31 // loop_footer
                %s185 = sadd.s32 1, %s181
              $region38: #{encoder_decoder_forward.16} parent=31 // loop_footer_branch
                %180 = sbr.rel target = $region34
              $region39: #{encoder_decoder_forward.16} parent=31 // loop_exit
                _
            $region32: #{encoder_decoder_forward.16} parent=27 // pred_fallthru
              _
            // Predicated region
            $region40: #{encoder_decoder_forward.16} parent=27 // pred_check
              _
            $region41: #{encoder_decoder_forward.16} parent=27 // pred_check_branch
              %205 = sbr.rel target = $region43
            $region42: #{encoder_decoder_forward.16} parent=27 // pred_region
              _
            $region43: #{encoder_decoder_forward.16} parent=27 // pred_fallthru
              _
          $region28: #{encoder_decoder_forward.16} parent=23 // pred_fallthru
            _
          %206 = vnop
        $region24: #{encoder_decoder_forward.16} parent=19 // pred_fallthru
          _
        // Predicated region
        $region44: #{encoder_decoder_forward.16} parent=19 // pred_check
          %p207 = pneg %p78
        $region45: #{encoder_decoder_forward.16} parent=19 // pred_check_branch
          %209 = sbr.rel (%p207) target = $region47
        $region46: #{encoder_decoder_forward.16} parent=19 // pred_region
          %s210 = smul.u32 64, %s18
          %p211 = scmp.lt.s32.totalorder %s210, 127
          %s212 = scalar_select %p211, %s210, 127
          %p213 = scmp.lt.s32.totalorder %s17, 0
          %s214 = scalar_select %p213, %s17, 0
          %s215 = sadd.s32 %s214, %s212
          %s216 = smul.addr %s215, 4
          %s217 = scalar_lea.vmem %s1, %s216
          %s218 = smul.u32 64, %s18
        $region47: #{encoder_decoder_forward.16} parent=19 // pred_fallthru
          _
      $region20: #{encoder_decoder_forward.16} parent=5 // pred_fallthru
        _
      %p219 = scmp.le.s32.totalorder 1, %s9
      %p220 = scmp.lt.s32.totalorder %s9, 3
      %p221 = pnand %p219, %p220
      %p222 = pneg %p221
      // Predicated region
      $region48: #{encoder_decoder_forward.16} parent=5 // pred_check
        _
      $region49: #{encoder_decoder_forward.16} parent=5 // pred_check_branch
        %224 = sbr.rel (%p221) target = $region51
      $region50: #{encoder_decoder_forward.16} parent=5 // pred_region
        %s225 = ssub.s32 %s9, 1
        %s226 = sand.u32 %s43, 1
        %s227 = sand.u32 %s43, 1
        %s228 = smul.addr %s227, 64
        %s229 = scalar_lea.vmem [#allocation3], %s228
        // Predicated region
        $region52: #{encoder_decoder_forward.16} parent=50 // pred_check
          %p230 = pneg %p56
        $region53: #{encoder_decoder_forward.16} parent=50 // pred_check_branch
          %232 = sbr.rel (%p230) target = $region55
        $region54: #{encoder_decoder_forward.16} parent=50 // pred_region
          _
        $region55: #{encoder_decoder_forward.16} parent=50 // pred_fallthru
          _
        %s233 = sand.u32 %s43, 1
        %s234 = sand.u32 %s43, 1
        %s235 = smul.addr %s234, 64
        %s236 = scalar_lea.vmem [#allocation3], %s235
        %p237 = pneg %p56
        %p238 = pneg %p53
        %s239 = smul.u32 64, %s21
        %p240 = scmp.lt.s32.totalorder %s239, 127
        %s241 = scalar_select %p240, %s239, 127
        %p242 = scmp.lt.s32.totalorder %s20, 0
        %s243 = scalar_select %p242, %s20, 0
        %s244 = sadd.s32 %s243, %s241
        %s245 = smul.addr %s244, 4
        %s246 = scalar_lea.vmem %s1, %s245
        %p247 = pneg %p84
        %p248 = pneg %p81
        %p249 = scmp.lt.s32.totalorder %s20, 0
        %s250 = scalar_select %p249, %s20, 0
        %s251 = scalar_lea.vmem %s2, %s250
        %p252 = pneg %p110
        %p253 = pneg %p107
        %p254 = pneg %p138
        %p255 = pneg %p135
        %s256 = smul.u32 4, %s19
        %p257 = scmp.lt.s32.totalorder %s256, 3
        %s258 = scalar_select %p257, %s256, 3
        %p259 = scmp.lt.s32.totalorder %s20, 0
        %s260 = scalar_select %p259, %s20, 0
        %s261 = sadd.s32 %s260, %s258
        %s262 = smul.addr %s261, 4
        %s263 = scalar_lea.vmem %s3, %s262
        %s264 = smul.u32 4, %s19
        %s265 = smul.u32 4, %s21
        %s266 = smul.u32 64, %s21
        %p267 = scmp.lt.s32.totalorder %s266, 127
        %s268 = scalar_select %p267, %s266, 127
        %p269 = scmp.lt.s32.totalorder %s20, 0
        %s270 = scalar_select %p269, %s20, 0
        %s271 = sadd.s32 %s270, %s268
        %s272 = smul.addr %s271, 4
        %s273 = scalar_lea.vmem %s1, %s272
        %s274 = smul.u32 64, %s21
        %p275 = scmp.lt.s32.totalorder %s20, 0
        %s276 = scalar_select %p275, %s20, 0
        %s277 = scalar_lea.vmem %s2, %s276
        %s278 = smul.u32 4, %s19
        %p279 = scmp.lt.s32.totalorder %s278, 3
        %s280 = scalar_select %p279, %s278, 3
        %p281 = scmp.lt.s32.totalorder %s20, 0
        %s282 = scalar_select %p281, %s20, 0
        %s283 = sadd.s32 %s282, %s280
        %s284 = smul.addr %s283, 4
        %s285 = scalar_lea.vmem %s3, %s284
        %s286 = smul.u32 4, %s19
        %p288 = scmp.eq.s32.totalorder %s21, 0
        // Predicated region
        $region56: #{encoder_decoder_forward.16} parent=50 // pred_check
          %p289 = pneg %p288
        $region57: #{encoder_decoder_forward.16} parent=50 // pred_check_branch
          %291 = sbr.rel (%p289) target = $region59
        $region58: #{encoder_decoder_forward.16} parent=50 // pred_region
          %292 = vst [vmem:[#allocation2] sm:$0xff] 0.0
          %293 = vst [vmem:[#allocation2 + $0x8] sm:$0xff] 0.0
          %294 = vst [vmem:[#allocation2 + $0x10] sm:$0xff] 0.0
          %295 = vst [vmem:[#allocation2 + $0x18] sm:$0xff] 0.0
        $region59: #{encoder_decoder_forward.16} parent=50 // pred_fallthru
          _
        %v296 = vld [vmem:[#allocation2] sm:$0xff]
        %v297 = vld [vmem:[#allocation2 + $0x8] sm:$0xff]
        %v298 = vld [vmem:[#allocation2 + $0x10] sm:$0xff]
        %v299 = vld [vmem:[#allocation2 + $0x18] sm:$0xff]
        %v300 = vld [vmem:[%s229] sm:$0xff]
        %v301 = vld [vmem:[%s229 + $0x8] sm:$0xff]
        %v302 = vld [vmem:[%s229 + $0x10] sm:$0xff]
        %v303 = vld [vmem:[%s229 + $0x18] sm:$0xff]
        %v304 = vld [vmem:[%s229 + $0x20] sm:$0xff]
        %v305 = vld [vmem:[%s229 + $0x28] sm:$0xff]
        %v306 = vld [vmem:[%s229 + $0x30] sm:$0xff]
        %v307 = vld [vmem:[%s229 + $0x38] sm:$0xff]
        %v308 = vld [vmem:[%s273] sm:$0xf]
        %v309 = vld [vmem:[%s273 + $0x4] sm:$0xf]
        %v310 = vld [vmem:[%s273 + $0x8] sm:$0xf]
        %v311 = vld [vmem:[%s273 + $0xc] sm:$0xf]
        %v312 = vld [vmem:[%s273 + $0x10] sm:$0xf]
        %v313 = vld [vmem:[%s273 + $0x14] sm:$0xf]
        %v314 = vld [vmem:[%s273 + $0x18] sm:$0xf]
        %v315 = vld [vmem:[%s273 + $0x1c] sm:$0xf]
        %v316 = vld [vmem:[%s273 + $0x20] sm:$0xf]
        %v317 = vld [vmem:[%s273 + $0x24] sm:$0xf]
        %v318 = vld [vmem:[%s273 + $0x28] sm:$0xf]
        %v319 = vld [vmem:[%s273 + $0x2c] sm:$0xf]
        %v320 = vld [vmem:[%s273 + $0x30] sm:$0xf]
        %v321 = vld [vmem:[%s273 + $0x34] sm:$0xf]
        %v322 = vld [vmem:[%s273 + $0x38] sm:$0xf]
        %v323 = vld [vmem:[%s273 + $0x3c] sm:$0xf]
        %v324 = vld [vmem:[%s273 + $0x40] sm:$0xf]
        %v325 = vld [vmem:[%s273 + $0x44] sm:$0xf]
        %v326 = vld [vmem:[%s273 + $0x48] sm:$0xf]
        %v327 = vld [vmem:[%s273 + $0x4c] sm:$0xf]
        %v328 = vld [vmem:[%s273 + $0x50] sm:$0xf]
        %v329 = vld [vmem:[%s273 + $0x54] sm:$0xf]
        %v330 = vld [vmem:[%s273 + $0x58] sm:$0xf]
        %v331 = vld [vmem:[%s273 + $0x5c] sm:$0xf]
        %v332 = vld [vmem:[%s273 + $0x60] sm:$0xf]
        %v333 = vld [vmem:[%s273 + $0x64] sm:$0xf]
        %v334 = vld [vmem:[%s273 + $0x68] sm:$0xf]
        %v335 = vld [vmem:[%s273 + $0x6c] sm:$0xf]
        %v336 = vld [vmem:[%s273 + $0x70] sm:$0xf]
        %v337 = vld [vmem:[%s273 + $0x74] sm:$0xf]
        %v338 = vld [vmem:[%s273 + $0x78] sm:$0xf]
        %v339 = vld [vmem:[%s273 + $0x7c] sm:$0xf]
        %v340 = vld [vmem:[%s273 + $0x80] sm:$0xf]
        %v341 = vld [vmem:[%s273 + $0x84] sm:$0xf]
        %v342 = vld [vmem:[%s273 + $0x88] sm:$0xf]
        %v343 = vld [vmem:[%s273 + $0x8c] sm:$0xf]
        %v344 = vld [vmem:[%s273 + $0x90] sm:$0xf]
        %v345 = vld [vmem:[%s273 + $0x94] sm:$0xf]
        %v346 = vld [vmem:[%s273 + $0x98] sm:$0xf]
        %v347 = vld [vmem:[%s273 + $0x9c] sm:$0xf]
        %v348 = vld [vmem:[%s273 + $0xa0] sm:$0xf]
        %v349 = vld [vmem:[%s273 + $0xa4] sm:$0xf]
        %v350 = vld [vmem:[%s273 + $0xa8] sm:$0xf]
        %v351 = vld [vmem:[%s273 + $0xac] sm:$0xf]
        %v352 = vld [vmem:[%s273 + $0xb0] sm:$0xf]
        %v353 = vld [vmem:[%s273 + $0xb4] sm:$0xf]
        %v354 = vld [vmem:[%s273 + $0xb8] sm:$0xf]
        %v355 = vld [vmem:[%s273 + $0xbc] sm:$0xf]
        %v356 = vld [vmem:[%s273 + $0xc0] sm:$0xf]
        %v357 = vld [vmem:[%s273 + $0xc4] sm:$0xf]
        %v358 = vld [vmem:[%s273 + $0xc8] sm:$0xf]
        %v359 = vld [vmem:[%s273 + $0xcc] sm:$0xf]
        %v360 = vld [vmem:[%s273 + $0xd0] sm:$0xf]
        %v361 = vld [vmem:[%s273 + $0xd4] sm:$0xf]
        %v362 = vld [vmem:[%s273 + $0xd8] sm:$0xf]
        %v363 = vld [vmem:[%s273 + $0xdc] sm:$0xf]
        %v364 = vld [vmem:[%s273 + $0xe0] sm:$0xf]
        %v365 = vld [vmem:[%s273 + $0xe4] sm:$0xf]
        %v366 = vld [vmem:[%s273 + $0xe8] sm:$0xf]
        %v367 = vld [vmem:[%s273 + $0xec] sm:$0xf]
        %v368 = vld [vmem:[%s273 + $0xf0] sm:$0xf]
        %v369 = vld [vmem:[%s273 + $0xf4] sm:$0xf]
        %v370 = vld [vmem:[%s273 + $0xf8] sm:$0xf]
        %v371 = vld [vmem:[%s273 + $0xfc] sm:$0xf]
        %v380 = vunpack.c.l.b16 %v300
        %v381 = vunpack.c.h.b16 %v300
        %v382 = vunpack.c.l.b16 %v301
        %v383 = vunpack.c.h.b16 %v301
        %v384 = vunpack.c.l.b16 %v302
        %v385 = vunpack.c.h.b16 %v302
        %v386 = vunpack.c.l.b16 %v303
        %v387 = vunpack.c.h.b16 %v303
        %v388 = vunpack.c.l.b16 %v304
        %v389 = vunpack.c.h.b16 %v304
        %v390 = vunpack.c.l.b16 %v305
        %v391 = vunpack.c.h.b16 %v305
        %v392 = vunpack.c.l.b16 %v306
        %v393 = vunpack.c.h.b16 %v306
        %v394 = vunpack.c.l.b16 %v307
        %v395 = vunpack.c.h.b16 %v307
        %v396 = vpack.c.b16 %v384, %v380
        %v397 = vpack.c.b16 %v385, %v381
        %v398 = vpack.c.b16 %v386, %v382
        %v399 = vpack.c.b16 %v387, %v383
        %v400 = vpack.c.b16 %v392, %v388
        %v401 = vpack.c.b16 %v393, %v389
        %v402 = vpack.c.b16 %v394, %v390
        %v403 = vpack.c.b16 %v395, %v391
        %v476 = vunpack.c.l.b16 %v308
        %v477 = vunpack.c.l.b16 %v309
        %v478 = vunpack.c.l.b16 %v310
        %v479 = vunpack.c.l.b16 %v311
        %v480 = vunpack.c.l.b16 %v312
        %v481 = vunpack.c.l.b16 %v313
        %v482 = vunpack.c.l.b16 %v314
        %v483 = vunpack.c.l.b16 %v315
        %v484 = vunpack.c.l.b16 %v316
        %v485 = vunpack.c.l.b16 %v317
        %v486 = vunpack.c.l.b16 %v318
        %v487 = vunpack.c.l.b16 %v319
        %v488 = vunpack.c.l.b16 %v320
        %v489 = vunpack.c.l.b16 %v321
        %v490 = vunpack.c.l.b16 %v322
        %v491 = vunpack.c.l.b16 %v323
        %v492 = vunpack.c.l.b16 %v324
        %v493 = vunpack.c.l.b16 %v325
        %v494 = vunpack.c.l.b16 %v326
        %v495 = vunpack.c.l.b16 %v327
        %v496 = vunpack.c.l.b16 %v328
        %v497 = vunpack.c.l.b16 %v329
        %v498 = vunpack.c.l.b16 %v330
        %v499 = vunpack.c.l.b16 %v331
        %v500 = vunpack.c.l.b16 %v332
        %v501 = vunpack.c.l.b16 %v333
        %v502 = vunpack.c.l.b16 %v334
        %v503 = vunpack.c.l.b16 %v335
        %v504 = vunpack.c.l.b16 %v336
        %v505 = vunpack.c.l.b16 %v337
        %v506 = vunpack.c.l.b16 %v338
        %v507 = vunpack.c.l.b16 %v339
        %v508 = vunpack.c.l.b16 %v340
        %v509 = vunpack.c.l.b16 %v341
        %v510 = vunpack.c.l.b16 %v342
        %v511 = vunpack.c.l.b16 %v343
        %v512 = vunpack.c.l.b16 %v344
        %v513 = vunpack.c.l.b16 %v345
        %v514 = vunpack.c.l.b16 %v346
        %v515 = vunpack.c.l.b16 %v347
        %v516 = vunpack.c.l.b16 %v348
        %v517 = vunpack.c.l.b16 %v349
        %v518 = vunpack.c.l.b16 %v350
        %v519 = vunpack.c.l.b16 %v351
        %v520 = vunpack.c.l.b16 %v352
        %v521 = vunpack.c.l.b16 %v353
        %v522 = vunpack.c.l.b16 %v354
        %v523 = vunpack.c.l.b16 %v355
        %v524 = vunpack.c.l.b16 %v356
        %v525 = vunpack.c.l.b16 %v357
        %v526 = vunpack.c.l.b16 %v358
        %v527 = vunpack.c.l.b16 %v359
        %v528 = vunpack.c.l.b16 %v360
        %v529 = vunpack.c.l.b16 %v361
        %v530 = vunpack.c.l.b16 %v362
        %v531 = vunpack.c.l.b16 %v363
        %v532 = vunpack.c.l.b16 %v364
        %v533 = vunpack.c.l.b16 %v365
        %v534 = vunpack.c.l.b16 %v366
        %v535 = vunpack.c.l.b16 %v367
        %v536 = vunpack.c.l.b16 %v368
        %v537 = vunpack.c.l.b16 %v369
        %v538 = vunpack.c.l.b16 %v370
        %v539 = vunpack.c.l.b16 %v371
        %v540 = vpack.c.b16 %v477, %v476
        %v541 = vpack.c.b16 %v479, %v478
        %v542 = vpack.c.b16 %v481, %v480
        %v543 = vpack.c.b16 %v483, %v482
        %v544 = vpack.c.b16 %v485, %v484
        %v545 = vpack.c.b16 %v487, %v486
        %v546 = vpack.c.b16 %v489, %v488
        %v547 = vpack.c.b16 %v491, %v490
        %v548 = vpack.c.b16 %v493, %v492
        %v549 = vpack.c.b16 %v495, %v494
        %v550 = vpack.c.b16 %v497, %v496
        %v551 = vpack.c.b16 %v499, %v498
        %v552 = vpack.c.b16 %v501, %v500
        %v553 = vpack.c.b16 %v503, %v502
        %v554 = vpack.c.b16 %v505, %v504
        %v555 = vpack.c.b16 %v507, %v506
        %v556 = vpack.c.b16 %v509, %v508
        %v557 = vpack.c.b16 %v511, %v510
        %v558 = vpack.c.b16 %v513, %v512
        %v559 = vpack.c.b16 %v515, %v514
        %v560 = vpack.c.b16 %v517, %v516
        %v561 = vpack.c.b16 %v519, %v518
        %v562 = vpack.c.b16 %v521, %v520
        %v563 = vpack.c.b16 %v523, %v522
        %v564 = vpack.c.b16 %v525, %v524
        %v565 = vpack.c.b16 %v527, %v526
        %v566 = vpack.c.b16 %v529, %v528
        %v567 = vpack.c.b16 %v531, %v530
        %v568 = vpack.c.b16 %v533, %v532
        %v569 = vpack.c.b16 %v535, %v534
        %v570 = vpack.c.b16 %v537, %v536
        %v571 = vpack.c.b16 %v539, %v538
        %604 = vmatprep.subr.bf16.mxu0 0
        %605 = vmatpush1.bf16.msra.mxu0 %v540
        %606 = vmatprep.subr.bf16.mxu0 0
        %607 = vmatpush1.bf16.msra.mxu0 %v541
        %608 = vmatprep.subr.bf16.mxu0 0
        %609 = vmatpush1.bf16.msra.mxu0 %v542
        %610 = vmatprep.subr.bf16.mxu0 0
        %611 = vmatpush1.bf16.msra.mxu0 %v543
        %612 = vmatprep.subr.bf16.mxu0 0
        %613 = vmatpush1.bf16.msra.mxu0 %v544
        %614 = vmatprep.subr.bf16.mxu0 0
        %615 = vmatpush1.bf16.msra.mxu0 %v545
        %616 = vmatprep.subr.bf16.mxu0 0
        %617 = vmatpush1.bf16.msra.mxu0 %v546
        %618 = vmatprep.subr.bf16.mxu0 0
        %619 = vmatpush1.bf16.msra.mxu0 %v547
        %620 = vmatprep.subr.bf16.mxu0 0
        %621 = vmatpush1.bf16.msra.mxu0 %v548
        %622 = vmatprep.subr.bf16.mxu0 0
        %623 = vmatpush1.bf16.msra.mxu0 %v549
        %624 = vmatprep.subr.bf16.mxu0 0
        %625 = vmatpush1.bf16.msra.mxu0 %v550
        %626 = vmatprep.subr.bf16.mxu0 0
        %627 = vmatpush1.bf16.msra.mxu0 %v551
        %628 = vmatprep.subr.bf16.mxu0 0
        %629 = vmatpush1.bf16.msra.mxu0 %v552
        %630 = vmatprep.subr.bf16.mxu0 0
        %631 = vmatpush1.bf16.msra.mxu0 %v553
        %632 = vmatprep.subr.bf16.mxu0 0
        %633 = vmatpush1.bf16.msra.mxu0 %v554
        %634 = vmatprep.subr.bf16.mxu0 0
        %635 = vmatpush1.bf16.msra.mxu0 %v555
        %636 = vmatprep.mubr.bf16.mxu0 %v397
        %637 = vmatmul.mubr.bf16.gmra.mrb[0].mxu0 %v396
        %v638 = vpop.f32.mrb[0].mxu0
        %v639 = vadd.f32 0.0, %v638
        %v640 = vpop.f32.mrb[0].mxu0
        %v641 = vpop.f32.mrb[0].mxu0
        %v642 = vadd.f32 0.0, %v641
        %v643 = vpop.f32.mrb[0].mxu0
        %644 = vmatprep.mubr.bf16.mxu0 %v401
        %645 = vmatmul.mubr.bf16.gmra.mrb[0].mxu0 %v400
        %v646 = vpop.f32.mrb[0].mxu0
        %v647 = vadd.f32 0.0, %v646
        %v648 = vpop.f32.mrb[0].mxu0
        %v649 = vpop.f32.mrb[0].mxu0
        %v650 = vadd.f32 0.0, %v649
        %v651 = vpop.f32.mrb[0].mxu0
        %652 = vdwg.mxu0
        %653 = vmatprep.subr.bf16.mxu0 0
        %654 = vmatpush1.bf16.msra.mxu0 %v556
        %655 = vmatprep.subr.bf16.mxu0 0
        %656 = vmatpush1.bf16.msra.mxu0 %v557
        %657 = vmatprep.subr.bf16.mxu0 0
        %658 = vmatpush1.bf16.msra.mxu0 %v558
        %659 = vmatprep.subr.bf16.mxu0 0
        %660 = vmatpush1.bf16.msra.mxu0 %v559
        %661 = vmatprep.subr.bf16.mxu0 0
        %662 = vmatpush1.bf16.msra.mxu0 %v560
        %663 = vmatprep.subr.bf16.mxu0 0
        %664 = vmatpush1.bf16.msra.mxu0 %v561
        %665 = vmatprep.subr.bf16.mxu0 0
        %666 = vmatpush1.bf16.msra.mxu0 %v562
        %667 = vmatprep.subr.bf16.mxu0 0
        %668 = vmatpush1.bf16.msra.mxu0 %v563
        %669 = vmatprep.subr.bf16.mxu0 0
        %670 = vmatpush1.bf16.msra.mxu0 %v564
        %671 = vmatprep.subr.bf16.mxu0 0
        %672 = vmatpush1.bf16.msra.mxu0 %v565
        %673 = vmatprep.subr.bf16.mxu0 0
        %674 = vmatpush1.bf16.msra.mxu0 %v566
        %675 = vmatprep.subr.bf16.mxu0 0
        %676 = vmatpush1.bf16.msra.mxu0 %v567
        %677 = vmatprep.subr.bf16.mxu0 0
        %678 = vmatpush1.bf16.msra.mxu0 %v568
        %679 = vmatprep.subr.bf16.mxu0 0
        %680 = vmatpush1.bf16.msra.mxu0 %v569
        %681 = vmatprep.subr.bf16.mxu0 0
        %682 = vmatpush1.bf16.msra.mxu0 %v570
        %683 = vmatprep.subr.bf16.mxu0 0
        %684 = vmatpush1.bf16.msra.mxu0 %v571
        %685 = vmatprep.mubr.bf16.mxu0 %v399
        %686 = vmatmul.mubr.bf16.gmra.mrb[0].mxu0 %v398
        %v687 = vpop.f32.mrb[0].mxu0
        %v688 = vadd.f32 %v639, %v687
        %v689 = vpop.f32.mrb[0].mxu0
        %v690 = vpop.f32.mrb[0].mxu0
        %v691 = vadd.f32 %v642, %v690
        %v692 = vpop.f32.mrb[0].mxu0
        %693 = vmatprep.mubr.bf16.mxu0 %v403
        %694 = vmatmul.mubr.bf16.gmra.mrb[0].mxu0 %v402
        %v695 = vpop.f32.mrb[0].mxu0
        %v696 = vadd.f32 %v647, %v695
        %v697 = vpop.f32.mrb[0].mxu0
        %v698 = vpop.f32.mrb[0].mxu0
        %v699 = vadd.f32 %v650, %v698
        %v700 = vpop.f32.mrb[0].mxu0
        %701 = vdwg.mxu0
        %v702 = vadd.f32 %v296, %v688
        %v703 = vadd.f32 %v297, %v691
        %v704 = vadd.f32 %v298, %v696
        %v705 = vadd.f32 %v299, %v699
        %706 = vst [vmem:[#allocation2] sm:$0xff] %v702
        %707 = vst [vmem:[#allocation2 + $0x8] sm:$0xff] %v703
        %708 = vst [vmem:[#allocation2 + $0x10] sm:$0xff] %v704
        %709 = vst [vmem:[#allocation2 + $0x18] sm:$0xff] %v705
        %p710 = scmp.eq.s32.totalorder %s21, 1
        // Predicated region
        $region60: #{encoder_decoder_forward.16} parent=50 // pred_check
          %p711 = pneg %p710
        $region61: #{encoder_decoder_forward.16} parent=50 // pred_check_branch
          %713 = sbr.rel (%p711) target = $region63
        $region62: #{encoder_decoder_forward.16} parent=50 // pred_region
          %v714 = vld [vmem:[#allocation2] sm:$0xff]
          %v715 = vld [vmem:[#allocation2 + $0x8] sm:$0xff]
          %v716 = vld [vmem:[#allocation2 + $0x10] sm:$0xff]
          %v717 = vld [vmem:[#allocation2 + $0x18] sm:$0xff]
          %v718 = vld [vmem:[%s277] sm:$0x1]
          %v720 = vlaneseq
          %v721 = vshrl.u32 %v720, 7
          %v722 = vsub.s32 0, %v721
          %v723 = vrot.slane %v718, %v722
          %v725 = vadd.f32 %v714, %v723
          %v726 = vadd.f32 %v715, %v723
          %v727 = vadd.f32 %v716, %v723
          %v728 = vadd.f32 %v717, %v723
          %v729 = vmax.f32 %v725, 0.0
          %v730 = vmax.f32 %v726, 0.0
          %v731 = vmax.f32 %v727, 0.0
          %v732 = vmax.f32 %v728, 0.0
          %v733 = vpack.c.bf16 %v730, %v729
          %v734 = vpack.c.bf16 %v732, %v731
          %v737 = vunpack.c.l.b16 %v733
          %v738 = vunpack.c.h.b16 %v733
          %v739 = vunpack.c.l.b16 %v734
          %v740 = vunpack.c.h.b16 %v734
          %v741 = vpack.c.b16 %v737, %v737
          %v742 = vpack.c.b16 %v738, %v738
          %v743 = vpack.c.b16 %v739, %v739
          %v744 = vpack.c.b16 %v740, %v740
          %749 = vst [vmem:[%s285] sm:$0xf] %v741
          %750 = vst [vmem:[%s285 + $0x4] sm:$0xf] %v742
          %751 = vst [vmem:[%s285 + $0x8] sm:$0xf] %v743
          %752 = vst [vmem:[%s285 + $0xc] sm:$0xf] %v744
        $region63: #{encoder_decoder_forward.16} parent=50 // pred_fallthru
          _
        %s753 = smul.u32 4, %s19
        %p754 = scmp.lt.s32.totalorder %s753, 3
        %s755 = scalar_select %p754, %s753, 3
        %p756 = scmp.lt.s32.totalorder %s20, 0
        %s757 = scalar_select %p756, %s20, 0
        %s758 = sadd.s32 %s757, %s755
        %s759 = smul.addr %s758, 4
        %s760 = scalar_lea.vmem %s3, %s759
        // Predicated region
        $region64: #{encoder_decoder_forward.16} parent=50 // pred_check
          %p761 = pneg %p135
        $region65: #{encoder_decoder_forward.16} parent=50 // pred_check_branch
          %763 = sbr.rel (%p761) target = $region67
        $region66: #{encoder_decoder_forward.16} parent=50 // pred_region
          %s764 = smul.u32 4, %s19
        $region67: #{encoder_decoder_forward.16} parent=50 // pred_fallthru
          _
        // Predicated region
        $region68: #{encoder_decoder_forward.16} parent=50 // pred_check
          %p765 = pneg %p135
        $region69: #{encoder_decoder_forward.16} parent=50 // pred_check_branch
          %767 = sbr.rel (%p765) target = $region71
        $region70: #{encoder_decoder_forward.16} parent=50 // pred_region
          %s768 = smul.u32 4, %s19
          %p769 = scmp.lt.s32.totalorder %s768, 3
          %s770 = scalar_select %p769, %s768, 3
          %p771 = scmp.lt.s32.totalorder %s20, 0
          %s772 = scalar_select %p771, %s20, 0
          %s773 = sadd.s32 %s772, %s770
          %s774 = smul.addr %s773, 4
          %s775 = scalar_lea.vmem %s3, %s774
        $region71: #{encoder_decoder_forward.16} parent=50 // pred_fallthru
          _
      $region51: #{encoder_decoder_forward.16} parent=5 // pred_fallthru
        _
      %p776 = scmp.le.s32.totalorder 2, %s9
      // Predicated region
      $region72: #{encoder_decoder_forward.16} parent=5 // pred_check
        %p777 = pneg %p776
      $region73: #{encoder_decoder_forward.16} parent=5 // pred_check_branch
        %779 = sbr.rel (%p777) target = $region75
      $region74: #{encoder_decoder_forward.16} parent=5 // pred_region
        %s780 = ssub.s32 %s9, 2
      $region75: #{encoder_decoder_forward.16} parent=5 // pred_fallthru
        _
    $region6: #{encoder_decoder_forward.16} parent=1 // loop_footer
      %s13 = sadd.s32 1, %s9
    $region7: #{encoder_decoder_forward.16} parent=1 // loop_footer_branch
      %8 = sbr.rel target = $region3
    $region8: #{encoder_decoder_forward.16} parent=1 // loop_exit
      _

// kernel: encoder_decoder_forward.17
$region0: #{encoder_decoder_forward.17}
  #allocation0 [shape = 'u32[]', space=smem, size = 0x4, offset = 0x4, fixed_abs, tag = 'smem constant byte address 0x4 - core index']
  #allocation1 [shape = 'u32[144,128]{1,0:T(1,128)}', space=vmem, size = 0x12000, scoped, tag = 'internal scratch']
  #allocation2 [shape = 'f32[8,256]{1,0:T(8,128)}', space=vmem, size = 0x2000, scoped, tag = 'scratch operand']
  %s0 = inlined_call_operand.vmem [shape: bf16[8,2048], index: 0, kind: input, shape index: {}]
  %s1 = inlined_call_operand.vmem [shape: bf16[2048,256], index: 1, kind: input, shape index: {}]
  %s2 = inlined_call_operand.vmem [shape: f32[1,256], index: 2, kind: input, shape index: {}]
  %s3 = inlined_call_operand.vmem [shape: bf16[8,256], index: 3, kind: output, shape index: {}]
  %s4 = sld [smem:[#allocation0]]
  $region53: #{encoder_decoder_forward.17} parent=0
    _
  %s6 = ssub.s32 1, %s4
  %s7 = scalar_select 0, %s6, %s4
  loop: start=0, step=1, limit=6
  $region2: #{encoder_decoder_forward.17} parent=0 // loop_pre_header
    _
  $region3: #{encoder_decoder_forward.17} parent=0 // loop_header
    %s9 = sphi 0, %s13
    %p10 = scmp.ge.s32.totalorder %s9, 6
    %s16 = sphi 0, %s35
    %s17 = sphi 0, %s31
    %s18 = sphi 0, %s27
    %s19 = sphi 0, %s16
    %s20 = sphi 0, %s17
    %s21 = sphi 0, %s18
    %s22 = sphi 0, %s19
    %s23 = sphi 0, %s20
    %s24 = sphi 0, %s21
    %s40 = sphi 0, %s42
    %s43 = sphi 0, %s40
    %s44 = sphi 0, %s43
    %s60 = sphi 0, %s44
    %s68 = sphi 0, %s70
    %s71 = sphi 0, %s68
    %s72 = sphi 0, %s71
    %s88 = sphi 0, %s72
    %s94 = sphi 0, %s96
    %s97 = sphi 0, %s94
    %s98 = sphi 0, %s97
    %s114 = sphi 0, %s98
    %s122 = sphi 0, %s124
    %s125 = sphi 0, %s122
    %s126 = sphi 0, %s125
    %s142 = sphi 0, %s126
  $region4: #{encoder_decoder_forward.17} parent=0 // loop_header_branch
    %12 = sbr.rel (%p10) target = $region8
  $region5: #{encoder_decoder_forward.17} parent=0 // loop_body
    %s14 = ssub.s32 %s9, 1
    %s15 = ssub.s32 %s9, 2
    %s25 = sadd.s32 1, %s18
    %p26 = scmp.ge.s32.totalorder %s25, 4
    %s27 = scalar_select %p26, 0, %s25
    %s28 = sadd.s32 1, %s17
    %s29 = scalar_select %p26, %s28, %s17
    %p30 = scmp.ge.s32.totalorder %s29, 1
    %s31 = scalar_select %p30, 0, %s29
    %s32 = sadd.s32 1, %s16
    %s33 = scalar_select %p30, %s32, %s16
    %p34 = scmp.ge.s32.totalorder %s33, 1
    %s35 = scalar_select %p34, 0, %s33
    %s36 = ssub.s32 %s16, %s35
    %s37 = ssub.s32 %s18, %s27
    %s38 = sor.u32 %s36, %s37
    %p39 = scmp.eq.s32.totalorder %s38, 0
    %s41 = sadd.s32 %s40, 1
    %s42 = scalar_select %p39, %s40, %s41
    %p45 = pneg %p39
    %p46 = scmp.eq.s32.totalorder %s9, 3
    %p47 = por %p45, %p46
    %p48 = scmp.ne.s32.totalorder %s40, %s43
    %p49 = scmp.eq.s32.totalorder %s9, 0
    %p50 = por %p48, %p49
    %p51 = scmp.ne.s32.totalorder %s40, %s43
    %p52 = scmp.eq.s32.totalorder %s14, 3
    %p53 = por %p51, %p52
    %p54 = scmp.ne.s32.totalorder %s43, %s44
    %p55 = scmp.eq.s32.totalorder %s14, 0
    %p56 = por %p54, %p55
    %p57 = scmp.ne.s32.totalorder %s43, %s44
    %p58 = scmp.eq.s32.totalorder %s15, 3
    %p59 = por %p57, %p58
    %p61 = scmp.ne.s32.totalorder %s44, %s60
    %p62 = scmp.eq.s32.totalorder %s15, 0
    %p63 = por %p61, %p62
    %s64 = ssub.s32 %s18, %s27
    %s65 = ssub.s32 %s17, %s31
    %s66 = sor.u32 %s64, %s65
    %p67 = scmp.eq.s32.totalorder %s66, 0
    %s69 = sadd.s32 %s68, 1
    %s70 = scalar_select %p67, %s68, %s69
    %p73 = pneg %p67
    %p74 = scmp.eq.s32.totalorder %s9, 3
    %p75 = por %p73, %p74
    %p76 = scmp.ne.s32.totalorder %s68, %s71
    %p77 = scmp.eq.s32.totalorder %s9, 0
    %p78 = por %p76, %p77
    %p79 = scmp.ne.s32.totalorder %s68, %s71
    %p80 = scmp.eq.s32.totalorder %s14, 3
    %p81 = por %p79, %p80
    %p82 = scmp.ne.s32.totalorder %s71, %s72
    %p83 = scmp.eq.s32.totalorder %s14, 0
    %p84 = por %p82, %p83
    %p85 = scmp.ne.s32.totalorder %s71, %s72
    %p86 = scmp.eq.s32.totalorder %s15, 3
    %p87 = por %p85, %p86
    %p89 = scmp.ne.s32.totalorder %s72, %s88
    %p90 = scmp.eq.s32.totalorder %s15, 0
    %p91 = por %p89, %p90
    %s92 = ssub.s32 %s17, %s31
    %p93 = scmp.eq.s32.totalorder %s92, 0
    %s95 = sadd.s32 %s94, 1
    %s96 = scalar_select %p93, %s94, %s95
    %p99 = pneg %p93
    %p100 = scmp.eq.s32.totalorder %s9, 3
    %p101 = por %p99, %p100
    %p102 = scmp.ne.s32.totalorder %s94, %s97
    %p103 = scmp.eq.s32.totalorder %s9, 0
    %p104 = por %p102, %p103
    %p105 = scmp.ne.s32.totalorder %s94, %s97
    %p106 = scmp.eq.s32.totalorder %s14, 3
    %p107 = por %p105, %p106
    %p108 = scmp.ne.s32.totalorder %s97, %s98
    %p109 = scmp.eq.s32.totalorder %s14, 0
    %p110 = por %p108, %p109
    %p111 = scmp.ne.s32.totalorder %s97, %s98
    %p112 = scmp.eq.s32.totalorder %s15, 3
    %p113 = por %p111, %p112
    %p115 = scmp.ne.s32.totalorder %s98, %s114
    %p116 = scmp.eq.s32.totalorder %s15, 0
    %p117 = por %p115, %p116
    %s118 = ssub.s32 %s16, %s35
    %s119 = ssub.s32 %s17, %s31
    %s120 = sor.u32 %s118, %s119
    %p121 = scmp.eq.s32.totalorder %s120, 0
    %s123 = sadd.s32 %s122, 1
    %s124 = scalar_select %p121, %s122, %s123
    %p127 = pneg %p121
    %p128 = scmp.eq.s32.totalorder %s9, 3
    %p129 = por %p127, %p128
    %p130 = scmp.ne.s32.totalorder %s122, %s125
    %p131 = scmp.eq.s32.totalorder %s9, 0
    %p132 = por %p130, %p131
    %p133 = scmp.ne.s32.totalorder %s122, %s125
    %p134 = scmp.eq.s32.totalorder %s14, 3
    %p135 = por %p133, %p134
    %p136 = scmp.ne.s32.totalorder %s125, %s126
    %p137 = scmp.eq.s32.totalorder %s14, 0
    %p138 = por %p136, %p137
    %p139 = scmp.ne.s32.totalorder %s125, %s126
    %p140 = scmp.eq.s32.totalorder %s15, 3
    %p141 = por %p139, %p140
    %p143 = scmp.ne.s32.totalorder %s126, %s142
    %p144 = scmp.eq.s32.totalorder %s15, 0
    %p145 = por %p143, %p144
    %p146 = scmp.le.s32.totalorder 1, %s9
    %p147 = scmp.lt.s32.totalorder %s9, 5
    %p148 = pnand %p146, %p147
    %p149 = pneg %p148
    // Predicated region
    $region9: #{encoder_decoder_forward.17} parent=5 // pred_check
      _
    $region10: #{encoder_decoder_forward.17} parent=5 // pred_check_branch
      %151 = sbr.rel (%p148) target = $region12
    $region11: #{encoder_decoder_forward.17} parent=5 // pred_region
      %s152 = ssub.s32 %s9, 1
      // Predicated region
      $region13: #{encoder_decoder_forward.17} parent=11 // pred_check
        %p153 = pneg %p110
      $region14: #{encoder_decoder_forward.17} parent=11 // pred_check_branch
        %155 = sbr.rel (%p153) target = $region16
      $region15: #{encoder_decoder_forward.17} parent=11 // pred_region
        %s156 = smul.u32 2, %s20
        %p157 = scmp.lt.s32.totalorder %s156, 1
        %s158 = scalar_select %p157, %s156, 1
        %s159 = scalar_lea.vmem %s2, %s158
        %s160 = smul.u32 2, %s20
      $region16: #{encoder_decoder_forward.17} parent=11 // pred_fallthru
        _
    $region12: #{encoder_decoder_forward.17} parent=5 // pred_fallthru
      _
    %p161 = scmp.lt.s32.totalorder %s9, 4
    // Predicated region
    $region17: #{encoder_decoder_forward.17} parent=5 // pred_check
      %p162 = pneg %p161
    $region18: #{encoder_decoder_forward.17} parent=5 // pred_check_branch
      %164 = sbr.rel (%p162) target = $region20
    $region19: #{encoder_decoder_forward.17} parent=5 // pred_region
      // Predicated region
      $region21: #{encoder_decoder_forward.17} parent=19 // pred_check
        %p165 = pneg %p50
      $region22: #{encoder_decoder_forward.17} parent=19 // pred_check_branch
        %167 = sbr.rel (%p165) target = $region24
      $region23: #{encoder_decoder_forward.17} parent=19 // pred_region
        %s168 = smul.u32 4, %s18
        %p169 = scmp.lt.s32.totalorder %s16, 0
        %s170 = scalar_select %p169, %s16, 0
        %p171 = scmp.lt.s32.totalorder %s168, 15
        %s172 = scalar_select %p171, %s168, 15
        %s173 = smul.addr %s170, 16
        %s174 = sadd.s32 %s172, %s173
        %s175 = smul.addr %s174, 4
        %s176 = scalar_lea.vmem %s0, %s175
        %s177 = smul.u32 4, %s18
      $region24: #{encoder_decoder_forward.17} parent=19 // pred_fallthru
        _
      // Predicated region
      $region25: #{encoder_decoder_forward.17} parent=19 // pred_check
        %p178 = pneg %p78
      $region26: #{encoder_decoder_forward.17} parent=19 // pred_check_branch
        %180 = sbr.rel (%p178) target = $region28
      $region27: #{encoder_decoder_forward.17} parent=19 // pred_region
        %s181 = smul.u32 64, %s18
        %s182 = smul.u32 2, %s17
        %p183 = scmp.lt.s32.totalorder %s181, 255
        %s184 = scalar_select %p183, %s181, 255
        %p185 = scmp.lt.s32.totalorder %s182, 1
        %s186 = scalar_select %p185, %s182, 1
        %s187 = smul.addr %s184, 2
        %s188 = sadd.s32 %s186, %s187
        %s189 = smul.addr %s188, 4
        %s190 = scalar_lea.vmem %s1, %s189
        %s191 = smul.u32 64, %s18
        %s192 = smul.u32 2, %s17
      $region28: #{encoder_decoder_forward.17} parent=19 // pred_fallthru
        _
    $region20: #{encoder_decoder_forward.17} parent=5 // pred_fallthru
      _
    %p193 = scmp.le.s32.totalorder 1, %s9
    %p194 = scmp.lt.s32.totalorder %s9, 5
    %p195 = pnand %p193, %p194
    %p196 = pneg %p195
    // Predicated region
    $region29: #{encoder_decoder_forward.17} parent=5 // pred_check
      _
    $region30: #{encoder_decoder_forward.17} parent=5 // pred_check_branch
      %198 = sbr.rel (%p195) target = $region32
    $region31: #{encoder_decoder_forward.17} parent=5 // pred_region
      %s199 = ssub.s32 %s9, 1
      %s200 = smul.u32 4, %s21
      %p201 = scmp.lt.s32.totalorder %s19, 0
      %s202 = scalar_select %p201, %s19, 0
      %p203 = scmp.lt.s32.totalorder %s200, 15
      %s204 = scalar_select %p203, %s200, 15
      %s205 = smul.addr %s202, 16
      %s206 = sadd.s32 %s204, %s205
      %s207 = smul.addr %s206, 4
      %s208 = scalar_lea.vmem %s0, %s207
      %p209 = pneg %p56
      %p210 = pneg %p53
      %s211 = smul.u32 64, %s21
      %s212 = smul.u32 2, %s20
      %p213 = scmp.lt.s32.totalorder %s211, 255
      %s214 = scalar_select %p213, %s211, 255
      %p215 = scmp.lt.s32.totalorder %s212, 1
      %s216 = scalar_select %p215, %s212, 1
      %s217 = smul.addr %s214, 2
      %s218 = sadd.s32 %s216, %s217
      %s219 = smul.addr %s218, 4
      %s220 = scalar_lea.vmem %s1, %s219
      %p221 = pneg %p84
      %p222 = pneg %p81
      %s223 = smul.u32 2, %s20
      %p224 = scmp.lt.s32.totalorder %s223, 1
      %s225 = scalar_select %p224, %s223, 1
      %s226 = scalar_lea.vmem %s2, %s225
      %p227 = pneg %p110
      %p228 = pneg %p107
      %p229 = pneg %p138
      %p230 = pneg %p135
      %s231 = smul.u32 2, %s20
      %p232 = scmp.lt.s32.totalorder %s19, 0
      %s233 = scalar_select %p232, %s19, 0
      %p234 = scmp.lt.s32.totalorder %s231, 1
      %s235 = scalar_select %p234, %s231, 1
      %s236 = smul.addr %s233, 2
      %s237 = sadd.s32 %s235, %s236
      %s238 = smul.addr %s237, 4
      %s239 = scalar_lea.vmem %s3, %s238
      %s240 = smul.u32 4, %s21
      %p241 = scmp.lt.s32.totalorder %s19, 0
      %s242 = scalar_select %p241, %s19, 0
      %p243 = scmp.lt.s32.totalorder %s240, 15
      %s244 = scalar_select %p243, %s240, 15
      %s245 = smul.addr %s242, 16
      %s246 = sadd.s32 %s244, %s245
      %s247 = smul.addr %s246, 4
      %s248 = scalar_lea.vmem %s0, %s247
      %s249 = smul.u32 4, %s21
      %s250 = smul.u32 64, %s21
      %s251 = smul.u32 2, %s20
      %p252 = scmp.lt.s32.totalorder %s250, 255
      %s253 = scalar_select %p252, %s250, 255
      %p254 = scmp.lt.s32.totalorder %s251, 1
      %s255 = scalar_select %p254, %s251, 1
      %s256 = smul.addr %s253, 2
      %s257 = sadd.s32 %s255, %s256
      %s258 = smul.addr %s257, 4
      %s259 = scalar_lea.vmem %s1, %s258
      %s260 = smul.u32 64, %s21
      %s261 = smul.u32 2, %s20
      %s262 = smul.u32 2, %s20
      %p263 = scmp.lt.s32.totalorder %s262, 1
      %s264 = scalar_select %p263, %s262, 1
      %s265 = scalar_lea.vmem %s2, %s264
      %s266 = smul.u32 2, %s20
      %s267 = smul.u32 2, %s20
      %p268 = scmp.lt.s32.totalorder %s19, 0
      %s269 = scalar_select %p268, %s19, 0
      %p270 = scmp.lt.s32.totalorder %s267, 1
      %s271 = scalar_select %p270, %s267, 1
      %s272 = smul.addr %s269, 2
      %s273 = sadd.s32 %s271, %s272
      %s274 = smul.addr %s273, 4
      %s275 = scalar_lea.vmem %s3, %s274
      %s276 = smul.u32 2, %s20
      %p277 = scmp.eq.s32.totalorder %s21, 0
      // Predicated region
      $region33: #{encoder_decoder_forward.17} parent=31 // pred_check
        %p278 = pneg %p277
      $region34: #{encoder_decoder_forward.17} parent=31 // pred_check_branch
        %280 = sbr.rel (%p278) target = $region36
      $region35: #{encoder_decoder_forward.17} parent=31 // pred_region
        %281 = vst [vmem:[#allocation2] sm:$0xff] 0.0
        %282 = vst [vmem:[#allocation2 + $0x8] sm:$0xff] 0.0
      $region36: #{encoder_decoder_forward.17} parent=31 // pred_fallthru
        _
      %v283 = vld [vmem:[#allocation2] sm:$0xff]
      %v284 = vld [vmem:[#allocation2 + $0x8] sm:$0xff]
      %v285 = vld [vmem:[%s248] sm:$0xff]
      %v286 = vld [vmem:[%s248 + $0x8] sm:$0xff]
      %v287 = vld [vmem:[%s259] sm:$0xff]
      %v288 = vld [vmem:[%s259 + $0x8] sm:$0xff]
      %v289 = vld [vmem:[%s259 + $0x10] sm:$0xff]
      %v290 = vld [vmem:[%s259 + $0x18] sm:$0xff]
      %v291 = vld [vmem:[%s259 + $0x20] sm:$0xff]
      %v292 = vld [vmem:[%s259 + $0x28] sm:$0xff]
      %v293 = vld [vmem:[%s259 + $0x30] sm:$0xff]
      %v294 = vld [vmem:[%s259 + $0x38] sm:$0xff]
      %v295 = vld [vmem:[%s259 + $0x40] sm:$0xff]
      %v296 = vld [vmem:[%s259 + $0x48] sm:$0xff]
      %v297 = vld [vmem:[%s259 + $0x50] sm:$0xff]
      %v298 = vld [vmem:[%s259 + $0x58] sm:$0xff]
      %v299 = vld [vmem:[%s259 + $0x60] sm:$0xff]
      %v300 = vld [vmem:[%s259 + $0x68] sm:$0xff]
      %v301 = vld [vmem:[%s259 + $0x70] sm:$0xff]
      %v302 = vld [vmem:[%s259 + $0x78] sm:$0xff]
      %v303 = vld [vmem:[%s259 + $0x80] sm:$0xff]
      %v304 = vld [vmem:[%s259 + $0x88] sm:$0xff]
      %v305 = vld [vmem:[%s259 + $0x90] sm:$0xff]
      %v306 = vld [vmem:[%s259 + $0x98] sm:$0xff]
      %v307 = vld [vmem:[%s259 + $0xa0] sm:$0xff]
      %v308 = vld [vmem:[%s259 + $0xa8] sm:$0xff]
      %v309 = vld [vmem:[%s259 + $0xb0] sm:$0xff]
      %v310 = vld [vmem:[%s259 + $0xb8] sm:$0xff]
      %v311 = vld [vmem:[%s259 + $0xc0] sm:$0xff]
      %v312 = vld [vmem:[%s259 + $0xc8] sm:$0xff]
      %v313 = vld [vmem:[%s259 + $0xd0] sm:$0xff]
      %v314 = vld [vmem:[%s259 + $0xd8] sm:$0xff]
      %v315 = vld [vmem:[%s259 + $0xe0] sm:$0xff]
      %v316 = vld [vmem:[%s259 + $0xe8] sm:$0xff]
      %v317 = vld [vmem:[%s259 + $0xf0] sm:$0xff]
      %v318 = vld [vmem:[%s259 + $0xf8] sm:$0xff]
      %v319 = vld [vmem:[%s259 + $0x100] sm:$0xff]
      %v320 = vld [vmem:[%s259 + $0x108] sm:$0xff]
      %v321 = vld [vmem:[%s259 + $0x110] sm:$0xff]
      %v322 = vld [vmem:[%s259 + $0x118] sm:$0xff]
      %v323 = vld [vmem:[%s259 + $0x120] sm:$0xff]
      %v324 = vld [vmem:[%s259 + $0x128] sm:$0xff]
      %v325 = vld [vmem:[%s259 + $0x130] sm:$0xff]
      %v326 = vld [vmem:[%s259 + $0x138] sm:$0xff]
      %v327 = vld [vmem:[%s259 + $0x140] sm:$0xff]
      %v328 = vld [vmem:[%s259 + $0x148] sm:$0xff]
      %v329 = vld [vmem:[%s259 + $0x150] sm:$0xff]
      %v330 = vld [vmem:[%s259 + $0x158] sm:$0xff]
      %v331 = vld [vmem:[%s259 + $0x160] sm:$0xff]
      %v332 = vld [vmem:[%s259 + $0x168] sm:$0xff]
      %v333 = vld [vmem:[%s259 + $0x170] sm:$0xff]
      %v334 = vld [vmem:[%s259 + $0x178] sm:$0xff]
      %v335 = vld [vmem:[%s259 + $0x180] sm:$0xff]
      %v336 = vld [vmem:[%s259 + $0x188] sm:$0xff]
      %v337 = vld [vmem:[%s259 + $0x190] sm:$0xff]
      %v338 = vld [vmem:[%s259 + $0x198] sm:$0xff]
      %v339 = vld [vmem:[%s259 + $0x1a0] sm:$0xff]
      %v340 = vld [vmem:[%s259 + $0x1a8] sm:$0xff]
      %v341 = vld [vmem:[%s259 + $0x1b0] sm:$0xff]
      %v342 = vld [vmem:[%s259 + $0x1b8] sm:$0xff]
      %v343 = vld [vmem:[%s259 + $0x1c0] sm:$0xff]
      %v344 = vld [vmem:[%s259 + $0x1c8] sm:$0xff]
      %v345 = vld [vmem:[%s259 + $0x1d0] sm:$0xff]
      %v346 = vld [vmem:[%s259 + $0x1d8] sm:$0xff]
      %v347 = vld [vmem:[%s259 + $0x1e0] sm:$0xff]
      %v348 = vld [vmem:[%s259 + $0x1e8] sm:$0xff]
      %v349 = vld [vmem:[%s259 + $0x1f0] sm:$0xff]
      %v350 = vld [vmem:[%s259 + $0x1f8] sm:$0xff]
      %v353 = vunpack.c.l.b16 %v285
      %v354 = vunpack.c.h.b16 %v285
      %v355 = vunpack.c.l.b16 %v286
      %v356 = vunpack.c.h.b16 %v286
      %v357 = vpack.c.b16 %v353, %v353
      %v358 = vpack.c.b16 %v354, %v354
      %v359 = vpack.c.b16 %v355, %v355
      %v360 = vpack.c.b16 %v356, %v356
      %v429 = vunpack.c.l.b16 %v287
      %v430 = vunpack.c.h.b16 %v287
      %v431 = vunpack.c.l.b16 %v288
      %v432 = vunpack.c.h.b16 %v288
      %v433 = vunpack.c.l.b16 %v289
      %v434 = vunpack.c.h.b16 %v289
      %v435 = vunpack.c.l.b16 %v290
      %v436 = vunpack.c.h.b16 %v290
      %v437 = vunpack.c.l.b16 %v291
      %v438 = vunpack.c.h.b16 %v291
      %v439 = vunpack.c.l.b16 %v292
      %v440 = vunpack.c.h.b16 %v292
      %v441 = vunpack.c.l.b16 %v293
      %v442 = vunpack.c.h.b16 %v293
      %v443 = vunpack.c.l.b16 %v294
      %v444 = vunpack.c.h.b16 %v294
      %v445 = vunpack.c.l.b16 %v295
      %v446 = vunpack.c.h.b16 %v295
      %v447 = vunpack.c.l.b16 %v296
      %v448 = vunpack.c.h.b16 %v296
      %v449 = vunpack.c.l.b16 %v297
      %v450 = vunpack.c.h.b16 %v297
      %v451 = vunpack.c.l.b16 %v298
      %v452 = vunpack.c.h.b16 %v298
      %v453 = vunpack.c.l.b16 %v299
      %v454 = vunpack.c.h.b16 %v299
      %v455 = vunpack.c.l.b16 %v300
      %v456 = vunpack.c.h.b16 %v300
      %v457 = vunpack.c.l.b16 %v301
      %v458 = vunpack.c.h.b16 %v301
      %v459 = vunpack.c.l.b16 %v302
      %v460 = vunpack.c.h.b16 %v302
      %v461 = vunpack.c.l.b16 %v303
      %v462 = vunpack.c.h.b16 %v303
      %v463 = vunpack.c.l.b16 %v304
      %v464 = vunpack.c.h.b16 %v304
      %v465 = vunpack.c.l.b16 %v305
      %v466 = vunpack.c.h.b16 %v305
      %v467 = vunpack.c.l.b16 %v306
      %v468 = vunpack.c.h.b16 %v306
      %v469 = vunpack.c.l.b16 %v307
      %v470 = vunpack.c.h.b16 %v307
      %v471 = vunpack.c.l.b16 %v308
      %v472 = vunpack.c.h.b16 %v308
      %v473 = vunpack.c.l.b16 %v309
      %v474 = vunpack.c.h.b16 %v309
      %v475 = vunpack.c.l.b16 %v310
      %v476 = vunpack.c.h.b16 %v310
      %v477 = vunpack.c.l.b16 %v311
      %v478 = vunpack.c.h.b16 %v311
      %v479 = vunpack.c.l.b16 %v312
      %v480 = vunpack.c.h.b16 %v312
      %v481 = vunpack.c.l.b16 %v313
      %v482 = vunpack.c.h.b16 %v313
      %v483 = vunpack.c.l.b16 %v314
      %v484 = vunpack.c.h.b16 %v314
      %v485 = vunpack.c.l.b16 %v315
      %v486 = vunpack.c.h.b16 %v315
      %v487 = vunpack.c.l.b16 %v316
      %v488 = vunpack.c.h.b16 %v316
      %v489 = vunpack.c.l.b16 %v317
      %v490 = vunpack.c.h.b16 %v317
      %v491 = vunpack.c.l.b16 %v318
      %v492 = vunpack.c.h.b16 %v318
      %v493 = vunpack.c.l.b16 %v319
      %v494 = vunpack.c.h.b16 %v319
      %v495 = vunpack.c.l.b16 %v320
      %v496 = vunpack.c.h.b16 %v320
      %v497 = vunpack.c.l.b16 %v321
      %v498 = vunpack.c.h.b16 %v321
      %v499 = vunpack.c.l.b16 %v322
      %v500 = vunpack.c.h.b16 %v322
      %v501 = vunpack.c.l.b16 %v323
      %v502 = vunpack.c.h.b16 %v323
      %v503 = vunpack.c.l.b16 %v324
      %v504 = vunpack.c.h.b16 %v324
      %v505 = vunpack.c.l.b16 %v325
      %v506 = vunpack.c.h.b16 %v325
      %v507 = vunpack.c.l.b16 %v326
      %v508 = vunpack.c.h.b16 %v326
      %v509 = vunpack.c.l.b16 %v327
      %v510 = vunpack.c.h.b16 %v327
      %v511 = vunpack.c.l.b16 %v328
      %v512 = vunpack.c.h.b16 %v328
      %v513 = vunpack.c.l.b16 %v329
      %v514 = vunpack.c.h.b16 %v329
      %v515 = vunpack.c.l.b16 %v330
      %v516 = vunpack.c.h.b16 %v330
      %v517 = vunpack.c.l.b16 %v331
      %v518 = vunpack.c.h.b16 %v331
      %v519 = vunpack.c.l.b16 %v332
      %v520 = vunpack.c.h.b16 %v332
      %v521 = vunpack.c.l.b16 %v333
      %v522 = vunpack.c.h.b16 %v333
      %v523 = vunpack.c.l.b16 %v334
      %v524 = vunpack.c.h.b16 %v334
      %v525 = vunpack.c.l.b16 %v335
      %v526 = vunpack.c.h.b16 %v335
      %v527 = vunpack.c.l.b16 %v336
      %v528 = vunpack.c.h.b16 %v336
      %v529 = vunpack.c.l.b16 %v337
      %v530 = vunpack.c.h.b16 %v337
      %v531 = vunpack.c.l.b16 %v338
      %v532 = vunpack.c.h.b16 %v338
      %v533 = vunpack.c.l.b16 %v339
      %v534 = vunpack.c.h.b16 %v339
      %v535 = vunpack.c.l.b16 %v340
      %v536 = vunpack.c.h.b16 %v340
      %v537 = vunpack.c.l.b16 %v341
      %v538 = vunpack.c.h.b16 %v341
      %v539 = vunpack.c.l.b16 %v342
      %v540 = vunpack.c.h.b16 %v342
      %v541 = vunpack.c.l.b16 %v343
      %v542 = vunpack.c.h.b16 %v343
      %v543 = vunpack.c.l.b16 %v344
      %v544 = vunpack.c.h.b16 %v344
      %v545 = vunpack.c.l.b16 %v345
      %v546 = vunpack.c.h.b16 %v345
      %v547 = vunpack.c.l.b16 %v346
      %v548 = vunpack.c.h.b16 %v346
      %v549 = vunpack.c.l.b16 %v347
      %v550 = vunpack.c.h.b16 %v347
      %v551 = vunpack.c.l.b16 %v348
      %v552 = vunpack.c.h.b16 %v348
      %v553 = vunpack.c.l.b16 %v349
      %v554 = vunpack.c.h.b16 %v349
      %v555 = vunpack.c.l.b16 %v350
      %v556 = vunpack.c.h.b16 %v350
      %v557 = vpack.c.b16 %v431, %v429
      %v558 = vpack.c.b16 %v432, %v430
      %v559 = vpack.c.b16 %v435, %v433
      %v560 = vpack.c.b16 %v436, %v434
      %v561 = vpack.c.b16 %v439, %v437
      %v562 = vpack.c.b16 %v440, %v438
      %v563 = vpack.c.b16 %v443, %v441
      %v564 = vpack.c.b16 %v444, %v442
      %v565 = vpack.c.b16 %v447, %v445
      %v566 = vpack.c.b16 %v448, %v446
      %v567 = vpack.c.b16 %v451, %v449
      %v568 = vpack.c.b16 %v452, %v450
      %v569 = vpack.c.b16 %v455, %v453
      %v570 = vpack.c.b16 %v456, %v454
      %v571 = vpack.c.b16 %v459, %v457
      %v572 = vpack.c.b16 %v460, %v458
      %v573 = vpack.c.b16 %v463, %v461
      %v574 = vpack.c.b16 %v464, %v462
      %v575 = vpack.c.b16 %v467, %v465
      %v576 = vpack.c.b16 %v468, %v466
      %v577 = vpack.c.b16 %v471, %v469
      %v578 = vpack.c.b16 %v472, %v470
      %v579 = vpack.c.b16 %v475, %v473
      %v580 = vpack.c.b16 %v476, %v474
      %v581 = vpack.c.b16 %v479, %v477
      %v582 = vpack.c.b16 %v480, %v478
      %v583 = vpack.c.b16 %v483, %v481
      %v584 = vpack.c.b16 %v484, %v482
      %v585 = vpack.c.b16 %v487, %v485
      %v586 = vpack.c.b16 %v488, %v486
      %v587 = vpack.c.b16 %v491, %v489
      %v588 = vpack.c.b16 %v492, %v490
      %v589 = vpack.c.b16 %v495, %v493
      %v590 = vpack.c.b16 %v496, %v494
      %v591 = vpack.c.b16 %v499, %v497
      %v592 = vpack.c.b16 %v500, %v498
      %v593 = vpack.c.b16 %v503, %v501
      %v594 = vpack.c.b16 %v504, %v502
      %v595 = vpack.c.b16 %v507, %v505
      %v596 = vpack.c.b16 %v508, %v506
      %v597 = vpack.c.b16 %v511, %v509
      %v598 = vpack.c.b16 %v512, %v510
      %v599 = vpack.c.b16 %v515, %v513
      %v600 = vpack.c.b16 %v516, %v514
      %v601 = vpack.c.b16 %v519, %v517
      %v602 = vpack.c.b16 %v520, %v518
      %v603 = vpack.c.b16 %v523, %v521
      %v604 = vpack.c.b16 %v524, %v522
      %v605 = vpack.c.b16 %v527, %v525
      %v606 = vpack.c.b16 %v528, %v526
      %v607 = vpack.c.b16 %v531, %v529
      %v608 = vpack.c.b16 %v532, %v530
      %v609 = vpack.c.b16 %v535, %v533
      %v610 = vpack.c.b16 %v536, %v534
      %v611 = vpack.c.b16 %v539, %v537
      %v612 = vpack.c.b16 %v540, %v538
      %v613 = vpack.c.b16 %v543, %v541
      %v614 = vpack.c.b16 %v544, %v542
      %v615 = vpack.c.b16 %v547, %v545
      %v616 = vpack.c.b16 %v548, %v546
      %v617 = vpack.c.b16 %v551, %v549
      %v618 = vpack.c.b16 %v552, %v550
      %v619 = vpack.c.b16 %v555, %v553
      %v620 = vpack.c.b16 %v556, %v554
      %685 = vmatprep.subr.bf16.mxu0 %v558
      %686 = vmatpush1.bf16.msra.mxu0 %v557
      %687 = vmatprep.subr.bf16.mxu0 %v560
      %688 = vmatpush1.bf16.msra.mxu0 %v559
      %689 = vmatprep.subr.bf16.mxu0 %v562
      %690 = vmatpush1.bf16.msra.mxu0 %v561
      %691 = vmatprep.subr.bf16.mxu0 %v564
      %692 = vmatpush1.bf16.msra.mxu0 %v563
      %693 = vmatprep.subr.bf16.mxu0 %v566
      %694 = vmatpush1.bf16.msra.mxu0 %v565
      %695 = vmatprep.subr.bf16.mxu0 %v568
      %696 = vmatpush1.bf16.msra.mxu0 %v567
      %697 = vmatprep.subr.bf16.mxu0 %v570
      %698 = vmatpush1.bf16.msra.mxu0 %v569
      %699 = vmatprep.subr.bf16.mxu0 %v572
      %700 = vmatpush1.bf16.msra.mxu0 %v571
      %701 = vmatprep.subr.bf16.mxu0 %v574
      %702 = vmatpush1.bf16.msra.mxu0 %v573
      %703 = vmatprep.subr.bf16.mxu0 %v576
      %704 = vmatpush1.bf16.msra.mxu0 %v575
      %705 = vmatprep.subr.bf16.mxu0 %v578
      %706 = vmatpush1.bf16.msra.mxu0 %v577
      %707 = vmatprep.subr.bf16.mxu0 %v580
      %708 = vmatpush1.bf16.msra.mxu0 %v579
      %709 = vmatprep.subr.bf16.mxu0 %v582
      %710 = vmatpush1.bf16.msra.mxu0 %v581
      %711 = vmatprep.subr.bf16.mxu0 %v584
      %712 = vmatpush1.bf16.msra.mxu0 %v583
      %713 = vmatprep.subr.bf16.mxu0 %v586
      %714 = vmatpush1.bf16.msra.mxu0 %v585
      %715 = vmatprep.subr.bf16.mxu0 %v588
      %716 = vmatpush1.bf16.msra.mxu0 %v587
      %717 = vmatprep.mubr.bf16.mxu0 %v358
      %718 = vmatmul.mubr.bf16.gmra.mrb[0].mxu0 %v357
      %v719 = vpop.f32.mrb[0].mxu0
      %v720 = vadd.f32 0.0, %v719
      %v721 = vpop.f32.mrb[0].mxu0
      %v722 = vadd.f32 0.0, %v721
      %v723 = vpop.f32.mrb[0].mxu0
      %v724 = vpop.f32.mrb[0].mxu0
      %725 = vdwg.mxu0
      %726 = vmatprep.subr.bf16.mxu0 %v590
      %727 = vmatpush1.bf16.msra.mxu0 %v589
      %728 = vmatprep.subr.bf16.mxu0 %v592
      %729 = vmatpush1.bf16.msra.mxu0 %v591
      %730 = vmatprep.subr.bf16.mxu0 %v594
      %731 = vmatpush1.bf16.msra.mxu0 %v593
      %732 = vmatprep.subr.bf16.mxu0 %v596
      %733 = vmatpush1.bf16.msra.mxu0 %v595
      %734 = vmatprep.subr.bf16.mxu0 %v598
      %735 = vmatpush1.bf16.msra.mxu0 %v597
      %736 = vmatprep.subr.bf16.mxu0 %v600
      %737 = vmatpush1.bf16.msra.mxu0 %v599
      %738 = vmatprep.subr.bf16.mxu0 %v602
      %739 = vmatpush1.bf16.msra.mxu0 %v601
      %740 = vmatprep.subr.bf16.mxu0 %v604
      %741 = vmatpush1.bf16.msra.mxu0 %v603
      %742 = vmatprep.subr.bf16.mxu0 %v606
      %743 = vmatpush1.bf16.msra.mxu0 %v605
      %744 = vmatprep.subr.bf16.mxu0 %v608
      %745 = vmatpush1.bf16.msra.mxu0 %v607
      %746 = vmatprep.subr.bf16.mxu0 %v610
      %747 = vmatpush1.bf16.msra.mxu0 %v609
      %748 = vmatprep.subr.bf16.mxu0 %v612
      %749 = vmatpush1.bf16.msra.mxu0 %v611
      %750 = vmatprep.subr.bf16.mxu0 %v614
      %751 = vmatpush1.bf16.msra.mxu0 %v613
      %752 = vmatprep.subr.bf16.mxu0 %v616
      %753 = vmatpush1.bf16.msra.mxu0 %v615
      %754 = vmatprep.subr.bf16.mxu0 %v618
      %755 = vmatpush1.bf16.msra.mxu0 %v617
      %756 = vmatprep.subr.bf16.mxu0 %v620
      %757 = vmatpush1.bf16.msra.mxu0 %v619
      %758 = vmatprep.mubr.bf16.mxu0 %v360
      %759 = vmatmul.mubr.bf16.gmra.mrb[0].mxu0 %v359
      %v760 = vpop.f32.mrb[0].mxu0
      %v761 = vadd.f32 %v720, %v760
      %v762 = vpop.f32.mrb[0].mxu0
      %v763 = vadd.f32 %v722, %v762
      %v764 = vpop.f32.mrb[0].mxu0
      %v765 = vpop.f32.mrb[0].mxu0
      %766 = vdwg.mxu0
      %v767 = vadd.f32 %v283, %v761
      %v768 = vadd.f32 %v284, %v763
      %769 = vst [vmem:[#allocation2] sm:$0xff] %v767
      %770 = vst [vmem:[#allocation2 + $0x8] sm:$0xff] %v768
      %p771 = scmp.eq.s32.totalorder %s21, 3
      // Predicated region
      $region37: #{encoder_decoder_forward.17} parent=31 // pred_check
        %p772 = pneg %p771
      $region38: #{encoder_decoder_forward.17} parent=31 // pred_check_branch
        %774 = sbr.rel (%p772) target = $region40
      $region39: #{encoder_decoder_forward.17} parent=31 // pred_region
        %v775 = vld [vmem:[#allocation2] sm:$0xff]
        %v776 = vld [vmem:[#allocation2 + $0x8] sm:$0xff]
        %v777 = vld [vmem:[%s265] sm:$0x3]
        %v779 = vlaneseq
        %v780 = vshrl.u32 %v779, 7
        %v781 = vsub.s32 0, %v780
        %v782 = vrot.slane %v777, %v781
        %v783 = vlaneseq
        %v784 = vshrl.u32 %v783, 7
        %v785 = vsub.s32 1, %v784
        %v786 = vrot.slane %v777, %v785
        %v789 = vadd.f32 %v775, %v782
        %v790 = vadd.f32 %v776, %v786
        %v791 = vmax.f32 %v789, 0.0
        %v792 = vmax.f32 %v790, 0.0
        %v793 = vpack.c.bf16 %v791, %v791
        %v794 = vpack.c.bf16 %v792, %v792
        %v797 = vunpack.c.l.b16 %v793
        %v798 = vunpack.c.l.b16 %v794
        %v799 = vpack.c.b16 %v798, %v797
        %801 = vst [vmem:[%s275] sm:$0xff] %v799
      $region40: #{encoder_decoder_forward.17} parent=31 // pred_fallthru
        _
      %s802 = smul.u32 2, %s20
      %p803 = scmp.lt.s32.totalorder %s19, 0
      %s804 = scalar_select %p803, %s19, 0
      %p805 = scmp.lt.s32.totalorder %s802, 1
      %s806 = scalar_select %p805, %s802, 1
      %s807 = smul.addr %s804, 2
      %s808 = sadd.s32 %s806, %s807
      %s809 = smul.addr %s808, 4
      %s810 = scalar_lea.vmem %s3, %s809
      // Predicated region
      $region41: #{encoder_decoder_forward.17} parent=31 // pred_check
        %p811 = pneg %p135
      $region42: #{encoder_decoder_forward.17} parent=31 // pred_check_branch
        %813 = sbr.rel (%p811) target = $region44
      $region43: #{encoder_decoder_forward.17} parent=31 // pred_region
        %s814 = smul.u32 2, %s20
      $region44: #{encoder_decoder_forward.17} parent=31 // pred_fallthru
        _
      // Predicated region
      $region45: #{encoder_decoder_forward.17} parent=31 // pred_check
        %p815 = pneg %p135
      $region46: #{encoder_decoder_forward.17} parent=31 // pred_check_branch
        %817 = sbr.rel (%p815) target = $region48
      $region47: #{encoder_decoder_forward.17} parent=31 // pred_region
        %s818 = smul.u32 2, %s20
        %p819 = scmp.lt.s32.totalorder %s19, 0
        %s820 = scalar_select %p819, %s19, 0
        %p821 = scmp.lt.s32.totalorder %s818, 1
        %s822 = scalar_select %p821, %s818, 1
        %s823 = smul.addr %s820, 2
        %s824 = sadd.s32 %s822, %s823
        %s825 = smul.addr %s824, 4
        %s826 = scalar_lea.vmem %s3, %s825
      $region48: #{encoder_decoder_forward.17} parent=31 // pred_fallthru
        _
    $region32: #{encoder_decoder_forward.17} parent=5 // pred_fallthru
      _
    %p827 = scmp.le.s32.totalorder 2, %s9
    // Predicated region
    $region49: #{encoder_decoder_forward.17} parent=5 // pred_check
      %p828 = pneg %p827
    $region50: #{encoder_decoder_forward.17} parent=5 // pred_check_branch
      %830 = sbr.rel (%p828) target = $region52
    $region51: #{encoder_decoder_forward.17} parent=5 // pred_region
      %s831 = ssub.s32 %s9, 2
    $region52: #{encoder_decoder_forward.17} parent=5 // pred_fallthru
      _
  $region6: #{encoder_decoder_forward.17} parent=0 // loop_footer
    %s13 = sadd.s32 1, %s9
  $region7: #{encoder_decoder_forward.17} parent=0 // loop_footer_branch
    %8 = sbr.rel target = $region3
  $region8: #{encoder_decoder_forward.17} parent=0 // loop_exit
    _

// kernel: encoder_decoder_forward.18
$region0: #{encoder_decoder_forward.18}
  #allocation0 [shape = 'u32[]', space=smem, size = 0x4, offset = 0x4, fixed_abs, tag = 'smem constant byte address 0x4 - core index']
  #allocation1 [shape = 'u32[144,128]{1,0:T(1,128)}', space=vmem, size = 0x12000, scoped, tag = 'internal scratch']
  #allocation2 [shape = 'f32[8,128]{1,0:T(8,128)}', space=vmem, size = 0x1000, scoped, tag = 'scratch operand']
  %s0 = inlined_call_operand.vmem [shape: bf16[8,1024], index: 0, kind: input, shape index: {}]
  %s1 = inlined_call_operand.vmem [shape: bf16[1024,128], index: 1, kind: input, shape index: {}]
  %s2 = inlined_call_operand.vmem [shape: f32[1,128], index: 2, kind: input, shape index: {}]
  %s3 = inlined_call_operand.vmem [shape: bf16[8,128], index: 3, kind: output, shape index: {}]
  %s4 = sld [smem:[#allocation0]]
  $region53: #{encoder_decoder_forward.18} parent=0
    _
  %s6 = ssub.s32 1, %s4
  %s7 = scalar_select 0, %s6, %s4
  loop: start=0, step=1, limit=4
  $region2: #{encoder_decoder_forward.18} parent=0 // loop_pre_header
    _
  $region3: #{encoder_decoder_forward.18} parent=0 // loop_header
    %s9 = sphi 0, %s13
    %p10 = scmp.ge.s32.totalorder %s9, 4
    %s16 = sphi 0, %s35
    %s17 = sphi 0, %s31
    %s18 = sphi 0, %s27
    %s19 = sphi 0, %s16
    %s20 = sphi 0, %s17
    %s21 = sphi 0, %s18
    %s22 = sphi 0, %s19
    %s23 = sphi 0, %s20
    %s24 = sphi 0, %s21
    %s40 = sphi 0, %s42
    %s43 = sphi 0, %s40
    %s44 = sphi 0, %s43
    %s60 = sphi 0, %s44
    %s68 = sphi 0, %s70
    %s71 = sphi 0, %s68
    %s72 = sphi 0, %s71
    %s88 = sphi 0, %s72
    %s94 = sphi 0, %s96
    %s97 = sphi 0, %s94
    %s98 = sphi 0, %s97
    %s114 = sphi 0, %s98
    %s122 = sphi 0, %s124
    %s125 = sphi 0, %s122
    %s126 = sphi 0, %s125
    %s142 = sphi 0, %s126
  $region4: #{encoder_decoder_forward.18} parent=0 // loop_header_branch
    %12 = sbr.rel (%p10) target = $region8
  $region5: #{encoder_decoder_forward.18} parent=0 // loop_body
    %s14 = ssub.s32 %s9, 1
    %s15 = ssub.s32 %s9, 2
    %s25 = sadd.s32 1, %s18
    %p26 = scmp.ge.s32.totalorder %s25, 2
    %s27 = scalar_select %p26, 0, %s25
    %s28 = sadd.s32 1, %s17
    %s29 = scalar_select %p26, %s28, %s17
    %p30 = scmp.ge.s32.totalorder %s29, 1
    %s31 = scalar_select %p30, 0, %s29
    %s32 = sadd.s32 1, %s16
    %s33 = scalar_select %p30, %s32, %s16
    %p34 = scmp.ge.s32.totalorder %s33, 1
    %s35 = scalar_select %p34, 0, %s33
    %s36 = ssub.s32 %s16, %s35
    %s37 = ssub.s32 %s18, %s27
    %s38 = sor.u32 %s36, %s37
    %p39 = scmp.eq.s32.totalorder %s38, 0
    %s41 = sadd.s32 %s40, 1
    %s42 = scalar_select %p39, %s40, %s41
    %p45 = pneg %p39
    %p46 = scmp.eq.s32.totalorder %s9, 1
    %p47 = por %p45, %p46
    %p48 = scmp.ne.s32.totalorder %s40, %s43
    %p49 = scmp.eq.s32.totalorder %s9, 0
    %p50 = por %p48, %p49
    %p51 = scmp.ne.s32.totalorder %s40, %s43
    %p52 = scmp.eq.s32.totalorder %s14, 1
    %p53 = por %p51, %p52
    %p54 = scmp.ne.s32.totalorder %s43, %s44
    %p55 = scmp.eq.s32.totalorder %s14, 0
    %p56 = por %p54, %p55
    %p57 = scmp.ne.s32.totalorder %s43, %s44
    %p58 = scmp.eq.s32.totalorder %s15, 1
    %p59 = por %p57, %p58
    %p61 = scmp.ne.s32.totalorder %s44, %s60
    %p62 = scmp.eq.s32.totalorder %s15, 0
    %p63 = por %p61, %p62
    %s64 = ssub.s32 %s18, %s27
    %s65 = ssub.s32 %s17, %s31
    %s66 = sor.u32 %s64, %s65
    %p67 = scmp.eq.s32.totalorder %s66, 0
    %s69 = sadd.s32 %s68, 1
    %s70 = scalar_select %p67, %s68, %s69
    %p73 = pneg %p67
    %p74 = scmp.eq.s32.totalorder %s9, 1
    %p75 = por %p73, %p74
    %p76 = scmp.ne.s32.totalorder %s68, %s71
    %p77 = scmp.eq.s32.totalorder %s9, 0
    %p78 = por %p76, %p77
    %p79 = scmp.ne.s32.totalorder %s68, %s71
    %p80 = scmp.eq.s32.totalorder %s14, 1
    %p81 = por %p79, %p80
    %p82 = scmp.ne.s32.totalorder %s71, %s72
    %p83 = scmp.eq.s32.totalorder %s14, 0
    %p84 = por %p82, %p83
    %p85 = scmp.ne.s32.totalorder %s71, %s72
    %p86 = scmp.eq.s32.totalorder %s15, 1
    %p87 = por %p85, %p86
    %p89 = scmp.ne.s32.totalorder %s72, %s88
    %p90 = scmp.eq.s32.totalorder %s15, 0
    %p91 = por %p89, %p90
    %s92 = ssub.s32 %s17, %s31
    %p93 = scmp.eq.s32.totalorder %s92, 0
    %s95 = sadd.s32 %s94, 1
    %s96 = scalar_select %p93, %s94, %s95
    %p99 = pneg %p93
    %p100 = scmp.eq.s32.totalorder %s9, 1
    %p101 = por %p99, %p100
    %p102 = scmp.ne.s32.totalorder %s94, %s97
    %p103 = scmp.eq.s32.totalorder %s9, 0
    %p104 = por %p102, %p103
    %p105 = scmp.ne.s32.totalorder %s94, %s97
    %p106 = scmp.eq.s32.totalorder %s14, 1
    %p107 = por %p105, %p106
    %p108 = scmp.ne.s32.totalorder %s97, %s98
    %p109 = scmp.eq.s32.totalorder %s14, 0
    %p110 = por %p108, %p109
    %p111 = scmp.ne.s32.totalorder %s97, %s98
    %p112 = scmp.eq.s32.totalorder %s15, 1
    %p113 = por %p111, %p112
    %p115 = scmp.ne.s32.totalorder %s98, %s114
    %p116 = scmp.eq.s32.totalorder %s15, 0
    %p117 = por %p115, %p116
    %s118 = ssub.s32 %s16, %s35
    %s119 = ssub.s32 %s17, %s31
    %s120 = sor.u32 %s118, %s119
    %p121 = scmp.eq.s32.totalorder %s120, 0
    %s123 = sadd.s32 %s122, 1
    %s124 = scalar_select %p121, %s122, %s123
    %p127 = pneg %p121
    %p128 = scmp.eq.s32.totalorder %s9, 1
    %p129 = por %p127, %p128
    %p130 = scmp.ne.s32.totalorder %s122, %s125
    %p131 = scmp.eq.s32.totalorder %s9, 0
    %p132 = por %p130, %p131
    %p133 = scmp.ne.s32.totalorder %s122, %s125
    %p134 = scmp.eq.s32.totalorder %s14, 1
    %p135 = por %p133, %p134
    %p136 = scmp.ne.s32.totalorder %s125, %s126
    %p137 = scmp.eq.s32.totalorder %s14, 0
    %p138 = por %p136, %p137
    %p139 = scmp.ne.s32.totalorder %s125, %s126
    %p140 = scmp.eq.s32.totalorder %s15, 1
    %p141 = por %p139, %p140
    %p143 = scmp.ne.s32.totalorder %s126, %s142
    %p144 = scmp.eq.s32.totalorder %s15, 0
    %p145 = por %p143, %p144
    %p146 = scmp.le.s32.totalorder 1, %s9
    %p147 = scmp.lt.s32.totalorder %s9, 3
    %p148 = pnand %p146, %p147
    %p149 = pneg %p148
    // Predicated region
    $region9: #{encoder_decoder_forward.18} parent=5 // pred_check
      _
    $region10: #{encoder_decoder_forward.18} parent=5 // pred_check_branch
      %151 = sbr.rel (%p148) target = $region12
    $region11: #{encoder_decoder_forward.18} parent=5 // pred_region
      %s152 = ssub.s32 %s9, 1
      // Predicated region
      $region13: #{encoder_decoder_forward.18} parent=11 // pred_check
        %p153 = pneg %p110
      $region14: #{encoder_decoder_forward.18} parent=11 // pred_check_branch
        %155 = sbr.rel (%p153) target = $region16
      $region15: #{encoder_decoder_forward.18} parent=11 // pred_region
        %p156 = scmp.lt.s32.totalorder %s20, 0
        %s157 = scalar_select %p156, %s20, 0
        %s158 = scalar_lea.vmem %s2, %s157
      $region16: #{encoder_decoder_forward.18} parent=11 // pred_fallthru
        _
    $region12: #{encoder_decoder_forward.18} parent=5 // pred_fallthru
      _
    %p159 = scmp.lt.s32.totalorder %s9, 2
    // Predicated region
    $region17: #{encoder_decoder_forward.18} parent=5 // pred_check
      %p160 = pneg %p159
    $region18: #{encoder_decoder_forward.18} parent=5 // pred_check_branch
      %162 = sbr.rel (%p160) target = $region20
    $region19: #{encoder_decoder_forward.18} parent=5 // pred_region
      // Predicated region
      $region21: #{encoder_decoder_forward.18} parent=19 // pred_check
        %p163 = pneg %p50
      $region22: #{encoder_decoder_forward.18} parent=19 // pred_check_branch
        %165 = sbr.rel (%p163) target = $region24
      $region23: #{encoder_decoder_forward.18} parent=19 // pred_region
        %s166 = smul.u32 4, %s18
        %p167 = scmp.lt.s32.totalorder %s16, 0
        %s168 = scalar_select %p167, %s16, 0
        %p169 = scmp.lt.s32.totalorder %s166, 7
        %s170 = scalar_select %p169, %s166, 7
        %s171 = smul.addr %s168, 8
        %s172 = sadd.s32 %s170, %s171
        %s173 = smul.addr %s172, 4
        %s174 = scalar_lea.vmem %s0, %s173
        %s175 = smul.u32 4, %s18
      $region24: #{encoder_decoder_forward.18} parent=19 // pred_fallthru
        _
      // Predicated region
      $region25: #{encoder_decoder_forward.18} parent=19 // pred_check
        %p176 = pneg %p78
      $region26: #{encoder_decoder_forward.18} parent=19 // pred_check_branch
        %178 = sbr.rel (%p176) target = $region28
      $region27: #{encoder_decoder_forward.18} parent=19 // pred_region
        %s179 = smul.u32 64, %s18
        %p180 = scmp.lt.s32.totalorder %s179, 127
        %s181 = scalar_select %p180, %s179, 127
        %p182 = scmp.lt.s32.totalorder %s17, 0
        %s183 = scalar_select %p182, %s17, 0
        %s184 = sadd.s32 %s183, %s181
        %s185 = smul.addr %s184, 4
        %s186 = scalar_lea.vmem %s1, %s185
        %s187 = smul.u32 64, %s18
      $region28: #{encoder_decoder_forward.18} parent=19 // pred_fallthru
        _
    $region20: #{encoder_decoder_forward.18} parent=5 // pred_fallthru
      _
    %p188 = scmp.le.s32.totalorder 1, %s9
    %p189 = scmp.lt.s32.totalorder %s9, 3
    %p190 = pnand %p188, %p189
    %p191 = pneg %p190
    // Predicated region
    $region29: #{encoder_decoder_forward.18} parent=5 // pred_check
      _
    $region30: #{encoder_decoder_forward.18} parent=5 // pred_check_branch
      %193 = sbr.rel (%p190) target = $region32
    $region31: #{encoder_decoder_forward.18} parent=5 // pred_region
      %s194 = ssub.s32 %s9, 1
      %s195 = smul.u32 4, %s21
      %p196 = scmp.lt.s32.totalorder %s19, 0
      %s197 = scalar_select %p196, %s19, 0
      %p198 = scmp.lt.s32.totalorder %s195, 7
      %s199 = scalar_select %p198, %s195, 7
      %s200 = smul.addr %s197, 8
      %s201 = sadd.s32 %s199, %s200
      %s202 = smul.addr %s201, 4
      %s203 = scalar_lea.vmem %s0, %s202
      %p204 = pneg %p56
      %p205 = pneg %p53
      %s206 = smul.u32 64, %s21
      %p207 = scmp.lt.s32.totalorder %s206, 127
      %s208 = scalar_select %p207, %s206, 127
      %p209 = scmp.lt.s32.totalorder %s20, 0
      %s210 = scalar_select %p209, %s20, 0
      %s211 = sadd.s32 %s210, %s208
      %s212 = smul.addr %s211, 4
      %s213 = scalar_lea.vmem %s1, %s212
      %p214 = pneg %p84
      %p215 = pneg %p81
      %p216 = scmp.lt.s32.totalorder %s20, 0
      %s217 = scalar_select %p216, %s20, 0
      %s218 = scalar_lea.vmem %s2, %s217
      %p219 = pneg %p110
      %p220 = pneg %p107
      %p221 = pneg %p138
      %p222 = pneg %p135
      %p223 = scmp.lt.s32.totalorder %s19, 0
      %s224 = scalar_select %p223, %s19, 0
      %p225 = scmp.lt.s32.totalorder %s20, 0
      %s226 = scalar_select %p225, %s20, 0
      %s227 = sadd.s32 %s226, %s224
      %s228 = smul.addr %s227, 4
      %s229 = scalar_lea.vmem %s3, %s228
      %s230 = smul.u32 4, %s21
      %p231 = scmp.lt.s32.totalorder %s19, 0
      %s232 = scalar_select %p231, %s19, 0
      %p233 = scmp.lt.s32.totalorder %s230, 7
      %s234 = scalar_select %p233, %s230, 7
      %s235 = smul.addr %s232, 8
      %s236 = sadd.s32 %s234, %s235
      %s237 = smul.addr %s236, 4
      %s238 = scalar_lea.vmem %s0, %s237
      %s239 = smul.u32 4, %s21
      %s240 = smul.u32 64, %s21
      %p241 = scmp.lt.s32.totalorder %s240, 127
      %s242 = scalar_select %p241, %s240, 127
      %p243 = scmp.lt.s32.totalorder %s20, 0
      %s244 = scalar_select %p243, %s20, 0
      %s245 = sadd.s32 %s244, %s242
      %s246 = smul.addr %s245, 4
      %s247 = scalar_lea.vmem %s1, %s246
      %s248 = smul.u32 64, %s21
      %p249 = scmp.lt.s32.totalorder %s20, 0
      %s250 = scalar_select %p249, %s20, 0
      %s251 = scalar_lea.vmem %s2, %s250
      %p252 = scmp.lt.s32.totalorder %s19, 0
      %s253 = scalar_select %p252, %s19, 0
      %p254 = scmp.lt.s32.totalorder %s20, 0
      %s255 = scalar_select %p254, %s20, 0
      %s256 = sadd.s32 %s255, %s253
      %s257 = smul.addr %s256, 4
      %s258 = scalar_lea.vmem %s3, %s257
      %p260 = scmp.eq.s32.totalorder %s21, 0
      // Predicated region
      $region33: #{encoder_decoder_forward.18} parent=31 // pred_check
        %p261 = pneg %p260
      $region34: #{encoder_decoder_forward.18} parent=31 // pred_check_branch
        %263 = sbr.rel (%p261) target = $region36
      $region35: #{encoder_decoder_forward.18} parent=31 // pred_region
        %264 = vst [vmem:[#allocation2] sm:$0xff] 0.0
      $region36: #{encoder_decoder_forward.18} parent=31 // pred_fallthru
        _
      %v265 = vld [vmem:[#allocation2] sm:$0xff]
      %v266 = vld [vmem:[%s238] sm:$0xff]
      %v267 = vld [vmem:[%s238 + $0x8] sm:$0xff]
      %v268 = vld [vmem:[%s247] sm:$0xf]
      %v269 = vld [vmem:[%s247 + $0x4] sm:$0xf]
      %v270 = vld [vmem:[%s247 + $0x8] sm:$0xf]
      %v271 = vld [vmem:[%s247 + $0xc] sm:$0xf]
      %v272 = vld [vmem:[%s247 + $0x10] sm:$0xf]
      %v273 = vld [vmem:[%s247 + $0x14] sm:$0xf]
      %v274 = vld [vmem:[%s247 + $0x18] sm:$0xf]
      %v275 = vld [vmem:[%s247 + $0x1c] sm:$0xf]
      %v276 = vld [vmem:[%s247 + $0x20] sm:$0xf]
      %v277 = vld [vmem:[%s247 + $0x24] sm:$0xf]
      %v278 = vld [vmem:[%s247 + $0x28] sm:$0xf]
      %v279 = vld [vmem:[%s247 + $0x2c] sm:$0xf]
      %v280 = vld [vmem:[%s247 + $0x30] sm:$0xf]
      %v281 = vld [vmem:[%s247 + $0x34] sm:$0xf]
      %v282 = vld [vmem:[%s247 + $0x38] sm:$0xf]
      %v283 = vld [vmem:[%s247 + $0x3c] sm:$0xf]
      %v284 = vld [vmem:[%s247 + $0x40] sm:$0xf]
      %v285 = vld [vmem:[%s247 + $0x44] sm:$0xf]
      %v286 = vld [vmem:[%s247 + $0x48] sm:$0xf]
      %v287 = vld [vmem:[%s247 + $0x4c] sm:$0xf]
      %v288 = vld [vmem:[%s247 + $0x50] sm:$0xf]
      %v289 = vld [vmem:[%s247 + $0x54] sm:$0xf]
      %v290 = vld [vmem:[%s247 + $0x58] sm:$0xf]
      %v291 = vld [vmem:[%s247 + $0x5c] sm:$0xf]
      %v292 = vld [vmem:[%s247 + $0x60] sm:$0xf]
      %v293 = vld [vmem:[%s247 + $0x64] sm:$0xf]
      %v294 = vld [vmem:[%s247 + $0x68] sm:$0xf]
      %v295 = vld [vmem:[%s247 + $0x6c] sm:$0xf]
      %v296 = vld [vmem:[%s247 + $0x70] sm:$0xf]
      %v297 = vld [vmem:[%s247 + $0x74] sm:$0xf]
      %v298 = vld [vmem:[%s247 + $0x78] sm:$0xf]
      %v299 = vld [vmem:[%s247 + $0x7c] sm:$0xf]
      %v300 = vld [vmem:[%s247 + $0x80] sm:$0xf]
      %v301 = vld [vmem:[%s247 + $0x84] sm:$0xf]
      %v302 = vld [vmem:[%s247 + $0x88] sm:$0xf]
      %v303 = vld [vmem:[%s247 + $0x8c] sm:$0xf]
      %v304 = vld [vmem:[%s247 + $0x90] sm:$0xf]
      %v305 = vld [vmem:[%s247 + $0x94] sm:$0xf]
      %v306 = vld [vmem:[%s247 + $0x98] sm:$0xf]
      %v307 = vld [vmem:[%s247 + $0x9c] sm:$0xf]
      %v308 = vld [vmem:[%s247 + $0xa0] sm:$0xf]
      %v309 = vld [vmem:[%s247 + $0xa4] sm:$0xf]
      %v310 = vld [vmem:[%s247 + $0xa8] sm:$0xf]
      %v311 = vld [vmem:[%s247 + $0xac] sm:$0xf]
      %v312 = vld [vmem:[%s247 + $0xb0] sm:$0xf]
      %v313 = vld [vmem:[%s247 + $0xb4] sm:$0xf]
      %v314 = vld [vmem:[%s247 + $0xb8] sm:$0xf]
      %v315 = vld [vmem:[%s247 + $0xbc] sm:$0xf]
      %v316 = vld [vmem:[%s247 + $0xc0] sm:$0xf]
      %v317 = vld [vmem:[%s247 + $0xc4] sm:$0xf]
      %v318 = vld [vmem:[%s247 + $0xc8] sm:$0xf]
      %v319 = vld [vmem:[%s247 + $0xcc] sm:$0xf]
      %v320 = vld [vmem:[%s247 + $0xd0] sm:$0xf]
      %v321 = vld [vmem:[%s247 + $0xd4] sm:$0xf]
      %v322 = vld [vmem:[%s247 + $0xd8] sm:$0xf]
      %v323 = vld [vmem:[%s247 + $0xdc] sm:$0xf]
      %v324 = vld [vmem:[%s247 + $0xe0] sm:$0xf]
      %v325 = vld [vmem:[%s247 + $0xe4] sm:$0xf]
      %v326 = vld [vmem:[%s247 + $0xe8] sm:$0xf]
      %v327 = vld [vmem:[%s247 + $0xec] sm:$0xf]
      %v328 = vld [vmem:[%s247 + $0xf0] sm:$0xf]
      %v329 = vld [vmem:[%s247 + $0xf4] sm:$0xf]
      %v330 = vld [vmem:[%s247 + $0xf8] sm:$0xf]
      %v331 = vld [vmem:[%s247 + $0xfc] sm:$0xf]
      %v334 = vunpack.c.l.b16 %v266
      %v335 = vunpack.c.h.b16 %v266
      %v336 = vunpack.c.l.b16 %v267
      %v337 = vunpack.c.h.b16 %v267
      %v338 = vpack.c.b16 %v334, %v334
      %v339 = vpack.c.b16 %v335, %v335
      %v340 = vpack.c.b16 %v336, %v336
      %v341 = vpack.c.b16 %v337, %v337
      %v410 = vunpack.c.l.b16 %v268
      %v411 = vunpack.c.l.b16 %v269
      %v412 = vunpack.c.l.b16 %v270
      %v413 = vunpack.c.l.b16 %v271
      %v414 = vunpack.c.l.b16 %v272
      %v415 = vunpack.c.l.b16 %v273
      %v416 = vunpack.c.l.b16 %v274
      %v417 = vunpack.c.l.b16 %v275
      %v418 = vunpack.c.l.b16 %v276
      %v419 = vunpack.c.l.b16 %v277
      %v420 = vunpack.c.l.b16 %v278
      %v421 = vunpack.c.l.b16 %v279
      %v422 = vunpack.c.l.b16 %v280
      %v423 = vunpack.c.l.b16 %v281
      %v424 = vunpack.c.l.b16 %v282
      %v425 = vunpack.c.l.b16 %v283
      %v426 = vunpack.c.l.b16 %v284
      %v427 = vunpack.c.l.b16 %v285
      %v428 = vunpack.c.l.b16 %v286
      %v429 = vunpack.c.l.b16 %v287
      %v430 = vunpack.c.l.b16 %v288
      %v431 = vunpack.c.l.b16 %v289
      %v432 = vunpack.c.l.b16 %v290
      %v433 = vunpack.c.l.b16 %v291
      %v434 = vunpack.c.l.b16 %v292
      %v435 = vunpack.c.l.b16 %v293
      %v436 = vunpack.c.l.b16 %v294
      %v437 = vunpack.c.l.b16 %v295
      %v438 = vunpack.c.l.b16 %v296
      %v439 = vunpack.c.l.b16 %v297
      %v440 = vunpack.c.l.b16 %v298
      %v441 = vunpack.c.l.b16 %v299
      %v442 = vunpack.c.l.b16 %v300
      %v443 = vunpack.c.l.b16 %v301
      %v444 = vunpack.c.l.b16 %v302
      %v445 = vunpack.c.l.b16 %v303
      %v446 = vunpack.c.l.b16 %v304
      %v447 = vunpack.c.l.b16 %v305
      %v448 = vunpack.c.l.b16 %v306
      %v449 = vunpack.c.l.b16 %v307
      %v450 = vunpack.c.l.b16 %v308
      %v451 = vunpack.c.l.b16 %v309
      %v452 = vunpack.c.l.b16 %v310
      %v453 = vunpack.c.l.b16 %v311
      %v454 = vunpack.c.l.b16 %v312
      %v455 = vunpack.c.l.b16 %v313
      %v456 = vunpack.c.l.b16 %v314
      %v457 = vunpack.c.l.b16 %v315
      %v458 = vunpack.c.l.b16 %v316
      %v459 = vunpack.c.l.b16 %v317
      %v460 = vunpack.c.l.b16 %v318
      %v461 = vunpack.c.l.b16 %v319
      %v462 = vunpack.c.l.b16 %v320
      %v463 = vunpack.c.l.b16 %v321
      %v464 = vunpack.c.l.b16 %v322
      %v465 = vunpack.c.l.b16 %v323
      %v466 = vunpack.c.l.b16 %v324
      %v467 = vunpack.c.l.b16 %v325
      %v468 = vunpack.c.l.b16 %v326
      %v469 = vunpack.c.l.b16 %v327
      %v470 = vunpack.c.l.b16 %v328
      %v471 = vunpack.c.l.b16 %v329
      %v472 = vunpack.c.l.b16 %v330
      %v473 = vunpack.c.l.b16 %v331
      %v474 = vpack.c.b16 %v411, %v410
      %v475 = vpack.c.b16 %v413, %v412
      %v476 = vpack.c.b16 %v415, %v414
      %v477 = vpack.c.b16 %v417, %v416
      %v478 = vpack.c.b16 %v419, %v418
      %v479 = vpack.c.b16 %v421, %v420
      %v480 = vpack.c.b16 %v423, %v422
      %v481 = vpack.c.b16 %v425, %v424
      %v482 = vpack.c.b16 %v427, %v426
      %v483 = vpack.c.b16 %v429, %v428
      %v484 = vpack.c.b16 %v431, %v430
      %v485 = vpack.c.b16 %v433, %v432
      %v486 = vpack.c.b16 %v435, %v434
      %v487 = vpack.c.b16 %v437, %v436
      %v488 = vpack.c.b16 %v439, %v438
      %v489 = vpack.c.b16 %v441, %v440
      %v490 = vpack.c.b16 %v443, %v442
      %v491 = vpack.c.b16 %v445, %v444
      %v492 = vpack.c.b16 %v447, %v446
      %v493 = vpack.c.b16 %v449, %v448
      %v494 = vpack.c.b16 %v451, %v450
      %v495 = vpack.c.b16 %v453, %v452
      %v496 = vpack.c.b16 %v455, %v454
      %v497 = vpack.c.b16 %v457, %v456
      %v498 = vpack.c.b16 %v459, %v458
      %v499 = vpack.c.b16 %v461, %v460
      %v500 = vpack.c.b16 %v463, %v462
      %v501 = vpack.c.b16 %v465, %v464
      %v502 = vpack.c.b16 %v467, %v466
      %v503 = vpack.c.b16 %v469, %v468
      %v504 = vpack.c.b16 %v471, %v470
      %v505 = vpack.c.b16 %v473, %v472
      %538 = vmatprep.subr.bf16.mxu0 0
      %539 = vmatpush1.bf16.msra.mxu0 %v474
      %540 = vmatprep.subr.bf16.mxu0 0
      %541 = vmatpush1.bf16.msra.mxu0 %v475
      %542 = vmatprep.subr.bf16.mxu0 0
      %543 = vmatpush1.bf16.msra.mxu0 %v476
      %544 = vmatprep.subr.bf16.mxu0 0
      %545 = vmatpush1.bf16.msra.mxu0 %v477
      %546 = vmatprep.subr.bf16.mxu0 0
      %547 = vmatpush1.bf16.msra.mxu0 %v478
      %548 = vmatprep.subr.bf16.mxu0 0
      %549 = vmatpush1.bf16.msra.mxu0 %v479
      %550 = vmatprep.subr.bf16.mxu0 0
      %551 = vmatpush1.bf16.msra.mxu0 %v480
      %552 = vmatprep.subr.bf16.mxu0 0
      %553 = vmatpush1.bf16.msra.mxu0 %v481
      %554 = vmatprep.subr.bf16.mxu0 0
      %555 = vmatpush1.bf16.msra.mxu0 %v482
      %556 = vmatprep.subr.bf16.mxu0 0
      %557 = vmatpush1.bf16.msra.mxu0 %v483
      %558 = vmatprep.subr.bf16.mxu0 0
      %559 = vmatpush1.bf16.msra.mxu0 %v484
      %560 = vmatprep.subr.bf16.mxu0 0
      %561 = vmatpush1.bf16.msra.mxu0 %v485
      %562 = vmatprep.subr.bf16.mxu0 0
      %563 = vmatpush1.bf16.msra.mxu0 %v486
      %564 = vmatprep.subr.bf16.mxu0 0
      %565 = vmatpush1.bf16.msra.mxu0 %v487
      %566 = vmatprep.subr.bf16.mxu0 0
      %567 = vmatpush1.bf16.msra.mxu0 %v488
      %568 = vmatprep.subr.bf16.mxu0 0
      %569 = vmatpush1.bf16.msra.mxu0 %v489
      %570 = vmatprep.mubr.bf16.mxu0 %v339
      %571 = vmatmul.mubr.bf16.gmra.mrb[0].mxu0 %v338
      %v572 = vpop.f32.mrb[0].mxu0
      %v573 = vadd.f32 0.0, %v572
      %v574 = vpop.f32.mrb[0].mxu0
      %v575 = vpop.f32.mrb[0].mxu0
      %v576 = vpop.f32.mrb[0].mxu0
      %577 = vdwg.mxu0
      %578 = vmatprep.subr.bf16.mxu0 0
      %579 = vmatpush1.bf16.msra.mxu0 %v490
      %580 = vmatprep.subr.bf16.mxu0 0
      %581 = vmatpush1.bf16.msra.mxu0 %v491
      %582 = vmatprep.subr.bf16.mxu0 0
      %583 = vmatpush1.bf16.msra.mxu0 %v492
      %584 = vmatprep.subr.bf16.mxu0 0
      %585 = vmatpush1.bf16.msra.mxu0 %v493
      %586 = vmatprep.subr.bf16.mxu0 0
      %587 = vmatpush1.bf16.msra.mxu0 %v494
      %588 = vmatprep.subr.bf16.mxu0 0
      %589 = vmatpush1.bf16.msra.mxu0 %v495
      %590 = vmatprep.subr.bf16.mxu0 0
      %591 = vmatpush1.bf16.msra.mxu0 %v496
      %592 = vmatprep.subr.bf16.mxu0 0
      %593 = vmatpush1.bf16.msra.mxu0 %v497
      %594 = vmatprep.subr.bf16.mxu0 0
      %595 = vmatpush1.bf16.msra.mxu0 %v498
      %596 = vmatprep.subr.bf16.mxu0 0
      %597 = vmatpush1.bf16.msra.mxu0 %v499
      %598 = vmatprep.subr.bf16.mxu0 0
      %599 = vmatpush1.bf16.msra.mxu0 %v500
      %600 = vmatprep.subr.bf16.mxu0 0
      %601 = vmatpush1.bf16.msra.mxu0 %v501
      %602 = vmatprep.subr.bf16.mxu0 0
      %603 = vmatpush1.bf16.msra.mxu0 %v502
      %604 = vmatprep.subr.bf16.mxu0 0
      %605 = vmatpush1.bf16.msra.mxu0 %v503
      %606 = vmatprep.subr.bf16.mxu0 0
      %607 = vmatpush1.bf16.msra.mxu0 %v504
      %608 = vmatprep.subr.bf16.mxu0 0
      %609 = vmatpush1.bf16.msra.mxu0 %v505
      %610 = vmatprep.mubr.bf16.mxu0 %v341
      %611 = vmatmul.mubr.bf16.gmra.mrb[0].mxu0 %v340
      %v612 = vpop.f32.mrb[0].mxu0
      %v613 = vadd.f32 %v573, %v612
      %v614 = vpop.f32.mrb[0].mxu0
      %v615 = vpop.f32.mrb[0].mxu0
      %v616 = vpop.f32.mrb[0].mxu0
      %617 = vdwg.mxu0
      %v618 = vadd.f32 %v265, %v613
      %619 = vst [vmem:[#allocation2] sm:$0xff] %v618
      %p620 = scmp.eq.s32.totalorder %s21, 1
      // Predicated region
      $region37: #{encoder_decoder_forward.18} parent=31 // pred_check
        %p621 = pneg %p620
      $region38: #{encoder_decoder_forward.18} parent=31 // pred_check_branch
        %623 = sbr.rel (%p621) target = $region40
      $region39: #{encoder_decoder_forward.18} parent=31 // pred_region
        %v624 = vld [vmem:[#allocation2] sm:$0xff]
        %v625 = vld [vmem:[%s251] sm:$0x1]
        %v627 = vlaneseq
        %v628 = vshrl.u32 %v627, 7
        %v629 = vsub.s32 0, %v628
        %v630 = vrot.slane %v625, %v629
        %v632 = vadd.f32 %v624, %v630
        %v633 = vmax.f32 %v632, 0.0
        %v634 = vpack.c.bf16 %v633, %v633
        %635 = vst [vmem:[%s258] sm:$0xf] %v634
      $region40: #{encoder_decoder_forward.18} parent=31 // pred_fallthru
        _
      %p636 = scmp.lt.s32.totalorder %s19, 0
      %s637 = scalar_select %p636, %s19, 0
      %p638 = scmp.lt.s32.totalorder %s20, 0
      %s639 = scalar_select %p638, %s20, 0
      %s640 = sadd.s32 %s639, %s637
      %s641 = smul.addr %s640, 4
      %s642 = scalar_lea.vmem %s3, %s641
      // Predicated region
      $region41: #{encoder_decoder_forward.18} parent=31 // pred_check
        %p643 = pneg %p135
      $region42: #{encoder_decoder_forward.18} parent=31 // pred_check_branch
        %645 = sbr.rel (%p643) target = $region44
      $region43: #{encoder_decoder_forward.18} parent=31 // pred_region
        _
      $region44: #{encoder_decoder_forward.18} parent=31 // pred_fallthru
        _
      // Predicated region
      $region45: #{encoder_decoder_forward.18} parent=31 // pred_check
        %p646 = pneg %p135
      $region46: #{encoder_decoder_forward.18} parent=31 // pred_check_branch
        %648 = sbr.rel (%p646) target = $region48
      $region47: #{encoder_decoder_forward.18} parent=31 // pred_region
        %p649 = scmp.lt.s32.totalorder %s19, 0
        %s650 = scalar_select %p649, %s19, 0
        %p651 = scmp.lt.s32.totalorder %s20, 0
        %s652 = scalar_select %p651, %s20, 0
        %s653 = sadd.s32 %s652, %s650
        %s654 = smul.addr %s653, 4
        %s655 = scalar_lea.vmem %s3, %s654
      $region48: #{encoder_decoder_forward.18} parent=31 // pred_fallthru
        _
    $region32: #{encoder_decoder_forward.18} parent=5 // pred_fallthru
      _
    %p656 = scmp.le.s32.totalorder 2, %s9
    // Predicated region
    $region49: #{encoder_decoder_forward.18} parent=5 // pred_check
      %p657 = pneg %p656
    $region50: #{encoder_decoder_forward.18} parent=5 // pred_check_branch
      %659 = sbr.rel (%p657) target = $region52
    $region51: #{encoder_decoder_forward.18} parent=5 // pred_region
      %s660 = ssub.s32 %s9, 2
    $region52: #{encoder_decoder_forward.18} parent=5 // pred_fallthru
      _
  $region6: #{encoder_decoder_forward.18} parent=0 // loop_footer
    %s13 = sadd.s32 1, %s9
  $region7: #{encoder_decoder_forward.18} parent=0 // loop_footer_branch
    %8 = sbr.rel target = $region3
  $region8: #{encoder_decoder_forward.18} parent=0 // loop_exit
    _

// kernel: encoder_decoder_forward.22
$region0: #{encoder_decoder_forward.22}
  #allocation0 [shape = 'u32[]', space=smem, size = 0x4, offset = 0x4, fixed_abs, tag = 'smem constant byte address 0x4 - core index']
  #allocation1 [shape = 'u32[144,128]{1,0:T(1,128)}', space=vmem, size = 0x12000, scoped, tag = 'internal scratch']
  #allocation2 [shape = 'f32[32,128]{1,0:T(8,128)}', space=vmem, size = 0x4000, scoped, tag = 'scratch operand']
  %s0 = inlined_call_operand.vmem [shape: bf16[32,512], index: 0, kind: input, shape index: {}]
  %s1 = inlined_call_operand.vmem [shape: bf16[512,128], index: 1, kind: input, shape index: {}]
  %s2 = inlined_call_operand.vmem [shape: f32[1,128], index: 2, kind: input, shape index: {}]
  %s3 = inlined_call_operand.vmem [shape: bf16[32,128], index: 3, kind: output, shape index: {}]
  %s4 = sld [smem:[#allocation0]]
  $region30: #{encoder_decoder_forward.22} parent=0
    _
  %s6 = ssub.s32 1, %s4
  %s7 = scalar_select 0, %s6, %s4
  // Predicated region
  $region2: #{encoder_decoder_forward.22} parent=0 // pred_check
    _
  $region3: #{encoder_decoder_forward.22} parent=0 // pred_check_branch
    %9 = sbr.rel (0) target = $region5
  $region4: #{encoder_decoder_forward.22} parent=0 // pred_region
    _
  $region5: #{encoder_decoder_forward.22} parent=0 // pred_fallthru
    _
  // Predicated region
  $region6: #{encoder_decoder_forward.22} parent=0 // pred_check
    _
  $region7: #{encoder_decoder_forward.22} parent=0 // pred_check_branch
    %11 = sbr.rel (0) target = $region9
  $region8: #{encoder_decoder_forward.22} parent=0 // pred_region
    _
  $region9: #{encoder_decoder_forward.22} parent=0 // pred_fallthru
    _
  // Predicated region
  $region10: #{encoder_decoder_forward.22} parent=0 // pred_check
    _
  $region11: #{encoder_decoder_forward.22} parent=0 // pred_check_branch
    %13 = sbr.rel (0) target = $region13
  $region12: #{encoder_decoder_forward.22} parent=0 // pred_region
    _
  $region13: #{encoder_decoder_forward.22} parent=0 // pred_fallthru
    _
  %p15 = scmp.eq.s32.totalorder 0, 0
  // Predicated region
  $region14: #{encoder_decoder_forward.22} parent=0 // pred_check
    %p16 = pneg %p15
  $region15: #{encoder_decoder_forward.22} parent=0 // pred_check_branch
    %18 = sbr.rel (%p16) target = $region17
  $region16: #{encoder_decoder_forward.22} parent=0 // pred_region
    %19 = vst [vmem:[#allocation2] sm:$0xff] 0.0
    %20 = vst [vmem:[#allocation2 + $0x8] sm:$0xff] 0.0
    %21 = vst [vmem:[#allocation2 + $0x10] sm:$0xff] 0.0
    %22 = vst [vmem:[#allocation2 + $0x18] sm:$0xff] 0.0
  $region17: #{encoder_decoder_forward.22} parent=0 // pred_fallthru
    _
  %v23 = vld [vmem:[#allocation2] sm:$0xff]
  %v24 = vld [vmem:[#allocation2 + $0x8] sm:$0xff]
  %v25 = vld [vmem:[#allocation2 + $0x10] sm:$0xff]
  %v26 = vld [vmem:[#allocation2 + $0x18] sm:$0xff]
  %v27 = vld [vmem:[%s0] sm:$0xff]
  %v28 = vld [vmem:[%s0 + $0x8] sm:$0xff]
  %v29 = vld [vmem:[%s0 + $0x10] sm:$0xff]
  %v30 = vld [vmem:[%s0 + $0x18] sm:$0xff]
  %v31 = vld [vmem:[%s0 + $0x20] sm:$0xff]
  %v32 = vld [vmem:[%s0 + $0x28] sm:$0xff]
  %v33 = vld [vmem:[%s0 + $0x30] sm:$0xff]
  %v34 = vld [vmem:[%s0 + $0x38] sm:$0xff]
  %v35 = vld [vmem:[%s1] sm:$0xf]
  %v36 = vld [vmem:[%s1 + $0x4] sm:$0xf]
  %v37 = vld [vmem:[%s1 + $0x8] sm:$0xf]
  %v38 = vld [vmem:[%s1 + $0xc] sm:$0xf]
  %v39 = vld [vmem:[%s1 + $0x10] sm:$0xf]
  %v40 = vld [vmem:[%s1 + $0x14] sm:$0xf]
  %v41 = vld [vmem:[%s1 + $0x18] sm:$0xf]
  %v42 = vld [vmem:[%s1 + $0x1c] sm:$0xf]
  %v43 = vld [vmem:[%s1 + $0x20] sm:$0xf]
  %v44 = vld [vmem:[%s1 + $0x24] sm:$0xf]
  %v45 = vld [vmem:[%s1 + $0x28] sm:$0xf]
  %v46 = vld [vmem:[%s1 + $0x2c] sm:$0xf]
  %v47 = vld [vmem:[%s1 + $0x30] sm:$0xf]
  %v48 = vld [vmem:[%s1 + $0x34] sm:$0xf]
  %v49 = vld [vmem:[%s1 + $0x38] sm:$0xf]
  %v50 = vld [vmem:[%s1 + $0x3c] sm:$0xf]
  %v51 = vld [vmem:[%s1 + $0x40] sm:$0xf]
  %v52 = vld [vmem:[%s1 + $0x44] sm:$0xf]
  %v53 = vld [vmem:[%s1 + $0x48] sm:$0xf]
  %v54 = vld [vmem:[%s1 + $0x4c] sm:$0xf]
  %v55 = vld [vmem:[%s1 + $0x50] sm:$0xf]
  %v56 = vld [vmem:[%s1 + $0x54] sm:$0xf]
  %v57 = vld [vmem:[%s1 + $0x58] sm:$0xf]
  %v58 = vld [vmem:[%s1 + $0x5c] sm:$0xf]
  %v59 = vld [vmem:[%s1 + $0x60] sm:$0xf]
  %v60 = vld [vmem:[%s1 + $0x64] sm:$0xf]
  %v61 = vld [vmem:[%s1 + $0x68] sm:$0xf]
  %v62 = vld [vmem:[%s1 + $0x6c] sm:$0xf]
  %v63 = vld [vmem:[%s1 + $0x70] sm:$0xf]
  %v64 = vld [vmem:[%s1 + $0x74] sm:$0xf]
  %v65 = vld [vmem:[%s1 + $0x78] sm:$0xf]
  %v66 = vld [vmem:[%s1 + $0x7c] sm:$0xf]
  %v67 = vld [vmem:[%s1 + $0x80] sm:$0xf]
  %v68 = vld [vmem:[%s1 + $0x84] sm:$0xf]
  %v69 = vld [vmem:[%s1 + $0x88] sm:$0xf]
  %v70 = vld [vmem:[%s1 + $0x8c] sm:$0xf]
  %v71 = vld [vmem:[%s1 + $0x90] sm:$0xf]
  %v72 = vld [vmem:[%s1 + $0x94] sm:$0xf]
  %v73 = vld [vmem:[%s1 + $0x98] sm:$0xf]
  %v74 = vld [vmem:[%s1 + $0x9c] sm:$0xf]
  %v75 = vld [vmem:[%s1 + $0xa0] sm:$0xf]
  %v76 = vld [vmem:[%s1 + $0xa4] sm:$0xf]
  %v77 = vld [vmem:[%s1 + $0xa8] sm:$0xf]
  %v78 = vld [vmem:[%s1 + $0xac] sm:$0xf]
  %v79 = vld [vmem:[%s1 + $0xb0] sm:$0xf]
  %v80 = vld [vmem:[%s1 + $0xb4] sm:$0xf]
  %v81 = vld [vmem:[%s1 + $0xb8] sm:$0xf]
  %v82 = vld [vmem:[%s1 + $0xbc] sm:$0xf]
  %v83 = vld [vmem:[%s1 + $0xc0] sm:$0xf]
  %v84 = vld [vmem:[%s1 + $0xc4] sm:$0xf]
  %v85 = vld [vmem:[%s1 + $0xc8] sm:$0xf]
  %v86 = vld [vmem:[%s1 + $0xcc] sm:$0xf]
  %v87 = vld [vmem:[%s1 + $0xd0] sm:$0xf]
  %v88 = vld [vmem:[%s1 + $0xd4] sm:$0xf]
  %v89 = vld [vmem:[%s1 + $0xd8] sm:$0xf]
  %v90 = vld [vmem:[%s1 + $0xdc] sm:$0xf]
  %v91 = vld [vmem:[%s1 + $0xe0] sm:$0xf]
  %v92 = vld [vmem:[%s1 + $0xe4] sm:$0xf]
  %v93 = vld [vmem:[%s1 + $0xe8] sm:$0xf]
  %v94 = vld [vmem:[%s1 + $0xec] sm:$0xf]
  %v95 = vld [vmem:[%s1 + $0xf0] sm:$0xf]
  %v96 = vld [vmem:[%s1 + $0xf4] sm:$0xf]
  %v97 = vld [vmem:[%s1 + $0xf8] sm:$0xf]
  %v98 = vld [vmem:[%s1 + $0xfc] sm:$0xf]
  %v107 = vunpack.c.l.b16 %v27
  %v108 = vunpack.c.h.b16 %v27
  %v109 = vunpack.c.l.b16 %v28
  %v110 = vunpack.c.h.b16 %v28
  %v111 = vunpack.c.l.b16 %v29
  %v112 = vunpack.c.h.b16 %v29
  %v113 = vunpack.c.l.b16 %v30
  %v114 = vunpack.c.h.b16 %v30
  %v115 = vunpack.c.l.b16 %v31
  %v116 = vunpack.c.h.b16 %v31
  %v117 = vunpack.c.l.b16 %v32
  %v118 = vunpack.c.h.b16 %v32
  %v119 = vunpack.c.l.b16 %v33
  %v120 = vunpack.c.h.b16 %v33
  %v121 = vunpack.c.l.b16 %v34
  %v122 = vunpack.c.h.b16 %v34
  %v123 = vpack.c.b16 %v111, %v107
  %v124 = vpack.c.b16 %v112, %v108
  %v125 = vpack.c.b16 %v113, %v109
  %v126 = vpack.c.b16 %v114, %v110
  %v127 = vpack.c.b16 %v119, %v115
  %v128 = vpack.c.b16 %v120, %v116
  %v129 = vpack.c.b16 %v121, %v117
  %v130 = vpack.c.b16 %v122, %v118
  %v203 = vunpack.c.l.b16 %v35
  %v204 = vunpack.c.l.b16 %v36
  %v205 = vunpack.c.l.b16 %v37
  %v206 = vunpack.c.l.b16 %v38
  %v207 = vunpack.c.l.b16 %v39
  %v208 = vunpack.c.l.b16 %v40
  %v209 = vunpack.c.l.b16 %v41
  %v210 = vunpack.c.l.b16 %v42
  %v211 = vunpack.c.l.b16 %v43
  %v212 = vunpack.c.l.b16 %v44
  %v213 = vunpack.c.l.b16 %v45
  %v214 = vunpack.c.l.b16 %v46
  %v215 = vunpack.c.l.b16 %v47
  %v216 = vunpack.c.l.b16 %v48
  %v217 = vunpack.c.l.b16 %v49
  %v218 = vunpack.c.l.b16 %v50
  %v219 = vunpack.c.l.b16 %v51
  %v220 = vunpack.c.l.b16 %v52
  %v221 = vunpack.c.l.b16 %v53
  %v222 = vunpack.c.l.b16 %v54
  %v223 = vunpack.c.l.b16 %v55
  %v224 = vunpack.c.l.b16 %v56
  %v225 = vunpack.c.l.b16 %v57
  %v226 = vunpack.c.l.b16 %v58
  %v227 = vunpack.c.l.b16 %v59
  %v228 = vunpack.c.l.b16 %v60
  %v229 = vunpack.c.l.b16 %v61
  %v230 = vunpack.c.l.b16 %v62
  %v231 = vunpack.c.l.b16 %v63
  %v232 = vunpack.c.l.b16 %v64
  %v233 = vunpack.c.l.b16 %v65
  %v234 = vunpack.c.l.b16 %v66
  %v235 = vunpack.c.l.b16 %v67
  %v236 = vunpack.c.l.b16 %v68
  %v237 = vunpack.c.l.b16 %v69
  %v238 = vunpack.c.l.b16 %v70
  %v239 = vunpack.c.l.b16 %v71
  %v240 = vunpack.c.l.b16 %v72
  %v241 = vunpack.c.l.b16 %v73
  %v242 = vunpack.c.l.b16 %v74
  %v243 = vunpack.c.l.b16 %v75
  %v244 = vunpack.c.l.b16 %v76
  %v245 = vunpack.c.l.b16 %v77
  %v246 = vunpack.c.l.b16 %v78
  %v247 = vunpack.c.l.b16 %v79
  %v248 = vunpack.c.l.b16 %v80
  %v249 = vunpack.c.l.b16 %v81
  %v250 = vunpack.c.l.b16 %v82
  %v251 = vunpack.c.l.b16 %v83
  %v252 = vunpack.c.l.b16 %v84
  %v253 = vunpack.c.l.b16 %v85
  %v254 = vunpack.c.l.b16 %v86
  %v255 = vunpack.c.l.b16 %v87
  %v256 = vunpack.c.l.b16 %v88
  %v257 = vunpack.c.l.b16 %v89
  %v258 = vunpack.c.l.b16 %v90
  %v259 = vunpack.c.l.b16 %v91
  %v260 = vunpack.c.l.b16 %v92
  %v261 = vunpack.c.l.b16 %v93
  %v262 = vunpack.c.l.b16 %v94
  %v263 = vunpack.c.l.b16 %v95
  %v264 = vunpack.c.l.b16 %v96
  %v265 = vunpack.c.l.b16 %v97
  %v266 = vunpack.c.l.b16 %v98
  %v267 = vpack.c.b16 %v204, %v203
  %v268 = vpack.c.b16 %v206, %v205
  %v269 = vpack.c.b16 %v208, %v207
  %v270 = vpack.c.b16 %v210, %v209
  %v271 = vpack.c.b16 %v212, %v211
  %v272 = vpack.c.b16 %v214, %v213
  %v273 = vpack.c.b16 %v216, %v215
  %v274 = vpack.c.b16 %v218, %v217
  %v275 = vpack.c.b16 %v220, %v219
  %v276 = vpack.c.b16 %v222, %v221
  %v277 = vpack.c.b16 %v224, %v223
  %v278 = vpack.c.b16 %v226, %v225
  %v279 = vpack.c.b16 %v228, %v227
  %v280 = vpack.c.b16 %v230, %v229
  %v281 = vpack.c.b16 %v232, %v231
  %v282 = vpack.c.b16 %v234, %v233
  %v283 = vpack.c.b16 %v236, %v235
  %v284 = vpack.c.b16 %v238, %v237
  %v285 = vpack.c.b16 %v240, %v239
  %v286 = vpack.c.b16 %v242, %v241
  %v287 = vpack.c.b16 %v244, %v243
  %v288 = vpack.c.b16 %v246, %v245
  %v289 = vpack.c.b16 %v248, %v247
  %v290 = vpack.c.b16 %v250, %v249
  %v291 = vpack.c.b16 %v252, %v251
  %v292 = vpack.c.b16 %v254, %v253
  %v293 = vpack.c.b16 %v256, %v255
  %v294 = vpack.c.b16 %v258, %v257
  %v295 = vpack.c.b16 %v260, %v259
  %v296 = vpack.c.b16 %v262, %v261
  %v297 = vpack.c.b16 %v264, %v263
  %v298 = vpack.c.b16 %v266, %v265
  %331 = vmatprep.subr.bf16.mxu0 0
  %332 = vmatpush1.bf16.msra.mxu0 %v267
  %333 = vmatprep.subr.bf16.mxu0 0
  %334 = vmatpush1.bf16.msra.mxu0 %v268
  %335 = vmatprep.subr.bf16.mxu0 0
  %336 = vmatpush1.bf16.msra.mxu0 %v269
  %337 = vmatprep.subr.bf16.mxu0 0
  %338 = vmatpush1.bf16.msra.mxu0 %v270
  %339 = vmatprep.subr.bf16.mxu0 0
  %340 = vmatpush1.bf16.msra.mxu0 %v271
  %341 = vmatprep.subr.bf16.mxu0 0
  %342 = vmatpush1.bf16.msra.mxu0 %v272
  %343 = vmatprep.subr.bf16.mxu0 0
  %344 = vmatpush1.bf16.msra.mxu0 %v273
  %345 = vmatprep.subr.bf16.mxu0 0
  %346 = vmatpush1.bf16.msra.mxu0 %v274
  %347 = vmatprep.subr.bf16.mxu0 0
  %348 = vmatpush1.bf16.msra.mxu0 %v275
  %349 = vmatprep.subr.bf16.mxu0 0
  %350 = vmatpush1.bf16.msra.mxu0 %v276
  %351 = vmatprep.subr.bf16.mxu0 0
  %352 = vmatpush1.bf16.msra.mxu0 %v277
  %353 = vmatprep.subr.bf16.mxu0 0
  %354 = vmatpush1.bf16.msra.mxu0 %v278
  %355 = vmatprep.subr.bf16.mxu0 0
  %356 = vmatpush1.bf16.msra.mxu0 %v279
  %357 = vmatprep.subr.bf16.mxu0 0
  %358 = vmatpush1.bf16.msra.mxu0 %v280
  %359 = vmatprep.subr.bf16.mxu0 0
  %360 = vmatpush1.bf16.msra.mxu0 %v281
  %361 = vmatprep.subr.bf16.mxu0 0
  %362 = vmatpush1.bf16.msra.mxu0 %v282
  %363 = vmatprep.mubr.bf16.mxu0 %v124
  %364 = vmatmul.mubr.bf16.gmra.mrb[0].mxu0 %v123
  %v365 = vpop.f32.mrb[0].mxu0
  %v366 = vadd.f32 0.0, %v365
  %v367 = vpop.f32.mrb[0].mxu0
  %v368 = vpop.f32.mrb[0].mxu0
  %v369 = vadd.f32 0.0, %v368
  %v370 = vpop.f32.mrb[0].mxu0
  %371 = vmatprep.mubr.bf16.mxu0 %v128
  %372 = vmatmul.mubr.bf16.gmra.mrb[0].mxu0 %v127
  %v373 = vpop.f32.mrb[0].mxu0
  %v374 = vadd.f32 0.0, %v373
  %v375 = vpop.f32.mrb[0].mxu0
  %v376 = vpop.f32.mrb[0].mxu0
  %v377 = vadd.f32 0.0, %v376
  %v378 = vpop.f32.mrb[0].mxu0
  %379 = vdwg.mxu0
  %380 = vmatprep.subr.bf16.mxu0 0
  %381 = vmatpush1.bf16.msra.mxu0 %v283
  %382 = vmatprep.subr.bf16.mxu0 0
  %383 = vmatpush1.bf16.msra.mxu0 %v284
  %384 = vmatprep.subr.bf16.mxu0 0
  %385 = vmatpush1.bf16.msra.mxu0 %v285
  %386 = vmatprep.subr.bf16.mxu0 0
  %387 = vmatpush1.bf16.msra.mxu0 %v286
  %388 = vmatprep.subr.bf16.mxu0 0
  %389 = vmatpush1.bf16.msra.mxu0 %v287
  %390 = vmatprep.subr.bf16.mxu0 0
  %391 = vmatpush1.bf16.msra.mxu0 %v288
  %392 = vmatprep.subr.bf16.mxu0 0
  %393 = vmatpush1.bf16.msra.mxu0 %v289
  %394 = vmatprep.subr.bf16.mxu0 0
  %395 = vmatpush1.bf16.msra.mxu0 %v290
  %396 = vmatprep.subr.bf16.mxu0 0
  %397 = vmatpush1.bf16.msra.mxu0 %v291
  %398 = vmatprep.subr.bf16.mxu0 0
  %399 = vmatpush1.bf16.msra.mxu0 %v292
  %400 = vmatprep.subr.bf16.mxu0 0
  %401 = vmatpush1.bf16.msra.mxu0 %v293
  %402 = vmatprep.subr.bf16.mxu0 0
  %403 = vmatpush1.bf16.msra.mxu0 %v294
  %404 = vmatprep.subr.bf16.mxu0 0
  %405 = vmatpush1.bf16.msra.mxu0 %v295
  %406 = vmatprep.subr.bf16.mxu0 0
  %407 = vmatpush1.bf16.msra.mxu0 %v296
  %408 = vmatprep.subr.bf16.mxu0 0
  %409 = vmatpush1.bf16.msra.mxu0 %v297
  %410 = vmatprep.subr.bf16.mxu0 0
  %411 = vmatpush1.bf16.msra.mxu0 %v298
  %412 = vmatprep.mubr.bf16.mxu0 %v126
  %413 = vmatmul.mubr.bf16.gmra.mrb[0].mxu0 %v125
  %v414 = vpop.f32.mrb[0].mxu0
  %v415 = vadd.f32 %v366, %v414
  %v416 = vpop.f32.mrb[0].mxu0
  %v417 = vpop.f32.mrb[0].mxu0
  %v418 = vadd.f32 %v369, %v417
  %v419 = vpop.f32.mrb[0].mxu0
  %420 = vmatprep.mubr.bf16.mxu0 %v130
  %421 = vmatmul.mubr.bf16.gmra.mrb[0].mxu0 %v129
  %v422 = vpop.f32.mrb[0].mxu0
  %v423 = vadd.f32 %v374, %v422
  %v424 = vpop.f32.mrb[0].mxu0
  %v425 = vpop.f32.mrb[0].mxu0
  %v426 = vadd.f32 %v377, %v425
  %v427 = vpop.f32.mrb[0].mxu0
  %428 = vdwg.mxu0
  %v429 = vadd.f32 %v23, %v415
  %v430 = vadd.f32 %v24, %v418
  %v431 = vadd.f32 %v25, %v423
  %v432 = vadd.f32 %v26, %v426
  %433 = vst [vmem:[#allocation2] sm:$0xff] %v429
  %434 = vst [vmem:[#allocation2 + $0x8] sm:$0xff] %v430
  %435 = vst [vmem:[#allocation2 + $0x10] sm:$0xff] %v431
  %436 = vst [vmem:[#allocation2 + $0x18] sm:$0xff] %v432
  // Predicated region
  $region18: #{encoder_decoder_forward.22} parent=0 // pred_check
    %p437 = pneg %p15
  $region19: #{encoder_decoder_forward.22} parent=0 // pred_check_branch
    %439 = sbr.rel (%p437) target = $region21
  $region20: #{encoder_decoder_forward.22} parent=0 // pred_region
    %v440 = vld [vmem:[#allocation2] sm:$0xff]
    %v441 = vld [vmem:[#allocation2 + $0x8] sm:$0xff]
    %v442 = vld [vmem:[#allocation2 + $0x10] sm:$0xff]
    %v443 = vld [vmem:[#allocation2 + $0x18] sm:$0xff]
    %v444 = vld [vmem:[%s2] sm:$0x1]
    %v446 = vlaneseq
    %v447 = vshrl.u32 %v446, 7
    %v448 = vsub.s32 0, %v447
    %v449 = vrot.slane %v444, %v448
    %v451 = vadd.f32 %v440, %v449
    %v452 = vadd.f32 %v441, %v449
    %v453 = vadd.f32 %v442, %v449
    %v454 = vadd.f32 %v443, %v449
    %v455 = vmax.f32 %v451, 0.0
    %v456 = vmax.f32 %v452, 0.0
    %v457 = vmax.f32 %v453, 0.0
    %v458 = vmax.f32 %v454, 0.0
    %v459 = vpack.c.bf16 %v456, %v455
    %v460 = vpack.c.bf16 %v458, %v457
    %v463 = vunpack.c.l.b16 %v459
    %v464 = vunpack.c.h.b16 %v459
    %v465 = vunpack.c.l.b16 %v460
    %v466 = vunpack.c.h.b16 %v460
    %v467 = vpack.c.b16 %v463, %v463
    %v468 = vpack.c.b16 %v464, %v464
    %v469 = vpack.c.b16 %v465, %v465
    %v470 = vpack.c.b16 %v466, %v466
    %475 = vst [vmem:[%s3] sm:$0xf] %v467
    %476 = vst [vmem:[%s3 + $0x4] sm:$0xf] %v468
    %477 = vst [vmem:[%s3 + $0x8] sm:$0xf] %v469
    %478 = vst [vmem:[%s3 + $0xc] sm:$0xf] %v470
  $region21: #{encoder_decoder_forward.22} parent=0 // pred_fallthru
    _
  // Predicated region
  $region22: #{encoder_decoder_forward.22} parent=0 // pred_check
    _
  $region23: #{encoder_decoder_forward.22} parent=0 // pred_check_branch
    %480 = sbr.rel (0) target = $region25
  $region24: #{encoder_decoder_forward.22} parent=0 // pred_region
    _
  $region25: #{encoder_decoder_forward.22} parent=0 // pred_fallthru
    _
  // Predicated region
  $region26: #{encoder_decoder_forward.22} parent=0 // pred_check
    _
  $region27: #{encoder_decoder_forward.22} parent=0 // pred_check_branch
    %482 = sbr.rel (0) target = $region29
  $region28: #{encoder_decoder_forward.22} parent=0 // pred_region
    _
  $region29: #{encoder_decoder_forward.22} parent=0 // pred_fallthru
    _

// kernel: encoder_decoder_forward.26
$region0: #{encoder_decoder_forward.26}
  #allocation0 [shape = 'u32[]', space=smem, size = 0x4, offset = 0x4, fixed_abs, tag = 'smem constant byte address 0x4 - core index']
  #allocation1 [shape = 'u32[144,128]{1,0:T(1,128)}', space=vmem, size = 0x12000, scoped, tag = 'internal scratch']
  #allocation2 [shape = 'f32[128,128]{1,0:T(8,128)}', space=vmem, size = 0x10000, scoped, tag = 'scratch operand']
  %s0 = inlined_call_operand.vmem [shape: bf16[128,256], index: 0, kind: input, shape index: {}]
  %s1 = inlined_call_operand.vmem [shape: bf16[256,128], index: 1, kind: input, shape index: {}]
  %s2 = inlined_call_operand.vmem [shape: f32[1,128], index: 2, kind: input, shape index: {}]
  %s3 = inlined_call_operand.vmem [shape: f32[128,128], index: 3, kind: output, shape index: {}]
  %s4 = sld [smem:[#allocation0]]
  $region30: #{encoder_decoder_forward.26} parent=0
    _
  %s6 = ssub.s32 1, %s4
  %s7 = scalar_select 0, %s6, %s4
  // Predicated region
  $region2: #{encoder_decoder_forward.26} parent=0 // pred_check
    _
  $region3: #{encoder_decoder_forward.26} parent=0 // pred_check_branch
    %9 = sbr.rel (0) target = $region5
  $region4: #{encoder_decoder_forward.26} parent=0 // pred_region
    _
  $region5: #{encoder_decoder_forward.26} parent=0 // pred_fallthru
    _
  // Predicated region
  $region6: #{encoder_decoder_forward.26} parent=0 // pred_check
    _
  $region7: #{encoder_decoder_forward.26} parent=0 // pred_check_branch
    %11 = sbr.rel (0) target = $region9
  $region8: #{encoder_decoder_forward.26} parent=0 // pred_region
    _
  $region9: #{encoder_decoder_forward.26} parent=0 // pred_fallthru
    _
  // Predicated region
  $region10: #{encoder_decoder_forward.26} parent=0 // pred_check
    _
  $region11: #{encoder_decoder_forward.26} parent=0 // pred_check_branch
    %13 = sbr.rel (0) target = $region13
  $region12: #{encoder_decoder_forward.26} parent=0 // pred_region
    _
  $region13: #{encoder_decoder_forward.26} parent=0 // pred_fallthru
    _
  %p15 = scmp.eq.s32.totalorder 0, 0
  // Predicated region
  $region14: #{encoder_decoder_forward.26} parent=0 // pred_check
    %p16 = pneg %p15
  $region15: #{encoder_decoder_forward.26} parent=0 // pred_check_branch
    %18 = sbr.rel (%p16) target = $region17
  $region16: #{encoder_decoder_forward.26} parent=0 // pred_region
    %19 = vst [vmem:[#allocation2] sm:$0xff] 0.0
    %20 = vst [vmem:[#allocation2 + $0x8] sm:$0xff] 0.0
    %21 = vst [vmem:[#allocation2 + $0x10] sm:$0xff] 0.0
    %22 = vst [vmem:[#allocation2 + $0x18] sm:$0xff] 0.0
    %23 = vst [vmem:[#allocation2 + $0x20] sm:$0xff] 0.0
    %24 = vst [vmem:[#allocation2 + $0x28] sm:$0xff] 0.0
    %25 = vst [vmem:[#allocation2 + $0x30] sm:$0xff] 0.0
    %26 = vst [vmem:[#allocation2 + $0x38] sm:$0xff] 0.0
    %27 = vst [vmem:[#allocation2 + $0x40] sm:$0xff] 0.0
    %28 = vst [vmem:[#allocation2 + $0x48] sm:$0xff] 0.0
    %29 = vst [vmem:[#allocation2 + $0x50] sm:$0xff] 0.0
    %30 = vst [vmem:[#allocation2 + $0x58] sm:$0xff] 0.0
    %31 = vst [vmem:[#allocation2 + $0x60] sm:$0xff] 0.0
    %32 = vst [vmem:[#allocation2 + $0x68] sm:$0xff] 0.0
    %33 = vst [vmem:[#allocation2 + $0x70] sm:$0xff] 0.0
    %34 = vst [vmem:[#allocation2 + $0x78] sm:$0xff] 0.0
  $region17: #{encoder_decoder_forward.26} parent=0 // pred_fallthru
    _
  %v35 = vld [vmem:[#allocation2] sm:$0xff]
  %v36 = vld [vmem:[#allocation2 + $0x8] sm:$0xff]
  %v37 = vld [vmem:[#allocation2 + $0x10] sm:$0xff]
  %v38 = vld [vmem:[#allocation2 + $0x18] sm:$0xff]
  %v39 = vld [vmem:[#allocation2 + $0x20] sm:$0xff]
  %v40 = vld [vmem:[#allocation2 + $0x28] sm:$0xff]
  %v41 = vld [vmem:[#allocation2 + $0x30] sm:$0xff]
  %v42 = vld [vmem:[#allocation2 + $0x38] sm:$0xff]
  %v43 = vld [vmem:[#allocation2 + $0x40] sm:$0xff]
  %v44 = vld [vmem:[#allocation2 + $0x48] sm:$0xff]
  %v45 = vld [vmem:[#allocation2 + $0x50] sm:$0xff]
  %v46 = vld [vmem:[#allocation2 + $0x58] sm:$0xff]
  %v47 = vld [vmem:[#allocation2 + $0x60] sm:$0xff]
  %v48 = vld [vmem:[#allocation2 + $0x68] sm:$0xff]
  %v49 = vld [vmem:[#allocation2 + $0x70] sm:$0xff]
  %v50 = vld [vmem:[#allocation2 + $0x78] sm:$0xff]
  %v51 = vld [vmem:[%s0] sm:$0xff]
  %v52 = vld [vmem:[%s0 + $0x8] sm:$0xff]
  %v53 = vld [vmem:[%s0 + $0x10] sm:$0xff]
  %v54 = vld [vmem:[%s0 + $0x18] sm:$0xff]
  %v55 = vld [vmem:[%s0 + $0x20] sm:$0xff]
  %v56 = vld [vmem:[%s0 + $0x28] sm:$0xff]
  %v57 = vld [vmem:[%s0 + $0x30] sm:$0xff]
  %v58 = vld [vmem:[%s0 + $0x38] sm:$0xff]
  %v59 = vld [vmem:[%s0 + $0x40] sm:$0xff]
  %v60 = vld [vmem:[%s0 + $0x48] sm:$0xff]
  %v61 = vld [vmem:[%s0 + $0x50] sm:$0xff]
  %v62 = vld [vmem:[%s0 + $0x58] sm:$0xff]
  %v63 = vld [vmem:[%s0 + $0x60] sm:$0xff]
  %v64 = vld [vmem:[%s0 + $0x68] sm:$0xff]
  %v65 = vld [vmem:[%s0 + $0x70] sm:$0xff]
  %v66 = vld [vmem:[%s0 + $0x78] sm:$0xff]
  %v67 = vld [vmem:[%s1] sm:$0xf]
  %v68 = vld [vmem:[%s1 + $0x4] sm:$0xf]
  %v69 = vld [vmem:[%s1 + $0x8] sm:$0xf]
  %v70 = vld [vmem:[%s1 + $0xc] sm:$0xf]
  %v71 = vld [vmem:[%s1 + $0x10] sm:$0xf]
  %v72 = vld [vmem:[%s1 + $0x14] sm:$0xf]
  %v73 = vld [vmem:[%s1 + $0x18] sm:$0xf]
  %v74 = vld [vmem:[%s1 + $0x1c] sm:$0xf]
  %v75 = vld [vmem:[%s1 + $0x20] sm:$0xf]
  %v76 = vld [vmem:[%s1 + $0x24] sm:$0xf]
  %v77 = vld [vmem:[%s1 + $0x28] sm:$0xf]
  %v78 = vld [vmem:[%s1 + $0x2c] sm:$0xf]
  %v79 = vld [vmem:[%s1 + $0x30] sm:$0xf]
  %v80 = vld [vmem:[%s1 + $0x34] sm:$0xf]
  %v81 = vld [vmem:[%s1 + $0x38] sm:$0xf]
  %v82 = vld [vmem:[%s1 + $0x3c] sm:$0xf]
  %v83 = vld [vmem:[%s1 + $0x40] sm:$0xf]
  %v84 = vld [vmem:[%s1 + $0x44] sm:$0xf]
  %v85 = vld [vmem:[%s1 + $0x48] sm:$0xf]
  %v86 = vld [vmem:[%s1 + $0x4c] sm:$0xf]
  %v87 = vld [vmem:[%s1 + $0x50] sm:$0xf]
  %v88 = vld [vmem:[%s1 + $0x54] sm:$0xf]
  %v89 = vld [vmem:[%s1 + $0x58] sm:$0xf]
  %v90 = vld [vmem:[%s1 + $0x5c] sm:$0xf]
  %v91 = vld [vmem:[%s1 + $0x60] sm:$0xf]
  %v92 = vld [vmem:[%s1 + $0x64] sm:$0xf]
  %v93 = vld [vmem:[%s1 + $0x68] sm:$0xf]
  %v94 = vld [vmem:[%s1 + $0x6c] sm:$0xf]
  %v95 = vld [vmem:[%s1 + $0x70] sm:$0xf]
  %v96 = vld [vmem:[%s1 + $0x74] sm:$0xf]
  %v97 = vld [vmem:[%s1 + $0x78] sm:$0xf]
  %v98 = vld [vmem:[%s1 + $0x7c] sm:$0xf]
  %v115 = vunpack.c.l.b16 %v51
  %v116 = vunpack.c.h.b16 %v51
  %v117 = vunpack.c.l.b16 %v52
  %v118 = vunpack.c.h.b16 %v52
  %v119 = vunpack.c.l.b16 %v53
  %v120 = vunpack.c.h.b16 %v53
  %v121 = vunpack.c.l.b16 %v54
  %v122 = vunpack.c.h.b16 %v54
  %v123 = vunpack.c.l.b16 %v55
  %v124 = vunpack.c.h.b16 %v55
  %v125 = vunpack.c.l.b16 %v56
  %v126 = vunpack.c.h.b16 %v56
  %v127 = vunpack.c.l.b16 %v57
  %v128 = vunpack.c.h.b16 %v57
  %v129 = vunpack.c.l.b16 %v58
  %v130 = vunpack.c.h.b16 %v58
  %v131 = vunpack.c.l.b16 %v59
  %v132 = vunpack.c.h.b16 %v59
  %v133 = vunpack.c.l.b16 %v60
  %v134 = vunpack.c.h.b16 %v60
  %v135 = vunpack.c.l.b16 %v61
  %v136 = vunpack.c.h.b16 %v61
  %v137 = vunpack.c.l.b16 %v62
  %v138 = vunpack.c.h.b16 %v62
  %v139 = vunpack.c.l.b16 %v63
  %v140 = vunpack.c.h.b16 %v63
  %v141 = vunpack.c.l.b16 %v64
  %v142 = vunpack.c.h.b16 %v64
  %v143 = vunpack.c.l.b16 %v65
  %v144 = vunpack.c.h.b16 %v65
  %v145 = vunpack.c.l.b16 %v66
  %v146 = vunpack.c.h.b16 %v66
  %v147 = vpack.c.b16 %v117, %v115
  %v148 = vpack.c.b16 %v118, %v116
  %v149 = vpack.c.b16 %v121, %v119
  %v150 = vpack.c.b16 %v122, %v120
  %v151 = vpack.c.b16 %v125, %v123
  %v152 = vpack.c.b16 %v126, %v124
  %v153 = vpack.c.b16 %v129, %v127
  %v154 = vpack.c.b16 %v130, %v128
  %v155 = vpack.c.b16 %v133, %v131
  %v156 = vpack.c.b16 %v134, %v132
  %v157 = vpack.c.b16 %v137, %v135
  %v158 = vpack.c.b16 %v138, %v136
  %v159 = vpack.c.b16 %v141, %v139
  %v160 = vpack.c.b16 %v142, %v140
  %v161 = vpack.c.b16 %v145, %v143
  %v162 = vpack.c.b16 %v146, %v144
  %v211 = vunpack.c.l.b16 %v67
  %v212 = vunpack.c.l.b16 %v68
  %v213 = vunpack.c.l.b16 %v69
  %v214 = vunpack.c.l.b16 %v70
  %v215 = vunpack.c.l.b16 %v71
  %v216 = vunpack.c.l.b16 %v72
  %v217 = vunpack.c.l.b16 %v73
  %v218 = vunpack.c.l.b16 %v74
  %v219 = vunpack.c.l.b16 %v75
  %v220 = vunpack.c.l.b16 %v76
  %v221 = vunpack.c.l.b16 %v77
  %v222 = vunpack.c.l.b16 %v78
  %v223 = vunpack.c.l.b16 %v79
  %v224 = vunpack.c.l.b16 %v80
  %v225 = vunpack.c.l.b16 %v81
  %v226 = vunpack.c.l.b16 %v82
  %v227 = vunpack.c.l.b16 %v83
  %v228 = vunpack.c.l.b16 %v84
  %v229 = vunpack.c.l.b16 %v85
  %v230 = vunpack.c.l.b16 %v86
  %v231 = vunpack.c.l.b16 %v87
  %v232 = vunpack.c.l.b16 %v88
  %v233 = vunpack.c.l.b16 %v89
  %v234 = vunpack.c.l.b16 %v90
  %v235 = vunpack.c.l.b16 %v91
  %v236 = vunpack.c.l.b16 %v92
  %v237 = vunpack.c.l.b16 %v93
  %v238 = vunpack.c.l.b16 %v94
  %v239 = vunpack.c.l.b16 %v95
  %v240 = vunpack.c.l.b16 %v96
  %v241 = vunpack.c.l.b16 %v97
  %v242 = vunpack.c.l.b16 %v98
  %v243 = vpack.c.b16 %v212, %v211
  %v244 = vpack.c.b16 %v214, %v213
  %v245 = vpack.c.b16 %v216, %v215
  %v246 = vpack.c.b16 %v218, %v217
  %v247 = vpack.c.b16 %v220, %v219
  %v248 = vpack.c.b16 %v222, %v221
  %v249 = vpack.c.b16 %v224, %v223
  %v250 = vpack.c.b16 %v226, %v225
  %v251 = vpack.c.b16 %v228, %v227
  %v252 = vpack.c.b16 %v230, %v229
  %v253 = vpack.c.b16 %v232, %v231
  %v254 = vpack.c.b16 %v234, %v233
  %v255 = vpack.c.b16 %v236, %v235
  %v256 = vpack.c.b16 %v238, %v237
  %v257 = vpack.c.b16 %v240, %v239
  %v258 = vpack.c.b16 %v242, %v241
  %275 = vmatprep.subr.bf16.mxu0 0
  %276 = vmatpush1.bf16.msra.mxu0 %v243
  %277 = vmatprep.subr.bf16.mxu0 0
  %278 = vmatpush1.bf16.msra.mxu0 %v244
  %279 = vmatprep.subr.bf16.mxu0 0
  %280 = vmatpush1.bf16.msra.mxu0 %v245
  %281 = vmatprep.subr.bf16.mxu0 0
  %282 = vmatpush1.bf16.msra.mxu0 %v246
  %283 = vmatprep.subr.bf16.mxu0 0
  %284 = vmatpush1.bf16.msra.mxu0 %v247
  %285 = vmatprep.subr.bf16.mxu0 0
  %286 = vmatpush1.bf16.msra.mxu0 %v248
  %287 = vmatprep.subr.bf16.mxu0 0
  %288 = vmatpush1.bf16.msra.mxu0 %v249
  %289 = vmatprep.subr.bf16.mxu0 0
  %290 = vmatpush1.bf16.msra.mxu0 %v250
  %291 = vmatprep.subr.bf16.mxu0 0
  %292 = vmatpush1.bf16.msra.mxu0 %v251
  %293 = vmatprep.subr.bf16.mxu0 0
  %294 = vmatpush1.bf16.msra.mxu0 %v252
  %295 = vmatprep.subr.bf16.mxu0 0
  %296 = vmatpush1.bf16.msra.mxu0 %v253
  %297 = vmatprep.subr.bf16.mxu0 0
  %298 = vmatpush1.bf16.msra.mxu0 %v254
  %299 = vmatprep.subr.bf16.mxu0 0
  %300 = vmatpush1.bf16.msra.mxu0 %v255
  %301 = vmatprep.subr.bf16.mxu0 0
  %302 = vmatpush1.bf16.msra.mxu0 %v256
  %303 = vmatprep.subr.bf16.mxu0 0
  %304 = vmatpush1.bf16.msra.mxu0 %v257
  %305 = vmatprep.subr.bf16.mxu0 0
  %306 = vmatpush1.bf16.msra.mxu0 %v258
  %307 = vmatprep.mubr.bf16.mxu0 %v148
  %308 = vmatmul.mubr.bf16.gmra.mrb[0].mxu0 %v147
  %v309 = vpop.f32.mrb[0].mxu0
  %v310 = vadd.f32 0.0, %v309
  %v311 = vpop.f32.mrb[0].mxu0
  %v312 = vpop.f32.mrb[0].mxu0
  %v313 = vadd.f32 0.0, %v312
  %v314 = vpop.f32.mrb[0].mxu0
  %315 = vmatprep.mubr.bf16.mxu0 %v150
  %316 = vmatmul.mubr.bf16.gmra.mrb[0].mxu0 %v149
  %v317 = vpop.f32.mrb[0].mxu0
  %v318 = vadd.f32 0.0, %v317
  %v319 = vpop.f32.mrb[0].mxu0
  %v320 = vpop.f32.mrb[0].mxu0
  %v321 = vadd.f32 0.0, %v320
  %v322 = vpop.f32.mrb[0].mxu0
  %323 = vmatprep.mubr.bf16.mxu0 %v152
  %324 = vmatmul.mubr.bf16.gmra.mrb[0].mxu0 %v151
  %v325 = vpop.f32.mrb[0].mxu0
  %v326 = vadd.f32 0.0, %v325
  %v327 = vpop.f32.mrb[0].mxu0
  %v328 = vpop.f32.mrb[0].mxu0
  %v329 = vadd.f32 0.0, %v328
  %v330 = vpop.f32.mrb[0].mxu0
  %331 = vmatprep.mubr.bf16.mxu0 %v154
  %332 = vmatmul.mubr.bf16.gmra.mrb[0].mxu0 %v153
  %v333 = vpop.f32.mrb[0].mxu0
  %v334 = vadd.f32 0.0, %v333
  %v335 = vpop.f32.mrb[0].mxu0
  %v336 = vpop.f32.mrb[0].mxu0
  %v337 = vadd.f32 0.0, %v336
  %v338 = vpop.f32.mrb[0].mxu0
  %339 = vmatprep.mubr.bf16.mxu0 %v156
  %340 = vmatmul.mubr.bf16.gmra.mrb[0].mxu0 %v155
  %v341 = vpop.f32.mrb[0].mxu0
  %v342 = vadd.f32 0.0, %v341
  %v343 = vpop.f32.mrb[0].mxu0
  %v344 = vpop.f32.mrb[0].mxu0
  %v345 = vadd.f32 0.0, %v344
  %v346 = vpop.f32.mrb[0].mxu0
  %347 = vmatprep.mubr.bf16.mxu0 %v158
  %348 = vmatmul.mubr.bf16.gmra.mrb[0].mxu0 %v157
  %v349 = vpop.f32.mrb[0].mxu0
  %v350 = vadd.f32 0.0, %v349
  %v351 = vpop.f32.mrb[0].mxu0
  %v352 = vpop.f32.mrb[0].mxu0
  %v353 = vadd.f32 0.0, %v352
  %v354 = vpop.f32.mrb[0].mxu0
  %355 = vmatprep.mubr.bf16.mxu0 %v160
  %356 = vmatmul.mubr.bf16.gmra.mrb[0].mxu0 %v159
  %v357 = vpop.f32.mrb[0].mxu0
  %v358 = vadd.f32 0.0, %v357
  %v359 = vpop.f32.mrb[0].mxu0
  %v360 = vpop.f32.mrb[0].mxu0
  %v361 = vadd.f32 0.0, %v360
  %v362 = vpop.f32.mrb[0].mxu0
  %363 = vmatprep.mubr.bf16.mxu0 %v162
  %364 = vmatmul.mubr.bf16.gmra.mrb[0].mxu0 %v161
  %v365 = vpop.f32.mrb[0].mxu0
  %v366 = vadd.f32 0.0, %v365
  %v367 = vpop.f32.mrb[0].mxu0
  %v368 = vpop.f32.mrb[0].mxu0
  %v369 = vadd.f32 0.0, %v368
  %v370 = vpop.f32.mrb[0].mxu0
  %371 = vdwg.mxu0
  %v372 = vadd.f32 %v35, %v310
  %v373 = vadd.f32 %v36, %v313
  %v374 = vadd.f32 %v37, %v318
  %v375 = vadd.f32 %v38, %v321
  %v376 = vadd.f32 %v39, %v326
  %v377 = vadd.f32 %v40, %v329
  %v378 = vadd.f32 %v41, %v334
  %v379 = vadd.f32 %v42, %v337
  %v380 = vadd.f32 %v43, %v342
  %v381 = vadd.f32 %v44, %v345
  %v382 = vadd.f32 %v45, %v350
  %v383 = vadd.f32 %v46, %v353
  %v384 = vadd.f32 %v47, %v358
  %v385 = vadd.f32 %v48, %v361
  %v386 = vadd.f32 %v49, %v366
  %v387 = vadd.f32 %v50, %v369
  %388 = vst [vmem:[#allocation2] sm:$0xff] %v372
  %389 = vst [vmem:[#allocation2 + $0x8] sm:$0xff] %v373
  %390 = vst [vmem:[#allocation2 + $0x10] sm:$0xff] %v374
  %391 = vst [vmem:[#allocation2 + $0x18] sm:$0xff] %v375
  %392 = vst [vmem:[#allocation2 + $0x20] sm:$0xff] %v376
  %393 = vst [vmem:[#allocation2 + $0x28] sm:$0xff] %v377
  %394 = vst [vmem:[#allocation2 + $0x30] sm:$0xff] %v378
  %395 = vst [vmem:[#allocation2 + $0x38] sm:$0xff] %v379
  %396 = vst [vmem:[#allocation2 + $0x40] sm:$0xff] %v380
  %397 = vst [vmem:[#allocation2 + $0x48] sm:$0xff] %v381
  %398 = vst [vmem:[#allocation2 + $0x50] sm:$0xff] %v382
  %399 = vst [vmem:[#allocation2 + $0x58] sm:$0xff] %v383
  %400 = vst [vmem:[#allocation2 + $0x60] sm:$0xff] %v384
  %401 = vst [vmem:[#allocation2 + $0x68] sm:$0xff] %v385
  %402 = vst [vmem:[#allocation2 + $0x70] sm:$0xff] %v386
  %403 = vst [vmem:[#allocation2 + $0x78] sm:$0xff] %v387
  // Predicated region
  $region18: #{encoder_decoder_forward.26} parent=0 // pred_check
    %p404 = pneg %p15
  $region19: #{encoder_decoder_forward.26} parent=0 // pred_check_branch
    %406 = sbr.rel (%p404) target = $region21
  $region20: #{encoder_decoder_forward.26} parent=0 // pred_region
    %v407 = vld [vmem:[#allocation2] sm:$0xff]
    %v408 = vld [vmem:[#allocation2 + $0x8] sm:$0xff]
    %v409 = vld [vmem:[#allocation2 + $0x10] sm:$0xff]
    %v410 = vld [vmem:[#allocation2 + $0x18] sm:$0xff]
    %v411 = vld [vmem:[#allocation2 + $0x20] sm:$0xff]
    %v412 = vld [vmem:[#allocation2 + $0x28] sm:$0xff]
    %v413 = vld [vmem:[#allocation2 + $0x30] sm:$0xff]
    %v414 = vld [vmem:[#allocation2 + $0x38] sm:$0xff]
    %v415 = vld [vmem:[#allocation2 + $0x40] sm:$0xff]
    %v416 = vld [vmem:[#allocation2 + $0x48] sm:$0xff]
    %v417 = vld [vmem:[#allocation2 + $0x50] sm:$0xff]
    %v418 = vld [vmem:[#allocation2 + $0x58] sm:$0xff]
    %v419 = vld [vmem:[#allocation2 + $0x60] sm:$0xff]
    %v420 = vld [vmem:[#allocation2 + $0x68] sm:$0xff]
    %v421 = vld [vmem:[#allocation2 + $0x70] sm:$0xff]
    %v422 = vld [vmem:[#allocation2 + $0x78] sm:$0xff]
    %v423 = vld [vmem:[%s2] sm:$0x1]
    %v425 = vlaneseq
    %v426 = vshrl.u32 %v425, 7
    %v427 = vsub.s32 0, %v426
    %v428 = vrot.slane %v423, %v427
    %v430 = vadd.f32 %v407, %v428
    %v431 = vadd.f32 %v408, %v428
    %v432 = vadd.f32 %v409, %v428
    %v433 = vadd.f32 %v410, %v428
    %v434 = vadd.f32 %v411, %v428
    %v435 = vadd.f32 %v412, %v428
    %v436 = vadd.f32 %v413, %v428
    %v437 = vadd.f32 %v414, %v428
    %v438 = vadd.f32 %v415, %v428
    %v439 = vadd.f32 %v416, %v428
    %v440 = vadd.f32 %v417, %v428
    %v441 = vadd.f32 %v418, %v428
    %v442 = vadd.f32 %v419, %v428
    %v443 = vadd.f32 %v420, %v428
    %v444 = vadd.f32 %v421, %v428
    %v445 = vadd.f32 %v422, %v428
    %v446 = vxor.u32 %v430, 2147483648
    %v447 = vxor.u32 %v431, 2147483648
    %v448 = vxor.u32 %v432, 2147483648
    %v449 = vxor.u32 %v433, 2147483648
    %v450 = vxor.u32 %v434, 2147483648
    %v451 = vxor.u32 %v435, 2147483648
    %v452 = vxor.u32 %v436, 2147483648
    %v453 = vxor.u32 %v437, 2147483648
    %v454 = vxor.u32 %v438, 2147483648
    %v455 = vxor.u32 %v439, 2147483648
    %v456 = vxor.u32 %v440, 2147483648
    %v457 = vxor.u32 %v441, 2147483648
    %v458 = vxor.u32 %v442, 2147483648
    %v459 = vxor.u32 %v443, 2147483648
    %v460 = vxor.u32 %v444, 2147483648
    %v461 = vxor.u32 %v445, 2147483648
    %v462 = vmul.f32 %v446, 1.442695
    %v463 = vpow.pop %v462
    %v464 = vmul.f32 %v447, 1.442695
    %v465 = vpow.pop %v464
    %v466 = vmul.f32 %v448, 1.442695
    %v467 = vpow.pop %v466
    %v468 = vmul.f32 %v449, 1.442695
    %v469 = vpow.pop %v468
    %v470 = vmul.f32 %v450, 1.442695
    %v471 = vpow.pop %v470
    %v472 = vmul.f32 %v451, 1.442695
    %v473 = vpow.pop %v472
    %v474 = vmul.f32 %v452, 1.442695
    %v475 = vpow.pop %v474
    %v476 = vmul.f32 %v453, 1.442695
    %v477 = vpow.pop %v476
    %v478 = vmul.f32 %v454, 1.442695
    %v479 = vpow.pop %v478
    %v480 = vmul.f32 %v455, 1.442695
    %v481 = vpow.pop %v480
    %v482 = vmul.f32 %v456, 1.442695
    %v483 = vpow.pop %v482
    %v484 = vmul.f32 %v457, 1.442695
    %v485 = vpow.pop %v484
    %v486 = vmul.f32 %v458, 1.442695
    %v487 = vpow.pop %v486
    %v488 = vmul.f32 %v459, 1.442695
    %v489 = vpow.pop %v488
    %v490 = vmul.f32 %v460, 1.442695
    %v491 = vpow.pop %v490
    %v492 = vmul.f32 %v461, 1.442695
    %v493 = vpow.pop %v492
    %v494 = vadd.f32 %v463, 1.0
    %v495 = vadd.f32 %v465, 1.0
    %v496 = vadd.f32 %v467, 1.0
    %v497 = vadd.f32 %v469, 1.0
    %v498 = vadd.f32 %v471, 1.0
    %v499 = vadd.f32 %v473, 1.0
    %v500 = vadd.f32 %v475, 1.0
    %v501 = vadd.f32 %v477, 1.0
    %v502 = vadd.f32 %v479, 1.0
    %v503 = vadd.f32 %v481, 1.0
    %v504 = vadd.f32 %v483, 1.0
    %v505 = vadd.f32 %v485, 1.0
    %v506 = vadd.f32 %v487, 1.0
    %v507 = vadd.f32 %v489, 1.0
    %v508 = vadd.f32 %v491, 1.0
    %v509 = vadd.f32 %v493, 1.0
    %v510 = vrcp.pop %v494
    %v511 = vmul.f32 1.0, %v510
    %v512 = vrcp.pop %v495
    %v513 = vmul.f32 1.0, %v512
    %v514 = vrcp.pop %v496
    %v515 = vmul.f32 1.0, %v514
    %v516 = vrcp.pop %v497
    %v517 = vmul.f32 1.0, %v516
    %v518 = vrcp.pop %v498
    %v519 = vmul.f32 1.0, %v518
    %v520 = vrcp.pop %v499
    %v521 = vmul.f32 1.0, %v520
    %v522 = vrcp.pop %v500
    %v523 = vmul.f32 1.0, %v522
    %v524 = vrcp.pop %v501
    %v525 = vmul.f32 1.0, %v524
    %v526 = vrcp.pop %v502
    %v527 = vmul.f32 1.0, %v526
    %v528 = vrcp.pop %v503
    %v529 = vmul.f32 1.0, %v528
    %v530 = vrcp.pop %v504
    %v531 = vmul.f32 1.0, %v530
    %v532 = vrcp.pop %v505
    %v533 = vmul.f32 1.0, %v532
    %v534 = vrcp.pop %v506
    %v535 = vmul.f32 1.0, %v534
    %v536 = vrcp.pop %v507
    %v537 = vmul.f32 1.0, %v536
    %v538 = vrcp.pop %v508
    %v539 = vmul.f32 1.0, %v538
    %v540 = vrcp.pop %v509
    %v541 = vmul.f32 1.0, %v540
    %542 = vst [vmem:[%s3] sm:$0xff] %v511
    %543 = vst [vmem:[%s3 + $0x8] sm:$0xff] %v513
    %544 = vst [vmem:[%s3 + $0x10] sm:$0xff] %v515
    %545 = vst [vmem:[%s3 + $0x18] sm:$0xff] %v517
    %546 = vst [vmem:[%s3 + $0x20] sm:$0xff] %v519
    %547 = vst [vmem:[%s3 + $0x28] sm:$0xff] %v521
    %548 = vst [vmem:[%s3 + $0x30] sm:$0xff] %v523
    %549 = vst [vmem:[%s3 + $0x38] sm:$0xff] %v525
    %550 = vst [vmem:[%s3 + $0x40] sm:$0xff] %v527
    %551 = vst [vmem:[%s3 + $0x48] sm:$0xff] %v529
    %552 = vst [vmem:[%s3 + $0x50] sm:$0xff] %v531
    %553 = vst [vmem:[%s3 + $0x58] sm:$0xff] %v533
    %554 = vst [vmem:[%s3 + $0x60] sm:$0xff] %v535
    %555 = vst [vmem:[%s3 + $0x68] sm:$0xff] %v537
    %556 = vst [vmem:[%s3 + $0x70] sm:$0xff] %v539
    %557 = vst [vmem:[%s3 + $0x78] sm:$0xff] %v541
  $region21: #{encoder_decoder_forward.26} parent=0 // pred_fallthru
    _
  // Predicated region
  $region22: #{encoder_decoder_forward.26} parent=0 // pred_check
    _
  $region23: #{encoder_decoder_forward.26} parent=0 // pred_check_branch
    %559 = sbr.rel (0) target = $region25
  $region24: #{encoder_decoder_forward.26} parent=0 // pred_region
    _
  $region25: #{encoder_decoder_forward.26} parent=0 // pred_fallthru
    _
  // Predicated region
  $region26: #{encoder_decoder_forward.26} parent=0 // pred_check
    _
  $region27: #{encoder_decoder_forward.26} parent=0 // pred_check_branch
    %561 = sbr.rel (0) target = $region29
  $region28: #{encoder_decoder_forward.26} parent=0 // pred_region
    _
  $region29: #{encoder_decoder_forward.26} parent=0 // pred_fallthru
    _

</llo_original>
